<compile_context>
chip_gen: v7x
topology: tpu7x:2x2x1
jax: 0.10.0
libtpu: 0.0.40
codegen_flags: <defaults>
</compile_context>

<pallas_src>
import math
from functools import partial

import jax
import jax.numpy as jnp
from jax.experimental import pallas as pl
from jax.experimental.pallas import tpu as pltpu

SCALE = math.sqrt(0.5)


# -----------------------------------------------------------------------------
# In-kernel helpers
# -----------------------------------------------------------------------------

def _dot_bf16(x, w):
    """MXU dot: bf16 operands (v6e/v7x native 2x256 mode), f32 accumulation."""
    return jnp.dot(x.astype(jnp.bfloat16), w.astype(jnp.bfloat16),
                   preferred_element_type=jnp.float32)


def _sigmoid(x):
    # exp + approximate reciprocal: both land on the EUP slot (slack next to the exp),
    # keeping the GLU epilogue off a multi-op VPU divide on the serial critical path.
    return pl.reciprocal(1.0 + jnp.exp(-x), approx=True)


def _tap_shift_masks(BL, L, B, ksize, pad_lo, width):
    """Static (tap, row-shift, invalid-row mask) triplets for one conv.

    Tap j of the conv reads hidden row (t + j - pad_lo); output rows whose source falls
    outside the batch element's [0, L) range must read the pad value instead.  The masks
    depend only on static shapes, so they are built once and reused by every layer
    (hoisted out of the layer loop)."""
    r = jax.lax.broadcasted_iota(jnp.int32, (BL, width), 0)
    taps = []
    for j in range(ksize):
        s = pad_lo - j                       # output row t reads hidden row t - s
        if s == 0:
            taps.append((j, 0, None))
            continue
        invalid = r < 0                      # all-False start
        for b in range(B):
            if s > 0:                        # first s rows of each batch read padding
                invalid = invalid | ((r >= b * L) & (r < b * L + s))
            else:                            # last -s rows of each batch read padding
                invalid = invalid | ((r >= (b + 1) * L + s) & (r < (b + 1) * L))
        taps.append((j, s, invalid))
    return taps


def _conv_glu(hid, w_ref, b_ref, layer, taps, *, ksize, H, pad_val):
    """One conv + GLU layer as `ksize` accumulated MXU dots on the resident hidden state.

    The per-tap row shift is a static jnp.roll (sublane shift) plus a boundary-mask
    select — no im2col buffer, no masked sub-tile VMEM stores between matmuls.
    # TODO(synk): pltpu.roll is the XLU-native form of the shift; jnp.roll (static
    # slice+concat) is used here for maximum lowering robustness at these tiny shapes.
    """
    acc = None
    for (j, s, invalid) in taps:
        x = hid if s == 0 else jnp.roll(hid, s, axis=0)
        if invalid is not None:
            x = jnp.where(invalid, pad_val, x)
        d = _dot_bf16(x, w_ref[layer * ksize + j])             # (BL, 2H), f32 acc
        acc = d if acc is None else acc + d
    acc = acc + b_ref[layer]
    return acc[:, :H] * _sigmoid(acc[:, H:])                   # GLU -> (BL, H)


# -----------------------------------------------------------------------------
# Fused kernel: full encoder stack + full decoder stack + attention + fc_out
# -----------------------------------------------------------------------------

def _seq2seq_kernel(enc_emb_ref, dec_emb_ref,
                    ee2hw_ref, ee2hb_ref, ecw_ref, ecb_ref, eh2ew_ref, eh2eb_ref,
                    de2hw_ref, de2hb_ref, dcw_ref, dcb_ref,
                    ah2ew_ref, ah2eb_ref, ae2hw_ref, ae2hb_ref,
                    dh2ew_ref, dh2eb_ref, fcw_ref, fcb_ref,
                    out_ref, attn_ref,
                    *, n_layers, ksize, H, B, Ls, Lt, pad_val):
    BLs, BLt = B * Ls, B * Lt

    # ------------------------------- encoder --------------------------------
    enc_emb = enc_emb_ref[...]                                             # (B*Ls, E)
    hid = _dot_bf16(enc_emb, ee2hw_ref[...]) + ee2hb_ref[...]              # (B*Ls, H)
    enc_taps = _tap_shift_masks(BLs, Ls, B, ksize, (ksize - 1) // 2, H)
    for layer in range(n_layers):                                          # static unroll
        glu = _conv_glu(hid, ecw_ref, ecb_ref, layer, enc_taps,
                        ksize=ksize, H=H, pad_val=0.0)
        hid = (glu + hid) * SCALE                                          # fused residual
    enc_conved = _dot_bf16(hid, eh2ew_ref[...]) + eh2eb_ref[...]           # (B*Ls, E)
    enc_combined = (enc_conved + enc_emb) * SCALE
    encc_bf = enc_conved.astype(jnp.bfloat16)                              # cast once, reuse
    encco_bf = enc_combined.astype(jnp.bfloat16)

    # ------------------------------- decoder --------------------------------
    dec_emb = dec_emb_ref[...]                                             # (B*Lt, E)
    hid = _dot_bf16(dec_emb, de2hw_ref[...]) + de2hb_ref[...]              # (B*Lt, H)
    # Causal left pad; pad rows hold trg_pad_idx — intentional quirk mirroring the
    # PyTorch reference's conv_input padding .fill_(trg_pad_idx) on hidden activations.
    dec_taps = _tap_shift_masks(BLt, Lt, B, ksize, ksize - 1, H)

    # Block-diagonal attention mask (queries of batch b only attend to keys of batch b),
    # hoisted out of the layer loop.
    rr = jax.lax.broadcasted_iota(jnp.int32, (BLt, BLs), 0)
    cc = jax.lax.broadcasted_iota(jnp.int32, (BLt, BLs), 1)
    same_batch = rr < 0                                                    # all-False
    for b in range(B):
        same_batch = same_batch | ((rr >= b * Lt) & (rr < (b + 1) * Lt) &
                                   (cc >= b * Ls) & (cc < (b + 1) * Ls))

    for layer in range(n_layers):                                          # static unroll
        conved = _conv_glu(hid, dcw_ref, dcb_ref, layer, dec_taps,
                           ksize=ksize, H=H, pad_val=pad_val)              # (B*Lt, H)

        # ----- attention: a single block-diagonal matmul across the whole batch -----
        conved_emb = _dot_bf16(conved, ah2ew_ref[...]) + ah2eb_ref[...]    # (B*Lt, E)
        combined = (conved_emb + dec_emb) * SCALE
        energy = jax.lax.dot_general(                                      # (B*Lt, B*Ls)
            combined.astype(jnp.bfloat16), encc_bf,
            (((1,), (1,)), ((), ())), preferred_element_type=jnp.float32)
        energy = jnp.where(same_batch, energy, -1e30)                      # kill cross-batch
        m = jnp.max(energy, axis=-1, keepdims=True)
        ex = jnp.exp(energy - m)
        # Exact reciprocal: the attention map is returned as a probability distribution.
        attn = ex * pl.reciprocal(jnp.sum(ex, axis=-1, keepdims=True), approx=False)
        if layer == n_layers - 1:            # only the last layer's attention is returned
            # TODO(synk): attention keeps its natural lane-sparse (B, Lt, Ls) shape;
            # padding Ls to 128 would need extra softmax masking and isn't worth it here.
            for b in range(B):
                attn_ref[b] = attn[b * Lt:(b + 1) * Lt, b * Ls:(b + 1) * Ls]
        attended = _dot_bf16(attn, encco_bf)                               # (B*Lt, E)
        attended_hid = _dot_bf16(attended, ae2hw_ref[...]) + ae2hb_ref[...]  # (B*Lt, H)
        conved = (conved + attended_hid) * SCALE                           # fused residuals
        hid = (conved + hid) * SCALE

    conved = _dot_bf16(hid, dh2ew_ref[...]) + dh2eb_ref[...]               # (B*Lt, E)
    out_ref[...] = _dot_bf16(conved, fcw_ref[...]) + fcb_ref[...]          # lane-dense store


# -----------------------------------------------------------------------------
# One-time parameter packing for the kernel (bf16 weights, lane-padded fc_out)
# -----------------------------------------------------------------------------

def pack_params(p, out_dim):
    """Done ONCE (not per forward): bf16 MXU weights, (1, N) f32 biases, conv weights
    flattened tap-major to (n_layers*ksize, H, 2H), fc_out lane-padded to a multiple of
    128 so the big output store is unmasked.  Embedding tables stay f32."""
    emb_dim = p["fc_out_w"].shape[0]
    n_layers, ksize, H, H2 = p["enc_conv_w"].shape
    V = out_dim
    Vp = ((V + 127) // 128) * 128
    bf = lambda w: w.astype(jnp.bfloat16)
    row = lambda b: b.reshape(1, -1).astype(jnp.float32)
    fcw = jnp.zeros((emb_dim, Vp), jnp.float32).at[:, :V].set(p["fc_out_w"])
    fcb = jnp.zeros((1, Vp), jnp.float32).at[:, :V].set(p["fc_out_b"])
    return {
        "enc_tok_emb": p["enc_tok_emb"], "enc_pos_emb": p["enc_pos_emb"],
        "dec_tok_emb": p["dec_tok_emb"], "dec_pos_emb": p["dec_pos_emb"],
        "enc_emb2hid_w": bf(p["enc_emb2hid_w"]), "enc_emb2hid_b": row(p["enc_emb2hid_b"]),
        "enc_hid2emb_w": bf(p["enc_hid2emb_w"]), "enc_hid2emb_b": row(p["enc_hid2emb_b"]),
        "enc_conv_w": bf(p["enc_conv_w"].reshape(n_layers * ksize, H, H2)),
        "enc_conv_b": p["enc_conv_b"].astype(jnp.float32),
        "dec_emb2hid_w": bf(p["dec_emb2hid_w"]), "dec_emb2hid_b": row(p["dec_emb2hid_b"]),
        "dec_hid2emb_w": bf(p["dec_hid2emb_w"]), "dec_hid2emb_b": row(p["dec_hid2emb_b"]),
        "dec_conv_w": bf(p["dec_conv_w"].reshape(n_layers * ksize, H, H2)),
        "dec_conv_b": p["dec_conv_b"].astype(jnp.float32),
        "attn_hid2emb_w": bf(p["attn_hid2emb_w"]), "attn_hid2emb_b": row(p["attn_hid2emb_b"]),
        "attn_emb2hid_w": bf(p["attn_emb2hid_w"]), "attn_emb2hid_b": row(p["attn_emb2hid_b"]),
        "fc_out_w": bf(fcw), "fc_out_b": fcb,
    }


# -----------------------------------------------------------------------------
# Full forward (Pallas) — one pallas_call for the entire Seq2Seq forward
# -----------------------------------------------------------------------------

def seq2seq_forward_pallas(kp, src, trg, ksize, hid_dim, n_layers, trg_pad_idx, out_dim):
    B, Ls = src.shape
    Lt = trg.shape[1]
    E = kp["enc_tok_emb"].shape[1]
    Vp = kp["fc_out_w"].shape[1]
    # TODO(synk): embedding gathers stay in plain JAX (XLA gather); a DMA-gather Pallas
    # kernel is possible but pointless at these sizes.
    enc_emb = jnp.take(kp["enc_tok_emb"], src, axis=0) + kp["enc_pos_emb"][:Ls][None]
    dec_emb = jnp.take(kp["dec_tok_emb"], trg, axis=0) + kp["dec_pos_emb"][:Lt][None]

    kern = partial(_seq2seq_kernel, n_layers=n_layers, ksize=ksize, H=hid_dim,
                   B=B, Ls=Ls, Lt=Lt, pad_val=float(trg_pad_idx))
    out_p, attn = pl.pallas_call(
        kern,
        out_shape=(jax.ShapeDtypeStruct((B * Lt, Vp), jnp.float32),
                   jax.ShapeDtypeStruct((B, Lt, Ls), jnp.float32)),
        # Single program; every operand is fully VMEM-resident (footprint << 1 MiB, so the
        # limit below is pure headroom / documentation).
        # TODO(synk): add a grid over B (or B*L row tiles) with
        # dimension_semantics=("parallel",) for v7x dual-TC once batch leaves toy size.
        compiler_params=pltpu.CompilerParams(vmem_limit_bytes=32 * 1024 * 1024),
    )(enc_emb.reshape(B * Ls, E).astype(jnp.float32),
      dec_emb.reshape(B * Lt, E).astype(jnp.float32),
      kp["enc_emb2hid_w"], kp["enc_emb2hid_b"], kp["enc_conv_w"], kp["enc_conv_b"],
      kp["enc_hid2emb_w"], kp["enc_hid2emb_b"],
      kp["dec_emb2hid_w"], kp["dec_emb2hid_b"], kp["dec_conv_w"], kp["dec_conv_b"],
      kp["attn_hid2emb_w"], kp["attn_hid2emb_b"], kp["attn_emb2hid_w"], kp["attn_emb2hid_b"],
      kp["dec_hid2emb_w"], kp["dec_hid2emb_b"], kp["fc_out_w"], kp["fc_out_b"])
    return out_p[:, :out_dim].reshape(B, Lt, out_dim), attn


# -----------------------------------------------------------------------------
# Pure-JAX f32 reference of the same math (for correctness checking)
# -----------------------------------------------------------------------------

def _ref_conv_glu(x, w, b, ksize, H, pad_lo, pad_hi, pad_val):
    B, L, _ = x.shape
    xpad = jnp.pad(x, ((0, 0), (pad_lo, pad_hi), (0, 0)), constant_values=pad_val)
    acc = jnp.zeros((B, L, 2 * H), jnp.float32) + b.reshape(1, 1, 2 * H)
    for j in range(ksize):
        acc = acc + jnp.einsum('blh,ho->blo', xpad[:, j:j + L, :], w[j])
    return acc[..., :H] * jax.nn.sigmoid(acc[..., H:])


def seq2seq_forward_ref(p, src, trg, ksize, hid_dim, n_layers, trg_pad_idx, out_dim):
    H = hid_dim
    B, Ls = src.shape
    Lt = trg.shape[1]
    # encoder
    emb = jnp.take(p["enc_tok_emb"], src, axis=0) + p["enc_pos_emb"][:Ls][None]
    hid = emb @ p["enc_emb2hid_w"] + p["enc_emb2hid_b"]
    pad = (ksize - 1) // 2
    for l in range(n_layers):
        conved = _ref_conv_glu(hid, p["enc_conv_w"][l], p["enc_conv_b"][l],
                               ksize, H, pad, pad, 0.0)
        hid = (conved + hid) * SCALE
    enc_conved = hid @ p["enc_hid2emb_w"] + p["enc_hid2emb_b"]
    enc_combined = (enc_conved + emb) * SCALE
    # decoder
    demb = jnp.take(p["dec_tok_emb"], trg, axis=0) + p["dec_pos_emb"][:Lt][None]
    hid = demb @ p["dec_emb2hid_w"] + p["dec_emb2hid_b"]
    attn = None
    for l in range(n_layers):
        conved = _ref_conv_glu(hid, p["dec_conv_w"][l], p["dec_conv_b"][l],
                               ksize, H, ksize - 1, 0, float(trg_pad_idx))
        conved_emb = conved @ p["attn_hid2emb_w"] + p["attn_hid2emb_b"]
        combined = (conved_emb + demb) * SCALE
        energy = jnp.einsum('bte,bse->bts', combined, enc_conved)
        attn = jax.nn.softmax(energy, axis=-1)
        attended = jnp.einsum('bts,bse->bte', attn, enc_combined)
        attended_hid = attended @ p["attn_emb2hid_w"] + p["attn_emb2hid_b"]
        conved = (conved + attended_hid) * SCALE
        hid = (conved + hid) * SCALE
    conved = hid @ p["dec_hid2emb_w"] + p["dec_hid2emb_b"]
    output = conved @ p["fc_out_w"] + p["fc_out_b"]
    return output, attn


# -----------------------------------------------------------------------------
# Deterministic parameter init (conv weights: [n_layers, ksize, H, 2H], tap-major)
# -----------------------------------------------------------------------------

def init_params(key, input_dim, output_dim, emb_dim, hid_dim, n_layers, ksize, max_len):
    keys = iter(jax.random.split(key, 64))

    def w(shape, s=0.1):
        return (s * jax.random.normal(next(keys), shape)).astype(jnp.float32)

    return {
        "enc_tok_emb": w((input_dim, emb_dim)),
        "enc_pos_emb": w((max_len, emb_dim)),
        "enc_emb2hid_w": w((emb_dim, hid_dim)), "enc_emb2hid_b": w((hid_dim,), 0.02),
        "enc_hid2emb_w": w((hid_dim, emb_dim)), "enc_hid2emb_b": w((emb_dim,), 0.02),
        "enc_conv_w": w((n_layers, ksize, hid_dim, 2 * hid_dim)),
        "enc_conv_b": w((n_layers, 1, 2 * hid_dim), 0.02),
        "dec_tok_emb": w((output_dim, emb_dim)),
        "dec_pos_emb": w((max_len, emb_dim)),
        "dec_emb2hid_w": w((emb_dim, hid_dim)), "dec_emb2hid_b": w((hid_dim,), 0.02),
        "dec_hid2emb_w": w((hid_dim, emb_dim)), "dec_hid2emb_b": w((emb_dim,), 0.02),
        "attn_hid2emb_w": w((hid_dim, emb_dim)), "attn_hid2emb_b": w((emb_dim,), 0.02),
        "attn_emb2hid_w": w((emb_dim, hid_dim)), "attn_emb2hid_b": w((hid_dim,), 0.02),
        "fc_out_w": w((emb_dim, output_dim)), "fc_out_b": w((output_dim,), 0.02),
        "dec_conv_w": w((n_layers, ksize, hid_dim, 2 * hid_dim)),
        "dec_conv_b": w((n_layers, 1, 2 * hid_dim), 0.02),
    }


# -----------------------------------------------------------------------------
# Main
# -----------------------------------------------------------------------------

if __name__ == "__main__":
    INPUT_DIM, OUTPUT_DIM = 37, 41
    EMB_DIM, HID_DIM = 32, 64
    N_LAYERS, KSIZE, MAX_LEN = 2, 3, 16
    TRG_PAD_IDX = 1
    B, SRC_LEN, TRG_LEN = 2, 10, 8

    key = jax.random.PRNGKey(0)
    kparam, ksrc, ktrg = jax.random.split(key, 3)
    params = init_params(kparam, INPUT_DIM, OUTPUT_DIM, EMB_DIM, HID_DIM,
                         N_LAYERS, KSIZE, MAX_LEN)
    packed = pack_params(params, OUTPUT_DIM)   # one-time: bf16 weights, lane-padded fc_out

    src = jax.random.randint(ksrc, (B, SRC_LEN), 0, INPUT_DIM, dtype=jnp.int32)
    trg = jax.random.randint(ktrg, (B, TRG_LEN), 0, OUTPUT_DIM, dtype=jnp.int32)

    fwd = jax.jit(partial(seq2seq_forward_pallas, ksize=KSIZE, hid_dim=HID_DIM,
                          n_layers=N_LAYERS, trg_pad_idx=TRG_PAD_IDX,
                          out_dim=OUTPUT_DIM))
    output, attention = fwd(packed, src, trg)
    output = jax.block_until_ready(output)
    attention = jax.block_until_ready(attention)

    assert output.shape == (B, TRG_LEN, OUTPUT_DIM)
    assert attention.shape == (B, TRG_LEN, SRC_LEN)

    # Correctness vs. a pure-JAX f32 reference of the same math.  Tolerances account for
    # bf16 MXU operands (f32 accumulation) and the EUP-approximate sigmoid reciprocal;
    # the returned attention uses an exact reciprocal and stays much tighter.
    ref_out, ref_attn = seq2seq_forward_ref(params, src, trg, KSIZE, HID_DIM,
                                            N_LAYERS, TRG_PAD_IDX, OUTPUT_DIM)
    err_o = float(jnp.max(jnp.abs(output - ref_out)))
    err_a = float(jnp.max(jnp.abs(attention - ref_attn)))
    assert err_o < 2e-2, f"output mismatch: {err_o}"
    assert err_a < 5e-3, f"attention mismatch: {err_a}"

    print("KERNEL_OK")
</pallas_src>

<mosaic_0001>
module attributes {stable_mosaic.version = 11 : i64} {
  func.func @_seq2seq_kernel(%arg0: memref<20x32xf32, #tpu.memory_space<vmem>>, %arg1: memref<16x32xf32, #tpu.memory_space<vmem>>, %arg2: memref<32x64xbf16, #tpu.memory_space<vmem>>, %arg3: memref<1x64xf32, #tpu.memory_space<vmem>>, %arg4: memref<6x64x128xbf16, #tpu.memory_space<vmem>>, %arg5: memref<2x1x128xf32, #tpu.memory_space<vmem>>, %arg6: memref<64x32xbf16, #tpu.memory_space<vmem>>, %arg7: memref<1x32xf32, #tpu.memory_space<vmem>>, %arg8: memref<32x64xbf16, #tpu.memory_space<vmem>>, %arg9: memref<1x64xf32, #tpu.memory_space<vmem>>, %arg10: memref<6x64x128xbf16, #tpu.memory_space<vmem>>, %arg11: memref<2x1x128xf32, #tpu.memory_space<vmem>>, %arg12: memref<64x32xbf16, #tpu.memory_space<vmem>>, %arg13: memref<1x32xf32, #tpu.memory_space<vmem>>, %arg14: memref<32x64xbf16, #tpu.memory_space<vmem>>, %arg15: memref<1x64xf32, #tpu.memory_space<vmem>>, %arg16: memref<64x32xbf16, #tpu.memory_space<vmem>>, %arg17: memref<1x32xf32, #tpu.memory_space<vmem>>, %arg18: memref<32x128xbf16, #tpu.memory_space<vmem>>, %arg19: memref<1x128xf32, #tpu.memory_space<vmem>>, %arg20: memref<16x128xf32, #tpu.memory_space<vmem>>, %arg21: memref<2x8x10xf32, #tpu.memory_space<vmem>>) attributes {dimension_semantics = [], scalar_prefetch = 0 : i64, scratch_operands = 0 : i64, tpu.core_type = #tpu.core_type<tc>} {
    %c0 = arith.constant 0 : index
    %c0_0 = arith.constant 0 : index
    %0 = vector.load %arg0[%c0, %c0_0] : memref<20x32xf32, #tpu.memory_space<vmem>>, vector<20x32xf32>
    %c0_1 = arith.constant 0 : index
    %c0_2 = arith.constant 0 : index
    %1 = vector.load %arg2[%c0_1, %c0_2] : memref<32x64xbf16, #tpu.memory_space<vmem>>, vector<32x64xbf16>
    %2 = arith.truncf %0 : vector<20x32xf32> to vector<20x32xbf16>
    %cst = arith.constant dense<0.000000e+00> : vector<20x64xf32>
    %3 = tpu.matmul %2, %1, %cst {dimension_numbers = #tpu.dot_dimension_numbers<[1], [0], [0], [1], [0, 0, 1, 1], [], []>} : vector<20x32xbf16>, vector<32x64xbf16>, vector<20x64xf32> -> vector<20x64xf32>
    %c0_3 = arith.constant 0 : index
    %c0_4 = arith.constant 0 : index
    %4 = vector.load %arg3[%c0_3, %c0_4] : memref<1x64xf32, #tpu.memory_space<vmem>>, vector<1x64xf32>
    %5 = vector.broadcast %4 : vector<1x64xf32> to vector<20x64xf32>
    %6 = arith.addf %3, %5 : vector<20x64xf32>
    %7 = tpu.iota {dimensions = array<i32: 0>} : vector<20x64xi32>
    %c0_i32 = arith.constant 0 : i32
    %8 = vector.broadcast %c0_i32 : i32 to vector<20x64xi32>
    %9 = arith.cmpi slt, %7, %8 : vector<20x64xi32>
    %c0_i32_5 = arith.constant 0 : i32
    %10 = vector.broadcast %c0_i32_5 : i32 to vector<20x64xi32>
    %11 = arith.cmpi sge, %7, %10 : vector<20x64xi32>
    %c1_i32 = arith.constant 1 : i32
    %12 = vector.broadcast %c1_i32 : i32 to vector<20x64xi32>
    %13 = arith.cmpi slt, %7, %12 : vector<20x64xi32>
    %14 = arith.andi %11, %13 : vector<20x64xi1>
    %15 = arith.ori %9, %14 : vector<20x64xi1>
    %c10_i32 = arith.constant 10 : i32
    %16 = vector.broadcast %c10_i32 : i32 to vector<20x64xi32>
    %17 = arith.cmpi sge, %7, %16 : vector<20x64xi32>
    %c11_i32 = arith.constant 11 : i32
    %18 = vector.broadcast %c11_i32 : i32 to vector<20x64xi32>
    %19 = arith.cmpi slt, %7, %18 : vector<20x64xi32>
    %20 = arith.andi %17, %19 : vector<20x64xi1>
    %21 = arith.ori %15, %20 : vector<20x64xi1>
    %c0_i32_6 = arith.constant 0 : i32
    %22 = vector.broadcast %c0_i32_6 : i32 to vector<20x64xi32>
    %23 = arith.cmpi slt, %7, %22 : vector<20x64xi32>
    %c9_i32 = arith.constant 9 : i32
    %24 = vector.broadcast %c9_i32 : i32 to vector<20x64xi32>
    %25 = arith.cmpi sge, %7, %24 : vector<20x64xi32>
    %c10_i32_7 = arith.constant 10 : i32
    %26 = vector.broadcast %c10_i32_7 : i32 to vector<20x64xi32>
    %27 = arith.cmpi slt, %7, %26 : vector<20x64xi32>
    %28 = arith.andi %25, %27 : vector<20x64xi1>
    %29 = arith.ori %23, %28 : vector<20x64xi1>
    %c19_i32 = arith.constant 19 : i32
    %30 = vector.broadcast %c19_i32 : i32 to vector<20x64xi32>
    %31 = arith.cmpi sge, %7, %30 : vector<20x64xi32>
    %c20_i32 = arith.constant 20 : i32
    %32 = vector.broadcast %c20_i32 : i32 to vector<20x64xi32>
    %33 = arith.cmpi slt, %7, %32 : vector<20x64xi32>
    %34 = arith.andi %31, %33 : vector<20x64xi1>
    %35 = arith.ori %29, %34 : vector<20x64xi1>
    %36 = vector.extract_strided_slice %6 {offsets = [19, 0], sizes = [1, 64], strides = [1, 1]} : vector<20x64xf32> to vector<1x64xf32>
    %37 = vector.extract_strided_slice %6 {offsets = [0, 0], sizes = [19, 64], strides = [1, 1]} : vector<20x64xf32> to vector<19x64xf32>
    %38 = tpu.concatenate %36, %37 in 0 : vector<1x64xf32>, vector<19x64xf32> -> vector<20x64xf32>
    %cst_8 = arith.constant 0.000000e+00 : f32
    %39 = vector.broadcast %cst_8 : f32 to vector<20x64xf32>
    %40 = arith.select %21, %39, %38 : vector<20x64xi1>, vector<20x64xf32>
    %c0_9 = arith.constant 0 : index
    %c0_10 = arith.constant 0 : index
    %c0_11 = arith.constant 0 : index
    %41 = vector.load %arg4[%c0_9, %c0_10, %c0_11] : memref<6x64x128xbf16, #tpu.memory_space<vmem>>, vector<1x64x128xbf16>
    %42 = vector.shape_cast %41 : vector<1x64x128xbf16> to vector<64x128xbf16>
    %43 = arith.truncf %40 : vector<20x64xf32> to vector<20x64xbf16>
    %cst_12 = arith.constant dense<0.000000e+00> : vector<20x128xf32>
    %44 = tpu.matmul %43, %42, %cst_12 {dimension_numbers = #tpu.dot_dimension_numbers<[1], [0], [0], [1], [0, 0, 1, 1], [], []>} : vector<20x64xbf16>, vector<64x128xbf16>, vector<20x128xf32> -> vector<20x128xf32>
    %c1 = arith.constant 1 : index
    %c0_13 = arith.constant 0 : index
    %c0_14 = arith.constant 0 : index
    %45 = vector.load %arg4[%c1, %c0_13, %c0_14] : memref<6x64x128xbf16, #tpu.memory_space<vmem>>, vector<1x64x128xbf16>
    %46 = vector.shape_cast %45 : vector<1x64x128xbf16> to vector<64x128xbf16>
    %47 = arith.truncf %6 : vector<20x64xf32> to vector<20x64xbf16>
    %cst_15 = arith.constant dense<0.000000e+00> : vector<20x128xf32>
    %48 = tpu.matmul %47, %46, %cst_15 {dimension_numbers = #tpu.dot_dimension_numbers<[1], [0], [0], [1], [0, 0, 1, 1], [], []>} : vector<20x64xbf16>, vector<64x128xbf16>, vector<20x128xf32> -> vector<20x128xf32>
    %49 = arith.addf %44, %48 : vector<20x128xf32>
    %50 = vector.extract_strided_slice %6 {offsets = [1, 0], sizes = [19, 64], strides = [1, 1]} : vector<20x64xf32> to vector<19x64xf32>
    %51 = vector.extract_strided_slice %6 {offsets = [0, 0], sizes = [1, 64], strides = [1, 1]} : vector<20x64xf32> to vector<1x64xf32>
    %52 = tpu.concatenate %50, %51 in 0 : vector<19x64xf32>, vector<1x64xf32> -> vector<20x64xf32>
    %cst_16 = arith.constant 0.000000e+00 : f32
    %53 = vector.broadcast %cst_16 : f32 to vector<20x64xf32>
    %54 = arith.select %35, %53, %52 : vector<20x64xi1>, vector<20x64xf32>
    %c2 = arith.constant 2 : index
    %c0_17 = arith.constant 0 : index
    %c0_18 = arith.constant 0 : index
    %55 = vector.load %arg4[%c2, %c0_17, %c0_18] : memref<6x64x128xbf16, #tpu.memory_space<vmem>>, vector<1x64x128xbf16>
    %56 = vector.shape_cast %55 : vector<1x64x128xbf16> to vector<64x128xbf16>
    %57 = arith.truncf %54 : vector<20x64xf32> to vector<20x64xbf16>
    %cst_19 = arith.constant dense<0.000000e+00> : vector<20x128xf32>
    %58 = tpu.matmul %57, %56, %cst_19 {dimension_numbers = #tpu.dot_dimension_numbers<[1], [0], [0], [1], [0, 0, 1, 1], [], []>} : vector<20x64xbf16>, vector<64x128xbf16>, vector<20x128xf32> -> vector<20x128xf32>
    %59 = arith.addf %49, %58 : vector<20x128xf32>
    %c0_20 = arith.constant 0 : index
    %c0_21 = arith.constant 0 : index
    %c0_22 = arith.constant 0 : index
    %60 = vector.load %arg5[%c0_20, %c0_21, %c0_22] : memref<2x1x128xf32, #tpu.memory_space<vmem>>, vector<1x1x128xf32>
    %61 = vector.shape_cast %60 : vector<1x1x128xf32> to vector<1x128xf32>
    %62 = vector.broadcast %61 : vector<1x128xf32> to vector<20x128xf32>
    %63 = arith.addf %59, %62 : vector<20x128xf32>
    %64 = vector.extract_strided_slice %63 {offsets = [0, 0], sizes = [20, 64], strides = [1, 1]} : vector<20x128xf32> to vector<20x64xf32>
    %65 = vector.extract_strided_slice %63 {offsets = [0, 64], sizes = [20, 64], strides = [1, 1]} : vector<20x128xf32> to vector<20x64xf32>
    %cst_23 = arith.constant 0.000000e+00 : f32
    %66 = vector.broadcast %cst_23 : f32 to vector<20x64xf32>
    %67 = arith.subf %66, %65 : vector<20x64xf32>
    %68 = math.exp %67 : vector<20x64xf32>
    %cst_24 = arith.constant 1.000000e+00 : f32
    %69 = vector.broadcast %cst_24 : f32 to vector<20x64xf32>
    %70 = arith.addf %69, %68 : vector<20x64xf32>
    %71 = tpu.reciprocal %70 {approx = true} : vector<20x64xf32> -> vector<20x64xf32>
    %72 = arith.mulf %64, %71 : vector<20x64xf32>
    %73 = arith.addf %72, %6 : vector<20x64xf32>
    %cst_25 = arith.constant 0.707106769 : f32
    %74 = vector.broadcast %cst_25 : f32 to vector<20x64xf32>
    %75 = arith.mulf %73, %74 : vector<20x64xf32>
    %76 = vector.extract_strided_slice %75 {offsets = [19, 0], sizes = [1, 64], strides = [1, 1]} : vector<20x64xf32> to vector<1x64xf32>
    %77 = vector.extract_strided_slice %75 {offsets = [0, 0], sizes = [19, 64], strides = [1, 1]} : vector<20x64xf32> to vector<19x64xf32>
    %78 = tpu.concatenate %76, %77 in 0 : vector<1x64xf32>, vector<19x64xf32> -> vector<20x64xf32>
    %cst_26 = arith.constant 0.000000e+00 : f32
    %79 = vector.broadcast %cst_26 : f32 to vector<20x64xf32>
    %80 = arith.select %21, %79, %78 : vector<20x64xi1>, vector<20x64xf32>
    %c3 = arith.constant 3 : index
    %c0_27 = arith.constant 0 : index
    %c0_28 = arith.constant 0 : index
    %81 = vector.load %arg4[%c3, %c0_27, %c0_28] : memref<6x64x128xbf16, #tpu.memory_space<vmem>>, vector<1x64x128xbf16>
    %82 = vector.shape_cast %81 : vector<1x64x128xbf16> to vector<64x128xbf16>
    %83 = arith.truncf %80 : vector<20x64xf32> to vector<20x64xbf16>
    %cst_29 = arith.constant dense<0.000000e+00> : vector<20x128xf32>
    %84 = tpu.matmul %83, %82, %cst_29 {dimension_numbers = #tpu.dot_dimension_numbers<[1], [0], [0], [1], [0, 0, 1, 1], [], []>} : vector<20x64xbf16>, vector<64x128xbf16>, vector<20x128xf32> -> vector<20x128xf32>
    %c4 = arith.constant 4 : index
    %c0_30 = arith.constant 0 : index
    %c0_31 = arith.constant 0 : index
    %85 = vector.load %arg4[%c4, %c0_30, %c0_31] : memref<6x64x128xbf16, #tpu.memory_space<vmem>>, vector<1x64x128xbf16>
    %86 = vector.shape_cast %85 : vector<1x64x128xbf16> to vector<64x128xbf16>
    %87 = arith.truncf %75 : vector<20x64xf32> to vector<20x64xbf16>
    %cst_32 = arith.constant dense<0.000000e+00> : vector<20x128xf32>
    %88 = tpu.matmul %87, %86, %cst_32 {dimension_numbers = #tpu.dot_dimension_numbers<[1], [0], [0], [1], [0, 0, 1, 1], [], []>} : vector<20x64xbf16>, vector<64x128xbf16>, vector<20x128xf32> -> vector<20x128xf32>
    %89 = arith.addf %84, %88 : vector<20x128xf32>
    %90 = vector.extract_strided_slice %75 {offsets = [1, 0], sizes = [19, 64], strides = [1, 1]} : vector<20x64xf32> to vector<19x64xf32>
    %91 = vector.extract_strided_slice %75 {offsets = [0, 0], sizes = [1, 64], strides = [1, 1]} : vector<20x64xf32> to vector<1x64xf32>
    %92 = tpu.concatenate %90, %91 in 0 : vector<19x64xf32>, vector<1x64xf32> -> vector<20x64xf32>
    %cst_33 = arith.constant 0.000000e+00 : f32
    %93 = vector.broadcast %cst_33 : f32 to vector<20x64xf32>
    %94 = arith.select %35, %93, %92 : vector<20x64xi1>, vector<20x64xf32>
    %c5 = arith.constant 5 : index
    %c0_34 = arith.constant 0 : index
    %c0_35 = arith.constant 0 : index
    %95 = vector.load %arg4[%c5, %c0_34, %c0_35] : memref<6x64x128xbf16, #tpu.memory_space<vmem>>, vector<1x64x128xbf16>
    %96 = vector.shape_cast %95 : vector<1x64x128xbf16> to vector<64x128xbf16>
    %97 = arith.truncf %94 : vector<20x64xf32> to vector<20x64xbf16>
    %cst_36 = arith.constant dense<0.000000e+00> : vector<20x128xf32>
    %98 = tpu.matmul %97, %96, %cst_36 {dimension_numbers = #tpu.dot_dimension_numbers<[1], [0], [0], [1], [0, 0, 1, 1], [], []>} : vector<20x64xbf16>, vector<64x128xbf16>, vector<20x128xf32> -> vector<20x128xf32>
    %99 = arith.addf %89, %98 : vector<20x128xf32>
    %c1_37 = arith.constant 1 : index
    %c0_38 = arith.constant 0 : index
    %c0_39 = arith.constant 0 : index
    %100 = vector.load %arg5[%c1_37, %c0_38, %c0_39] : memref<2x1x128xf32, #tpu.memory_space<vmem>>, vector<1x1x128xf32>
    %101 = vector.shape_cast %100 : vector<1x1x128xf32> to vector<1x128xf32>
    %102 = vector.broadcast %101 : vector<1x128xf32> to vector<20x128xf32>
    %103 = arith.addf %99, %102 : vector<20x128xf32>
    %104 = vector.extract_strided_slice %103 {offsets = [0, 0], sizes = [20, 64], strides = [1, 1]} : vector<20x128xf32> to vector<20x64xf32>
    %105 = vector.extract_strided_slice %103 {offsets = [0, 64], sizes = [20, 64], strides = [1, 1]} : vector<20x128xf32> to vector<20x64xf32>
    %cst_40 = arith.constant 0.000000e+00 : f32
    %106 = vector.broadcast %cst_40 : f32 to vector<20x64xf32>
    %107 = arith.subf %106, %105 : vector<20x64xf32>
    %108 = math.exp %107 : vector<20x64xf32>
    %cst_41 = arith.constant 1.000000e+00 : f32
    %109 = vector.broadcast %cst_41 : f32 to vector<20x64xf32>
    %110 = arith.addf %109, %108 : vector<20x64xf32>
    %111 = tpu.reciprocal %110 {approx = true} : vector<20x64xf32> -> vector<20x64xf32>
    %112 = arith.mulf %104, %111 : vector<20x64xf32>
    %113 = arith.addf %112, %75 : vector<20x64xf32>
    %cst_42 = arith.constant 0.707106769 : f32
    %114 = vector.broadcast %cst_42 : f32 to vector<20x64xf32>
    %115 = arith.mulf %113, %114 : vector<20x64xf32>
    %c0_43 = arith.constant 0 : index
    %c0_44 = arith.constant 0 : index
    %116 = vector.load %arg6[%c0_43, %c0_44] : memref<64x32xbf16, #tpu.memory_space<vmem>>, vector<64x32xbf16>
    %117 = arith.truncf %115 : vector<20x64xf32> to vector<20x64xbf16>
    %cst_45 = arith.constant dense<0.000000e+00> : vector<20x32xf32>
    %118 = tpu.matmul %117, %116, %cst_45 {dimension_numbers = #tpu.dot_dimension_numbers<[1], [0], [0], [1], [0, 0, 1, 1], [], []>} : vector<20x64xbf16>, vector<64x32xbf16>, vector<20x32xf32> -> vector<20x32xf32>
    %c0_46 = arith.constant 0 : index
    %c0_47 = arith.constant 0 : index
    %119 = vector.load %arg7[%c0_46, %c0_47] : memref<1x32xf32, #tpu.memory_space<vmem>>, vector<1x32xf32>
    %120 = vector.broadcast %119 : vector<1x32xf32> to vector<20x32xf32>
    %121 = arith.addf %118, %120 : vector<20x32xf32>
    %122 = arith.addf %121, %0 : vector<20x32xf32>
    %cst_48 = arith.constant 0.707106769 : f32
    %123 = vector.broadcast %cst_48 : f32 to vector<20x32xf32>
    %124 = arith.mulf %122, %123 : vector<20x32xf32>
    %125 = arith.truncf %121 : vector<20x32xf32> to vector<20x32xbf16>
    %126 = arith.truncf %124 : vector<20x32xf32> to vector<20x32xbf16>
    %c0_49 = arith.constant 0 : index
    %c0_50 = arith.constant 0 : index
    %127 = vector.load %arg1[%c0_49, %c0_50] : memref<16x32xf32, #tpu.memory_space<vmem>>, vector<16x32xf32>
    %c0_51 = arith.constant 0 : index
    %c0_52 = arith.constant 0 : index
    %128 = vector.load %arg8[%c0_51, %c0_52] : memref<32x64xbf16, #tpu.memory_space<vmem>>, vector<32x64xbf16>
    %129 = arith.truncf %127 : vector<16x32xf32> to vector<16x32xbf16>
    %cst_53 = arith.constant dense<0.000000e+00> : vector<16x64xf32>
    %130 = tpu.matmul %129, %128, %cst_53 {dimension_numbers = #tpu.dot_dimension_numbers<[1], [0], [0], [1], [0, 0, 1, 1], [], []>} : vector<16x32xbf16>, vector<32x64xbf16>, vector<16x64xf32> -> vector<16x64xf32>
    %c0_54 = arith.constant 0 : index
    %c0_55 = arith.constant 0 : index
    %131 = vector.load %arg9[%c0_54, %c0_55] : memref<1x64xf32, #tpu.memory_space<vmem>>, vector<1x64xf32>
    %132 = vector.broadcast %131 : vector<1x64xf32> to vector<16x64xf32>
    %133 = arith.addf %130, %132 : vector<16x64xf32>
    %134 = tpu.iota {dimensions = array<i32: 0>} : vector<16x64xi32>
    %c0_i32_56 = arith.constant 0 : i32
    %135 = vector.broadcast %c0_i32_56 : i32 to vector<16x64xi32>
    %136 = arith.cmpi slt, %134, %135 : vector<16x64xi32>
    %c0_i32_57 = arith.constant 0 : i32
    %137 = vector.broadcast %c0_i32_57 : i32 to vector<16x64xi32>
    %138 = arith.cmpi sge, %134, %137 : vector<16x64xi32>
    %c2_i32 = arith.constant 2 : i32
    %139 = vector.broadcast %c2_i32 : i32 to vector<16x64xi32>
    %140 = arith.cmpi slt, %134, %139 : vector<16x64xi32>
    %141 = arith.andi %138, %140 : vector<16x64xi1>
    %142 = arith.ori %136, %141 : vector<16x64xi1>
    %c8_i32 = arith.constant 8 : i32
    %143 = vector.broadcast %c8_i32 : i32 to vector<16x64xi32>
    %144 = arith.cmpi sge, %134, %143 : vector<16x64xi32>
    %c10_i32_58 = arith.constant 10 : i32
    %145 = vector.broadcast %c10_i32_58 : i32 to vector<16x64xi32>
    %146 = arith.cmpi slt, %134, %145 : vector<16x64xi32>
    %147 = arith.andi %144, %146 : vector<16x64xi1>
    %148 = arith.ori %142, %147 : vector<16x64xi1>
    %c0_i32_59 = arith.constant 0 : i32
    %149 = vector.broadcast %c0_i32_59 : i32 to vector<16x64xi32>
    %150 = arith.cmpi slt, %134, %149 : vector<16x64xi32>
    %c0_i32_60 = arith.constant 0 : i32
    %151 = vector.broadcast %c0_i32_60 : i32 to vector<16x64xi32>
    %152 = arith.cmpi sge, %134, %151 : vector<16x64xi32>
    %c1_i32_61 = arith.constant 1 : i32
    %153 = vector.broadcast %c1_i32_61 : i32 to vector<16x64xi32>
    %154 = arith.cmpi slt, %134, %153 : vector<16x64xi32>
    %155 = arith.andi %152, %154 : vector<16x64xi1>
    %156 = arith.ori %150, %155 : vector<16x64xi1>
    %c8_i32_62 = arith.constant 8 : i32
    %157 = vector.broadcast %c8_i32_62 : i32 to vector<16x64xi32>
    %158 = arith.cmpi sge, %134, %157 : vector<16x64xi32>
    %c9_i32_63 = arith.constant 9 : i32
    %159 = vector.broadcast %c9_i32_63 : i32 to vector<16x64xi32>
    %160 = arith.cmpi slt, %134, %159 : vector<16x64xi32>
    %161 = arith.andi %158, %160 : vector<16x64xi1>
    %162 = arith.ori %156, %161 : vector<16x64xi1>
    %163 = tpu.iota {dimensions = array<i32: 0>} : vector<16x20xi32>
    %164 = tpu.iota {dimensions = array<i32: 1>} : vector<16x20xi32>
    %c0_i32_64 = arith.constant 0 : i32
    %165 = vector.broadcast %c0_i32_64 : i32 to vector<16x20xi32>
    %166 = arith.cmpi slt, %163, %165 : vector<16x20xi32>
    %c0_i32_65 = arith.constant 0 : i32
    %167 = vector.broadcast %c0_i32_65 : i32 to vector<16x20xi32>
    %168 = arith.cmpi sge, %163, %167 : vector<16x20xi32>
    %c8_i32_66 = arith.constant 8 : i32
    %169 = vector.broadcast %c8_i32_66 : i32 to vector<16x20xi32>
    %170 = arith.cmpi slt, %163, %169 : vector<16x20xi32>
    %171 = arith.andi %168, %170 : vector<16x20xi1>
    %c0_i32_67 = arith.constant 0 : i32
    %172 = vector.broadcast %c0_i32_67 : i32 to vector<16x20xi32>
    %173 = arith.cmpi sge, %164, %172 : vector<16x20xi32>
    %174 = arith.andi %171, %173 : vector<16x20xi1>
    %c10_i32_68 = arith.constant 10 : i32
    %175 = vector.broadcast %c10_i32_68 : i32 to vector<16x20xi32>
    %176 = arith.cmpi slt, %164, %175 : vector<16x20xi32>
    %177 = arith.andi %174, %176 : vector<16x20xi1>
    %178 = arith.ori %166, %177 : vector<16x20xi1>
    %c8_i32_69 = arith.constant 8 : i32
    %179 = vector.broadcast %c8_i32_69 : i32 to vector<16x20xi32>
    %180 = arith.cmpi sge, %163, %179 : vector<16x20xi32>
    %c16_i32 = arith.constant 16 : i32
    %181 = vector.broadcast %c16_i32 : i32 to vector<16x20xi32>
    %182 = arith.cmpi slt, %163, %181 : vector<16x20xi32>
    %183 = arith.andi %180, %182 : vector<16x20xi1>
    %c10_i32_70 = arith.constant 10 : i32
    %184 = vector.broadcast %c10_i32_70 : i32 to vector<16x20xi32>
    %185 = arith.cmpi sge, %164, %184 : vector<16x20xi32>
    %186 = arith.andi %183, %185 : vector<16x20xi1>
    %c20_i32_71 = arith.constant 20 : i32
    %187 = vector.broadcast %c20_i32_71 : i32 to vector<16x20xi32>
    %188 = arith.cmpi slt, %164, %187 : vector<16x20xi32>
    %189 = arith.andi %186, %188 : vector<16x20xi1>
    %190 = arith.ori %178, %189 : vector<16x20xi1>
    %191 = vector.extract_strided_slice %133 {offsets = [14, 0], sizes = [2, 64], strides = [1, 1]} : vector<16x64xf32> to vector<2x64xf32>
    %192 = vector.extract_strided_slice %133 {offsets = [0, 0], sizes = [14, 64], strides = [1, 1]} : vector<16x64xf32> to vector<14x64xf32>
    %193 = tpu.concatenate %191, %192 in 0 : vector<2x64xf32>, vector<14x64xf32> -> vector<16x64xf32>
    %cst_72 = arith.constant 1.000000e+00 : f32
    %194 = vector.broadcast %cst_72 : f32 to vector<16x64xf32>
    %195 = arith.select %148, %194, %193 : vector<16x64xi1>, vector<16x64xf32>
    %c0_73 = arith.constant 0 : index
    %c0_74 = arith.constant 0 : index
    %c0_75 = arith.constant 0 : index
    %196 = vector.load %arg10[%c0_73, %c0_74, %c0_75] : memref<6x64x128xbf16, #tpu.memory_space<vmem>>, vector<1x64x128xbf16>
    %197 = vector.shape_cast %196 : vector<1x64x128xbf16> to vector<64x128xbf16>
    %198 = arith.truncf %195 : vector<16x64xf32> to vector<16x64xbf16>
    %cst_76 = arith.constant dense<0.000000e+00> : vector<16x128xf32>
    %199 = tpu.matmul %198, %197, %cst_76 {dimension_numbers = #tpu.dot_dimension_numbers<[1], [0], [0], [1], [0, 0, 1, 1], [], []>} : vector<16x64xbf16>, vector<64x128xbf16>, vector<16x128xf32> -> vector<16x128xf32>
    %200 = vector.extract_strided_slice %133 {offsets = [15, 0], sizes = [1, 64], strides = [1, 1]} : vector<16x64xf32> to vector<1x64xf32>
    %201 = vector.extract_strided_slice %133 {offsets = [0, 0], sizes = [15, 64], strides = [1, 1]} : vector<16x64xf32> to vector<15x64xf32>
    %202 = tpu.concatenate %200, %201 in 0 : vector<1x64xf32>, vector<15x64xf32> -> vector<16x64xf32>
    %cst_77 = arith.constant 1.000000e+00 : f32
    %203 = vector.broadcast %cst_77 : f32 to vector<16x64xf32>
    %204 = arith.select %162, %203, %202 : vector<16x64xi1>, vector<16x64xf32>
    %c1_78 = arith.constant 1 : index
    %c0_79 = arith.constant 0 : index
    %c0_80 = arith.constant 0 : index
    %205 = vector.load %arg10[%c1_78, %c0_79, %c0_80] : memref<6x64x128xbf16, #tpu.memory_space<vmem>>, vector<1x64x128xbf16>
    %206 = vector.shape_cast %205 : vector<1x64x128xbf16> to vector<64x128xbf16>
    %207 = arith.truncf %204 : vector<16x64xf32> to vector<16x64xbf16>
    %cst_81 = arith.constant dense<0.000000e+00> : vector<16x128xf32>
    %208 = tpu.matmul %207, %206, %cst_81 {dimension_numbers = #tpu.dot_dimension_numbers<[1], [0], [0], [1], [0, 0, 1, 1], [], []>} : vector<16x64xbf16>, vector<64x128xbf16>, vector<16x128xf32> -> vector<16x128xf32>
    %209 = arith.addf %199, %208 : vector<16x128xf32>
    %c2_82 = arith.constant 2 : index
    %c0_83 = arith.constant 0 : index
    %c0_84 = arith.constant 0 : index
    %210 = vector.load %arg10[%c2_82, %c0_83, %c0_84] : memref<6x64x128xbf16, #tpu.memory_space<vmem>>, vector<1x64x128xbf16>
    %211 = vector.shape_cast %210 : vector<1x64x128xbf16> to vector<64x128xbf16>
    %212 = arith.truncf %133 : vector<16x64xf32> to vector<16x64xbf16>
    %cst_85 = arith.constant dense<0.000000e+00> : vector<16x128xf32>
    %213 = tpu.matmul %212, %211, %cst_85 {dimension_numbers = #tpu.dot_dimension_numbers<[1], [0], [0], [1], [0, 0, 1, 1], [], []>} : vector<16x64xbf16>, vector<64x128xbf16>, vector<16x128xf32> -> vector<16x128xf32>
    %214 = arith.addf %209, %213 : vector<16x128xf32>
    %c0_86 = arith.constant 0 : index
    %c0_87 = arith.constant 0 : index
    %c0_88 = arith.constant 0 : index
    %215 = vector.load %arg11[%c0_86, %c0_87, %c0_88] : memref<2x1x128xf32, #tpu.memory_space<vmem>>, vector<1x1x128xf32>
    %216 = vector.shape_cast %215 : vector<1x1x128xf32> to vector<1x128xf32>
    %217 = vector.broadcast %216 : vector<1x128xf32> to vector<16x128xf32>
    %218 = arith.addf %214, %217 : vector<16x128xf32>
    %219 = vector.extract_strided_slice %218 {offsets = [0, 0], sizes = [16, 64], strides = [1, 1]} : vector<16x128xf32> to vector<16x64xf32>
    %220 = vector.extract_strided_slice %218 {offsets = [0, 64], sizes = [16, 64], strides = [1, 1]} : vector<16x128xf32> to vector<16x64xf32>
    %cst_89 = arith.constant 0.000000e+00 : f32
    %221 = vector.broadcast %cst_89 : f32 to vector<16x64xf32>
    %222 = arith.subf %221, %220 : vector<16x64xf32>
    %223 = math.exp %222 : vector<16x64xf32>
    %cst_90 = arith.constant 1.000000e+00 : f32
    %224 = vector.broadcast %cst_90 : f32 to vector<16x64xf32>
    %225 = arith.addf %224, %223 : vector<16x64xf32>
    %226 = tpu.reciprocal %225 {approx = true} : vector<16x64xf32> -> vector<16x64xf32>
    %227 = arith.mulf %219, %226 : vector<16x64xf32>
    %c0_91 = arith.constant 0 : index
    %c0_92 = arith.constant 0 : index
    %228 = vector.load %arg12[%c0_91, %c0_92] : memref<64x32xbf16, #tpu.memory_space<vmem>>, vector<64x32xbf16>
    %229 = arith.truncf %227 : vector<16x64xf32> to vector<16x64xbf16>
    %cst_93 = arith.constant dense<0.000000e+00> : vector<16x32xf32>
    %230 = tpu.matmul %229, %228, %cst_93 {dimension_numbers = #tpu.dot_dimension_numbers<[1], [0], [0], [1], [0, 0, 1, 1], [], []>} : vector<16x64xbf16>, vector<64x32xbf16>, vector<16x32xf32> -> vector<16x32xf32>
    %c0_94 = arith.constant 0 : index
    %c0_95 = arith.constant 0 : index
    %231 = vector.load %arg13[%c0_94, %c0_95] : memref<1x32xf32, #tpu.memory_space<vmem>>, vector<1x32xf32>
    %232 = vector.broadcast %231 : vector<1x32xf32> to vector<16x32xf32>
    %233 = arith.addf %230, %232 : vector<16x32xf32>
    %234 = arith.addf %233, %127 : vector<16x32xf32>
    %cst_96 = arith.constant 0.707106769 : f32
    %235 = vector.broadcast %cst_96 : f32 to vector<16x32xf32>
    %236 = arith.mulf %234, %235 : vector<16x32xf32>
    %237 = arith.truncf %236 : vector<16x32xf32> to vector<16x32xbf16>
    %cst_97 = arith.constant dense<0.000000e+00> : vector<16x20xf32>
    %238 = tpu.matmul %237, %125, %cst_97 {dimension_numbers = #tpu.dot_dimension_numbers<[1], [1], [0], [0], [0, 0, 1, 0], [], []>} : vector<16x32xbf16>, vector<20x32xbf16>, vector<16x20xf32> -> vector<16x20xf32>
    %cst_98 = arith.constant -1.000000e+30 : f32
    %239 = vector.broadcast %cst_98 : f32 to vector<16x20xf32>
    %240 = arith.select %190, %238, %239 : vector<16x20xi1>, vector<16x20xf32>
    %cst_99 = arith.constant dense<0xFF800000> : vector<16xf32>
    %241 = vector.multi_reduction <maximumf>, %240, %cst_99 [1] : vector<16x20xf32> to vector<16xf32>
    %242 = vector.shape_cast %241 : vector<16xf32> to vector<16x1xf32>
    %243 = vector.broadcast %242 : vector<16x1xf32> to vector<16x20xf32>
    %244 = arith.subf %240, %243 : vector<16x20xf32>
    %245 = math.exp %244 : vector<16x20xf32>
    %cst_100 = arith.constant dense<0.000000e+00> : vector<16xf32>
    %246 = vector.multi_reduction <add>, %245, %cst_100 [1] : vector<16x20xf32> to vector<16xf32>
    %247 = vector.shape_cast %246 : vector<16xf32> to vector<16x1xf32>
    %248 = tpu.reciprocal %247 : vector<16x1xf32> -> vector<16x1xf32>
    %249 = vector.broadcast %248 : vector<16x1xf32> to vector<16x20xf32>
    %250 = arith.mulf %245, %249 : vector<16x20xf32>
    %251 = arith.truncf %250 : vector<16x20xf32> to vector<16x20xbf16>
    %cst_101 = arith.constant dense<0.000000e+00> : vector<16x32xf32>
    %252 = tpu.matmul %251, %126, %cst_101 {dimension_numbers = #tpu.dot_dimension_numbers<[1], [0], [0], [1], [0, 0, 1, 1], [], []>} : vector<16x20xbf16>, vector<20x32xbf16>, vector<16x32xf32> -> vector<16x32xf32>
    %c0_102 = arith.constant 0 : index
    %c0_103 = arith.constant 0 : index
    %253 = vector.load %arg14[%c0_102, %c0_103] : memref<32x64xbf16, #tpu.memory_space<vmem>>, vector<32x64xbf16>
    %254 = arith.truncf %252 : vector<16x32xf32> to vector<16x32xbf16>
    %cst_104 = arith.constant dense<0.000000e+00> : vector<16x64xf32>
    %255 = tpu.matmul %254, %253, %cst_104 {dimension_numbers = #tpu.dot_dimension_numbers<[1], [0], [0], [1], [0, 0, 1, 1], [], []>} : vector<16x32xbf16>, vector<32x64xbf16>, vector<16x64xf32> -> vector<16x64xf32>
    %c0_105 = arith.constant 0 : index
    %c0_106 = arith.constant 0 : index
    %256 = vector.load %arg15[%c0_105, %c0_106] : memref<1x64xf32, #tpu.memory_space<vmem>>, vector<1x64xf32>
    %257 = vector.broadcast %256 : vector<1x64xf32> to vector<16x64xf32>
    %258 = arith.addf %255, %257 : vector<16x64xf32>
    %259 = arith.addf %227, %258 : vector<16x64xf32>
    %cst_107 = arith.constant 0.707106769 : f32
    %260 = vector.broadcast %cst_107 : f32 to vector<16x64xf32>
    %261 = arith.mulf %259, %260 : vector<16x64xf32>
    %262 = arith.addf %261, %133 : vector<16x64xf32>
    %cst_108 = arith.constant 0.707106769 : f32
    %263 = vector.broadcast %cst_108 : f32 to vector<16x64xf32>
    %264 = arith.mulf %262, %263 : vector<16x64xf32>
    %265 = vector.extract_strided_slice %264 {offsets = [14, 0], sizes = [2, 64], strides = [1, 1]} : vector<16x64xf32> to vector<2x64xf32>
    %266 = vector.extract_strided_slice %264 {offsets = [0, 0], sizes = [14, 64], strides = [1, 1]} : vector<16x64xf32> to vector<14x64xf32>
    %267 = tpu.concatenate %265, %266 in 0 : vector<2x64xf32>, vector<14x64xf32> -> vector<16x64xf32>
    %cst_109 = arith.constant 1.000000e+00 : f32
    %268 = vector.broadcast %cst_109 : f32 to vector<16x64xf32>
    %269 = arith.select %148, %268, %267 : vector<16x64xi1>, vector<16x64xf32>
    %c3_110 = arith.constant 3 : index
    %c0_111 = arith.constant 0 : index
    %c0_112 = arith.constant 0 : index
    %270 = vector.load %arg10[%c3_110, %c0_111, %c0_112] : memref<6x64x128xbf16, #tpu.memory_space<vmem>>, vector<1x64x128xbf16>
    %271 = vector.shape_cast %270 : vector<1x64x128xbf16> to vector<64x128xbf16>
    %272 = arith.truncf %269 : vector<16x64xf32> to vector<16x64xbf16>
    %cst_113 = arith.constant dense<0.000000e+00> : vector<16x128xf32>
    %273 = tpu.matmul %272, %271, %cst_113 {dimension_numbers = #tpu.dot_dimension_numbers<[1], [0], [0], [1], [0, 0, 1, 1], [], []>} : vector<16x64xbf16>, vector<64x128xbf16>, vector<16x128xf32> -> vector<16x128xf32>
    %274 = vector.extract_strided_slice %264 {offsets = [15, 0], sizes = [1, 64], strides = [1, 1]} : vector<16x64xf32> to vector<1x64xf32>
    %275 = vector.extract_strided_slice %264 {offsets = [0, 0], sizes = [15, 64], strides = [1, 1]} : vector<16x64xf32> to vector<15x64xf32>
    %276 = tpu.concatenate %274, %275 in 0 : vector<1x64xf32>, vector<15x64xf32> -> vector<16x64xf32>
    %cst_114 = arith.constant 1.000000e+00 : f32
    %277 = vector.broadcast %cst_114 : f32 to vector<16x64xf32>
    %278 = arith.select %162, %277, %276 : vector<16x64xi1>, vector<16x64xf32>
    %c4_115 = arith.constant 4 : index
    %c0_116 = arith.constant 0 : index
    %c0_117 = arith.constant 0 : index
    %279 = vector.load %arg10[%c4_115, %c0_116, %c0_117] : memref<6x64x128xbf16, #tpu.memory_space<vmem>>, vector<1x64x128xbf16>
    %280 = vector.shape_cast %279 : vector<1x64x128xbf16> to vector<64x128xbf16>
    %281 = arith.truncf %278 : vector<16x64xf32> to vector<16x64xbf16>
    %cst_118 = arith.constant dense<0.000000e+00> : vector<16x128xf32>
    %282 = tpu.matmul %281, %280, %cst_118 {dimension_numbers = #tpu.dot_dimension_numbers<[1], [0], [0], [1], [0, 0, 1, 1], [], []>} : vector<16x64xbf16>, vector<64x128xbf16>, vector<16x128xf32> -> vector<16x128xf32>
    %283 = arith.addf %273, %282 : vector<16x128xf32>
    %c5_119 = arith.constant 5 : index
    %c0_120 = arith.constant 0 : index
    %c0_121 = arith.constant 0 : index
    %284 = vector.load %arg10[%c5_119, %c0_120, %c0_121] : memref<6x64x128xbf16, #tpu.memory_space<vmem>>, vector<1x64x128xbf16>
    %285 = vector.shape_cast %284 : vector<1x64x128xbf16> to vector<64x128xbf16>
    %286 = arith.truncf %264 : vector<16x64xf32> to vector<16x64xbf16>
    %cst_122 = arith.constant dense<0.000000e+00> : vector<16x128xf32>
    %287 = tpu.matmul %286, %285, %cst_122 {dimension_numbers = #tpu.dot_dimension_numbers<[1], [0], [0], [1], [0, 0, 1, 1], [], []>} : vector<16x64xbf16>, vector<64x128xbf16>, vector<16x128xf32> -> vector<16x128xf32>
    %288 = arith.addf %283, %287 : vector<16x128xf32>
    %c1_123 = arith.constant 1 : index
    %c0_124 = arith.constant 0 : index
    %c0_125 = arith.constant 0 : index
    %289 = vector.load %arg11[%c1_123, %c0_124, %c0_125] : memref<2x1x128xf32, #tpu.memory_space<vmem>>, vector<1x1x128xf32>
    %290 = vector.shape_cast %289 : vector<1x1x128xf32> to vector<1x128xf32>
    %291 = vector.broadcast %290 : vector<1x128xf32> to vector<16x128xf32>
    %292 = arith.addf %288, %291 : vector<16x128xf32>
    %293 = vector.extract_strided_slice %292 {offsets = [0, 0], sizes = [16, 64], strides = [1, 1]} : vector<16x128xf32> to vector<16x64xf32>
    %294 = vector.extract_strided_slice %292 {offsets = [0, 64], sizes = [16, 64], strides = [1, 1]} : vector<16x128xf32> to vector<16x64xf32>
    %cst_126 = arith.constant 0.000000e+00 : f32
    %295 = vector.broadcast %cst_126 : f32 to vector<16x64xf32>
    %296 = arith.subf %295, %294 : vector<16x64xf32>
    %297 = math.exp %296 : vector<16x64xf32>
    %cst_127 = arith.constant 1.000000e+00 : f32
    %298 = vector.broadcast %cst_127 : f32 to vector<16x64xf32>
    %299 = arith.addf %298, %297 : vector<16x64xf32>
    %300 = tpu.reciprocal %299 {approx = true} : vector<16x64xf32> -> vector<16x64xf32>
    %301 = arith.mulf %293, %300 : vector<16x64xf32>
    %c0_128 = arith.constant 0 : index
    %c0_129 = arith.constant 0 : index
    %302 = vector.load %arg12[%c0_128, %c0_129] : memref<64x32xbf16, #tpu.memory_space<vmem>>, vector<64x32xbf16>
    %303 = arith.truncf %301 : vector<16x64xf32> to vector<16x64xbf16>
    %cst_130 = arith.constant dense<0.000000e+00> : vector<16x32xf32>
    %304 = tpu.matmul %303, %302, %cst_130 {dimension_numbers = #tpu.dot_dimension_numbers<[1], [0], [0], [1], [0, 0, 1, 1], [], []>} : vector<16x64xbf16>, vector<64x32xbf16>, vector<16x32xf32> -> vector<16x32xf32>
    %c0_131 = arith.constant 0 : index
    %c0_132 = arith.constant 0 : index
    %305 = vector.load %arg13[%c0_131, %c0_132] : memref<1x32xf32, #tpu.memory_space<vmem>>, vector<1x32xf32>
    %306 = vector.broadcast %305 : vector<1x32xf32> to vector<16x32xf32>
    %307 = arith.addf %304, %306 : vector<16x32xf32>
    %308 = arith.addf %307, %127 : vector<16x32xf32>
    %cst_133 = arith.constant 0.707106769 : f32
    %309 = vector.broadcast %cst_133 : f32 to vector<16x32xf32>
    %310 = arith.mulf %308, %309 : vector<16x32xf32>
    %311 = arith.truncf %310 : vector<16x32xf32> to vector<16x32xbf16>
    %cst_134 = arith.constant dense<0.000000e+00> : vector<16x20xf32>
    %312 = tpu.matmul %311, %125, %cst_134 {dimension_numbers = #tpu.dot_dimension_numbers<[1], [1], [0], [0], [0, 0, 1, 0], [], []>} : vector<16x32xbf16>, vector<20x32xbf16>, vector<16x20xf32> -> vector<16x20xf32>
    %cst_135 = arith.constant -1.000000e+30 : f32
    %313 = vector.broadcast %cst_135 : f32 to vector<16x20xf32>
    %314 = arith.select %190, %312, %313 : vector<16x20xi1>, vector<16x20xf32>
    %cst_136 = arith.constant dense<0xFF800000> : vector<16xf32>
    %315 = vector.multi_reduction <maximumf>, %314, %cst_136 [1] : vector<16x20xf32> to vector<16xf32>
    %316 = vector.shape_cast %315 : vector<16xf32> to vector<16x1xf32>
    %317 = vector.broadcast %316 : vector<16x1xf32> to vector<16x20xf32>
    %318 = arith.subf %314, %317 : vector<16x20xf32>
    %319 = math.exp %318 : vector<16x20xf32>
    %cst_137 = arith.constant dense<0.000000e+00> : vector<16xf32>
    %320 = vector.multi_reduction <add>, %319, %cst_137 [1] : vector<16x20xf32> to vector<16xf32>
    %321 = vector.shape_cast %320 : vector<16xf32> to vector<16x1xf32>
    %322 = tpu.reciprocal %321 : vector<16x1xf32> -> vector<16x1xf32>
    %323 = vector.broadcast %322 : vector<16x1xf32> to vector<16x20xf32>
    %324 = arith.mulf %319, %323 : vector<16x20xf32>
    %325 = vector.extract_strided_slice %324 {offsets = [0, 0], sizes = [8, 10], strides = [1, 1]} : vector<16x20xf32> to vector<8x10xf32>
    %c0_138 = arith.constant 0 : index
    %c0_139 = arith.constant 0 : index
    %c0_140 = arith.constant 0 : index
    %326 = vector.load %arg21[%c0_138, %c0_139, %c0_140] : memref<2x8x10xf32, #tpu.memory_space<vmem>>, vector<1x8x10xf32>
    %327 = vector.shape_cast %326 : vector<1x8x10xf32> to vector<8x10xf32>
    %328 = vector.shape_cast %325 : vector<8x10xf32> to vector<1x8x10xf32>
    tpu.vector_store %arg21[%c0_138, %c0_139, %c0_140], %328 {strides = array<i32>} : memref<2x8x10xf32, #tpu.memory_space<vmem>>, vector<1x8x10xf32>,
    %329 = vector.extract_strided_slice %324 {offsets = [8, 10], sizes = [8, 10], strides = [1, 1]} : vector<16x20xf32> to vector<8x10xf32>
    %c1_141 = arith.constant 1 : index
    %c0_142 = arith.constant 0 : index
    %c0_143 = arith.constant 0 : index
    %330 = vector.load %arg21[%c1_141, %c0_142, %c0_143] : memref<2x8x10xf32, #tpu.memory_space<vmem>>, vector<1x8x10xf32>
    %331 = vector.shape_cast %330 : vector<1x8x10xf32> to vector<8x10xf32>
    %332 = vector.shape_cast %329 : vector<8x10xf32> to vector<1x8x10xf32>
    tpu.vector_store %arg21[%c1_141, %c0_142, %c0_143], %332 {strides = array<i32>} : memref<2x8x10xf32, #tpu.memory_space<vmem>>, vector<1x8x10xf32>,
    %333 = arith.truncf %324 : vector<16x20xf32> to vector<16x20xbf16>
    %cst_144 = arith.constant dense<0.000000e+00> : vector<16x32xf32>
    %334 = tpu.matmul %333, %126, %cst_144 {dimension_numbers = #tpu.dot_dimension_numbers<[1], [0], [0], [1], [0, 0, 1, 1], [], []>} : vector<16x20xbf16>, vector<20x32xbf16>, vector<16x32xf32> -> vector<16x32xf32>
    %c0_145 = arith.constant 0 : index
    %c0_146 = arith.constant 0 : index
    %335 = vector.load %arg14[%c0_145, %c0_146] : memref<32x64xbf16, #tpu.memory_space<vmem>>, vector<32x64xbf16>
    %336 = arith.truncf %334 : vector<16x32xf32> to vector<16x32xbf16>
    %cst_147 = arith.constant dense<0.000000e+00> : vector<16x64xf32>
    %337 = tpu.matmul %336, %335, %cst_147 {dimension_numbers = #tpu.dot_dimension_numbers<[1], [0], [0], [1], [0, 0, 1, 1], [], []>} : vector<16x32xbf16>, vector<32x64xbf16>, vector<16x64xf32> -> vector<16x64xf32>
    %c0_148 = arith.constant 0 : index
    %c0_149 = arith.constant 0 : index
    %338 = vector.load %arg15[%c0_148, %c0_149] : memref<1x64xf32, #tpu.memory_space<vmem>>, vector<1x64xf32>
    %339 = vector.broadcast %338 : vector<1x64xf32> to vector<16x64xf32>
    %340 = arith.addf %337, %339 : vector<16x64xf32>
    %341 = arith.addf %301, %340 : vector<16x64xf32>
    %cst_150 = arith.constant 0.707106769 : f32
    %342 = vector.broadcast %cst_150 : f32 to vector<16x64xf32>
    %343 = arith.mulf %341, %342 : vector<16x64xf32>
    %344 = arith.addf %343, %264 : vector<16x64xf32>
    %cst_151 = arith.constant 0.707106769 : f32
    %345 = vector.broadcast %cst_151 : f32 to vector<16x64xf32>
    %346 = arith.mulf %344, %345 : vector<16x64xf32>
    %c0_152 = arith.constant 0 : index
    %c0_153 = arith.constant 0 : index
    %347 = vector.load %arg16[%c0_152, %c0_153] : memref<64x32xbf16, #tpu.memory_space<vmem>>, vector<64x32xbf16>
    %348 = arith.truncf %346 : vector<16x64xf32> to vector<16x64xbf16>
    %cst_154 = arith.constant dense<0.000000e+00> : vector<16x32xf32>
    %349 = tpu.matmul %348, %347, %cst_154 {dimension_numbers = #tpu.dot_dimension_numbers<[1], [0], [0], [1], [0, 0, 1, 1], [], []>} : vector<16x64xbf16>, vector<64x32xbf16>, vector<16x32xf32> -> vector<16x32xf32>
    %c0_155 = arith.constant 0 : index
    %c0_156 = arith.constant 0 : index
    %350 = vector.load %arg17[%c0_155, %c0_156] : memref<1x32xf32, #tpu.memory_space<vmem>>, vector<1x32xf32>
    %351 = vector.broadcast %350 : vector<1x32xf32> to vector<16x32xf32>
    %352 = arith.addf %349, %351 : vector<16x32xf32>
    %c0_157 = arith.constant 0 : index
    %c0_158 = arith.constant 0 : index
    %353 = vector.load %arg18[%c0_157, %c0_158] : memref<32x128xbf16, #tpu.memory_space<vmem>>, vector<32x128xbf16>
    %354 = arith.truncf %352 : vector<16x32xf32> to vector<16x32xbf16>
    %cst_159 = arith.constant dense<0.000000e+00> : vector<16x128xf32>
    %355 = tpu.matmul %354, %353, %cst_159 {dimension_numbers = #tpu.dot_dimension_numbers<[1], [0], [0], [1], [0, 0, 1, 1], [], []>} : vector<16x32xbf16>, vector<32x128xbf16>, vector<16x128xf32> -> vector<16x128xf32>
    %c0_160 = arith.constant 0 : index
    %c0_161 = arith.constant 0 : index
    %356 = vector.load %arg19[%c0_160, %c0_161] : memref<1x128xf32, #tpu.memory_space<vmem>>, vector<1x128xf32>
    %357 = vector.broadcast %356 : vector<1x128xf32> to vector<16x128xf32>
    %358 = arith.addf %355, %357 : vector<16x128xf32>
    %c0_162 = arith.constant 0 : index
    %c0_163 = arith.constant 0 : index
    %359 = vector.load %arg20[%c0_162, %c0_163] : memref<16x128xf32, #tpu.memory_space<vmem>>, vector<16x128xf32>
    tpu.vector_store %arg20[%c0_162, %c0_163], %358 {strides = array<i32>} : memref<16x128xf32, #tpu.memory_space<vmem>>, vector<16x128xf32>,
    return
  }
}

</mosaic_0001>

<llo_original>
// kernel: seq2seq_forward_pallas.1
$region0: #{seq2seq_forward_pallas.1}
  #allocation0 [shape = 'u32[]', space=smem, size = 0x4, offset = 0x4, fixed_abs, tag = 'smem constant byte address 0x4 - core index']
  #allocation1 [shape = 'u32[144,128]{1,0:T(1,128)}', space=vmem, size = 0x12000, scoped, tag = 'internal scratch']
  %s0 = inlined_call_operand.vmem [shape: f32[20,32], index: 0, kind: input, shape index: {}]
  %s1 = inlined_call_operand.vmem [shape: f32[16,32], index: 1, kind: input, shape index: {}]
  %s2 = inlined_call_operand.vmem [shape: bf16[32,64], index: 2, kind: input, shape index: {}]
  %s3 = inlined_call_operand.vmem [shape: f32[1,64], index: 3, kind: input, shape index: {}]
  %s4 = inlined_call_operand.vmem [shape: bf16[6,64,128], index: 4, kind: input, shape index: {}]
  %s5 = inlined_call_operand.vmem [shape: f32[2,1,128], index: 5, kind: input, shape index: {}]
  %s6 = inlined_call_operand.vmem [shape: bf16[64,32], index: 6, kind: input, shape index: {}]
  %s7 = inlined_call_operand.vmem [shape: f32[1,32], index: 7, kind: input, shape index: {}]
  %s8 = inlined_call_operand.vmem [shape: bf16[32,64], index: 8, kind: input, shape index: {}]
  %s9 = inlined_call_operand.vmem [shape: f32[1,64], index: 9, kind: input, shape index: {}]
  %s10 = inlined_call_operand.vmem [shape: bf16[6,64,128], index: 10, kind: input, shape index: {}]
  %s11 = inlined_call_operand.vmem [shape: f32[2,1,128], index: 11, kind: input, shape index: {}]
  %s12 = inlined_call_operand.vmem [shape: bf16[64,32], index: 12, kind: input, shape index: {}]
  %s13 = inlined_call_operand.vmem [shape: f32[1,32], index: 13, kind: input, shape index: {}]
  %s14 = inlined_call_operand.vmem [shape: bf16[32,64], index: 14, kind: input, shape index: {}]
  %s15 = inlined_call_operand.vmem [shape: f32[1,64], index: 15, kind: input, shape index: {}]
  %s16 = inlined_call_operand.vmem [shape: bf16[64,32], index: 16, kind: input, shape index: {}]
  %s17 = inlined_call_operand.vmem [shape: f32[1,32], index: 17, kind: input, shape index: {}]
  %s18 = inlined_call_operand.vmem [shape: bf16[32,128], index: 18, kind: input, shape index: {}]
  %s19 = inlined_call_operand.vmem [shape: f32[1,128], index: 19, kind: input, shape index: {}]
  %s20 = inlined_call_operand.vmem [shape: f32[16,128], index: 20, kind: output, shape index: {0}]
  %s21 = inlined_call_operand.hbm [shape: f32[2,8,10], index: 21, kind: output, shape index: {1}]
  %22 = xla_tuple %s20, %s21
  %s23 = sld [smem:[#allocation0]]
  $region98: #{seq2seq_forward_pallas.1} parent=0
    _
  %s25 = ssub.s32 1, %s23
  %s26 = scalar_select 0, %s25, %s23
  $region1: #{seq2seq_forward_pallas.1} parent=0
    #allocation2 [shape = 'u8[8192]{0}', space=vmem, size = 0x2000, scoped, tag = 'output window, operand 1, single buffered']
    #allocation3 [shape = 's32[1]{0}', space=sflag, size = 0x4, scoped, tag = 'scoped memory for seq2seq_forward_pallas.1']
    %27 = vsyncpa [#allocation3], 0
    // Predicated region
    $region2: #{seq2seq_forward_pallas.1} parent=1 // pred_check
      _
    $region3: #{seq2seq_forward_pallas.1} parent=1 // pred_check_branch
      %29 = sbr.rel (0) target = $region5
    $region4: #{seq2seq_forward_pallas.1} parent=1 // pred_region
      _
    $region5: #{seq2seq_forward_pallas.1} parent=1 // pred_fallthru
      _
    // Predicated region
    $region6: #{seq2seq_forward_pallas.1} parent=1 // pred_check
      _
    $region7: #{seq2seq_forward_pallas.1} parent=1 // pred_check_branch
      %31 = sbr.rel (0) target = $region9
    $region8: #{seq2seq_forward_pallas.1} parent=1 // pred_region
      _
    $region9: #{seq2seq_forward_pallas.1} parent=1 // pred_fallthru
      _
    // Predicated region
    $region10: #{seq2seq_forward_pallas.1} parent=1 // pred_check
      _
    $region11: #{seq2seq_forward_pallas.1} parent=1 // pred_check_branch
      %33 = sbr.rel (0) target = $region13
    $region12: #{seq2seq_forward_pallas.1} parent=1 // pred_region
      _
    $region13: #{seq2seq_forward_pallas.1} parent=1 // pred_fallthru
      _
    // Predicated region
    $region14: #{seq2seq_forward_pallas.1} parent=1 // pred_check
      _
    $region15: #{seq2seq_forward_pallas.1} parent=1 // pred_check_branch
      %35 = sbr.rel (0) target = $region17
    $region16: #{seq2seq_forward_pallas.1} parent=1 // pred_region
      _
    $region17: #{seq2seq_forward_pallas.1} parent=1 // pred_fallthru
      _
    // Predicated region
    $region18: #{seq2seq_forward_pallas.1} parent=1 // pred_check
      _
    $region19: #{seq2seq_forward_pallas.1} parent=1 // pred_check_branch
      %37 = sbr.rel (0) target = $region21
    $region20: #{seq2seq_forward_pallas.1} parent=1 // pred_region
      _
    $region21: #{seq2seq_forward_pallas.1} parent=1 // pred_fallthru
      _
    // Predicated region
    $region22: #{seq2seq_forward_pallas.1} parent=1 // pred_check
      _
    $region23: #{seq2seq_forward_pallas.1} parent=1 // pred_check_branch
      %39 = sbr.rel (0) target = $region25
    $region24: #{seq2seq_forward_pallas.1} parent=1 // pred_region
      _
    $region25: #{seq2seq_forward_pallas.1} parent=1 // pred_fallthru
      _
    // Predicated region
    $region26: #{seq2seq_forward_pallas.1} parent=1 // pred_check
      _
    $region27: #{seq2seq_forward_pallas.1} parent=1 // pred_check_branch
      %41 = sbr.rel (0) target = $region29
    $region28: #{seq2seq_forward_pallas.1} parent=1 // pred_region
      _
    $region29: #{seq2seq_forward_pallas.1} parent=1 // pred_fallthru
      _
    // Predicated region
    $region30: #{seq2seq_forward_pallas.1} parent=1 // pred_check
      _
    $region31: #{seq2seq_forward_pallas.1} parent=1 // pred_check_branch
      %43 = sbr.rel (0) target = $region33
    $region32: #{seq2seq_forward_pallas.1} parent=1 // pred_region
      _
    $region33: #{seq2seq_forward_pallas.1} parent=1 // pred_fallthru
      _
    // Predicated region
    $region34: #{seq2seq_forward_pallas.1} parent=1 // pred_check
      _
    $region35: #{seq2seq_forward_pallas.1} parent=1 // pred_check_branch
      %45 = sbr.rel (0) target = $region37
    $region36: #{seq2seq_forward_pallas.1} parent=1 // pred_region
      _
    $region37: #{seq2seq_forward_pallas.1} parent=1 // pred_fallthru
      _
    // Predicated region
    $region38: #{seq2seq_forward_pallas.1} parent=1 // pred_check
      _
    $region39: #{seq2seq_forward_pallas.1} parent=1 // pred_check_branch
      %47 = sbr.rel (0) target = $region41
    $region40: #{seq2seq_forward_pallas.1} parent=1 // pred_region
      _
    $region41: #{seq2seq_forward_pallas.1} parent=1 // pred_fallthru
      _
    // Predicated region
    $region42: #{seq2seq_forward_pallas.1} parent=1 // pred_check
      _
    $region43: #{seq2seq_forward_pallas.1} parent=1 // pred_check_branch
      %49 = sbr.rel (0) target = $region45
    $region44: #{seq2seq_forward_pallas.1} parent=1 // pred_region
      _
    $region45: #{seq2seq_forward_pallas.1} parent=1 // pred_fallthru
      _
    // Predicated region
    $region46: #{seq2seq_forward_pallas.1} parent=1 // pred_check
      _
    $region47: #{seq2seq_forward_pallas.1} parent=1 // pred_check_branch
      %51 = sbr.rel (0) target = $region49
    $region48: #{seq2seq_forward_pallas.1} parent=1 // pred_region
      _
    $region49: #{seq2seq_forward_pallas.1} parent=1 // pred_fallthru
      _
    // Predicated region
    $region50: #{seq2seq_forward_pallas.1} parent=1 // pred_check
      _
    $region51: #{seq2seq_forward_pallas.1} parent=1 // pred_check_branch
      %53 = sbr.rel (0) target = $region53
    $region52: #{seq2seq_forward_pallas.1} parent=1 // pred_region
      _
    $region53: #{seq2seq_forward_pallas.1} parent=1 // pred_fallthru
      _
    // Predicated region
    $region54: #{seq2seq_forward_pallas.1} parent=1 // pred_check
      _
    $region55: #{seq2seq_forward_pallas.1} parent=1 // pred_check_branch
      %55 = sbr.rel (0) target = $region57
    $region56: #{seq2seq_forward_pallas.1} parent=1 // pred_region
      _
    $region57: #{seq2seq_forward_pallas.1} parent=1 // pred_fallthru
      _
    // Predicated region
    $region58: #{seq2seq_forward_pallas.1} parent=1 // pred_check
      _
    $region59: #{seq2seq_forward_pallas.1} parent=1 // pred_check_branch
      %57 = sbr.rel (0) target = $region61
    $region60: #{seq2seq_forward_pallas.1} parent=1 // pred_region
      _
    $region61: #{seq2seq_forward_pallas.1} parent=1 // pred_fallthru
      _
    // Predicated region
    $region62: #{seq2seq_forward_pallas.1} parent=1 // pred_check
      _
    $region63: #{seq2seq_forward_pallas.1} parent=1 // pred_check_branch
      %59 = sbr.rel (0) target = $region65
    $region64: #{seq2seq_forward_pallas.1} parent=1 // pred_region
      _
    $region65: #{seq2seq_forward_pallas.1} parent=1 // pred_fallthru
      _
    // Predicated region
    $region66: #{seq2seq_forward_pallas.1} parent=1 // pred_check
      _
    $region67: #{seq2seq_forward_pallas.1} parent=1 // pred_check_branch
      %61 = sbr.rel (0) target = $region69
    $region68: #{seq2seq_forward_pallas.1} parent=1 // pred_region
      _
    $region69: #{seq2seq_forward_pallas.1} parent=1 // pred_fallthru
      _
    // Predicated region
    $region70: #{seq2seq_forward_pallas.1} parent=1 // pred_check
      _
    $region71: #{seq2seq_forward_pallas.1} parent=1 // pred_check_branch
      %63 = sbr.rel (0) target = $region73
    $region72: #{seq2seq_forward_pallas.1} parent=1 // pred_region
      _
    $region73: #{seq2seq_forward_pallas.1} parent=1 // pred_fallthru
      _
    // Predicated region
    $region74: #{seq2seq_forward_pallas.1} parent=1 // pred_check
      _
    $region75: #{seq2seq_forward_pallas.1} parent=1 // pred_check_branch
      %65 = sbr.rel (0) target = $region77
    $region76: #{seq2seq_forward_pallas.1} parent=1 // pred_region
      _
    $region77: #{seq2seq_forward_pallas.1} parent=1 // pred_fallthru
      _
    // Predicated region
    $region78: #{seq2seq_forward_pallas.1} parent=1 // pred_check
      _
    $region79: #{seq2seq_forward_pallas.1} parent=1 // pred_check_branch
      %67 = sbr.rel (0) target = $region81
    $region80: #{seq2seq_forward_pallas.1} parent=1 // pred_region
      _
    $region81: #{seq2seq_forward_pallas.1} parent=1 // pred_fallthru
      _
    %v69 = vld [vmem:[%s0] sm:$0xff]
    %v70 = vld [vmem:[%s0 + $0x8] sm:$0xff]
    %v71 = vld [vmem:[%s0 + $0x10] sm:$0xf]
    %v72 = vld [vmem:[%s2] sm:$0xf]
    %v73 = vld [vmem:[%s2 + $0x4] sm:$0xf]
    %v74 = vld [vmem:[%s2 + $0x8] sm:$0xf]
    %v75 = vld [vmem:[%s2 + $0xc] sm:$0xf]
    %v76 = vpack.c.bf16 %v70, %v69
    %v77 = vpack.c.bf16 %v71, %v71
    %v78 = vld [vmem:[%s3] sm:$0x1]
    %v80 = vlaneseq
    %v81 = vshrl.u32 %v80, 7
    %v82 = vsub.s32 0, %v81
    %v83 = vrot.slane %v78, %v82
    %v89 = vunpack.c.l.b16 %v72
    %v90 = vunpack.c.l.b16 %v73
    %v91 = vunpack.c.l.b16 %v74
    %v92 = vunpack.c.l.b16 %v75
    %v93 = vpack.c.b16 %v90, %v89
    %v94 = vpack.c.b16 %v92, %v91
    %vm97 = vcmask 261120
    %v99 = vsel %vm97, %v76, 0
    %v102 = vsel %vm97, %v77, 0
    %104 = vmatprep.subr.bf16.mxu0 0
    %105 = vmatpush1.bf16.msra.mxu0 %v93
    %106 = vmatprep.subr.bf16.mxu0 0
    %107 = vmatpush1.bf16.msra.mxu0 %v94
    %108 = vmatprep.subr.bf16.mxu0 0
    %109 = vmatpush1.bf16.msra.mxu0 0
    %110 = vmatprep.subr.bf16.mxu0 0
    %111 = vmatpush1.bf16.msra.mxu0 0
    %112 = vmatprep.subr.bf16.mxu0 0
    %113 = vmatpush1.bf16.msra.mxu0 0
    %114 = vmatprep.subr.bf16.mxu0 0
    %115 = vmatpush1.bf16.msra.mxu0 0
    %116 = vmatprep.subr.bf16.mxu0 0
    %117 = vmatpush1.bf16.msra.mxu0 0
    %118 = vmatprep.subr.bf16.mxu0 0
    %119 = vmatpush1.bf16.msra.mxu0 0
    %120 = vmatprep.subr.bf16.mxu0 0
    %121 = vmatpush1.bf16.msra.mxu0 0
    %122 = vmatprep.subr.bf16.mxu0 0
    %123 = vmatpush1.bf16.msra.mxu0 0
    %124 = vmatprep.subr.bf16.mxu0 0
    %125 = vmatpush1.bf16.msra.mxu0 0
    %126 = vmatprep.subr.bf16.mxu0 0
    %127 = vmatpush1.bf16.msra.mxu0 0
    %128 = vmatprep.subr.bf16.mxu0 0
    %129 = vmatpush1.bf16.msra.mxu0 0
    %130 = vmatprep.subr.bf16.mxu0 0
    %131 = vmatpush1.bf16.msra.mxu0 0
    %132 = vmatprep.subr.bf16.mxu0 0
    %133 = vmatpush1.bf16.msra.mxu0 0
    %134 = vmatprep.subr.bf16.mxu0 0
    %135 = vmatpush1.bf16.msra.mxu0 0
    %136 = vmatprep.mubr.bf16.mxu0 0
    %137 = vmatmul.mubr.bf16.gmra.mrb[0].mxu0 %v99
    %v138 = vpop.f32.mrb[0].mxu0
    %v139 = vadd.f32 %v83, %v138
    %v140 = vpop.f32.mrb[0].mxu0
    %v141 = vpop.f32.mrb[0].mxu0
    %v142 = vadd.f32 %v83, %v141
    %v143 = vpop.f32.mrb[0].mxu0
    %144 = vmatprep.mubr.bf16.mxu0 0
    %145 = vmatmul.mubr.bf16.gmra.mrb[0].mxu0 %v102
    %v146 = vpop.f32.mrb[0].mxu0
    %v147 = vadd.f32 %v83, %v146
    %v148 = vpop.f32.mrb[0].mxu0
    %v149 = vpop.f32.mrb[0].mxu0
    %v150 = vpop.f32.mrb[0].mxu0
    %151 = vdwg.mxu0
    %v152 = vlaneseq
    %v153 = vshrl.u32 %v152, 7
    %v154 = vadd.s32 %v153, 8
    %v155 = vadd.s32 %v153, 16
    %vm156 = vcmp.lt.s32.totalorder %v153, 0
    %vm157 = vcmp.lt.s32.totalorder %v154, 0
    %vm158 = vcmp.lt.s32.totalorder %v155, 0
    %vm159 = vcmp.ge.s32.totalorder %v153, 0
    %vm160 = vcmp.ge.s32.totalorder %v154, 0
    %vm161 = vcmp.ge.s32.totalorder %v155, 0
    %vm162 = vcmp.lt.s32.totalorder %v153, 1
    %vm163 = vcmp.lt.s32.totalorder %v154, 1
    %vm164 = vcmp.lt.s32.totalorder %v155, 1
    %vm165 = vmand %vm159, %vm162
    %vm166 = vmand %vm160, %vm163
    %vm167 = vmand %vm161, %vm164
    %vm168 = vmor %vm156, %vm165
    %vm169 = vmor %vm157, %vm166
    %vm170 = vmor %vm158, %vm167
    %vm171 = vcmp.ge.s32.totalorder %v153, 10
    %vm172 = vcmp.ge.s32.totalorder %v154, 10
    %vm173 = vcmp.ge.s32.totalorder %v155, 10
    %vm174 = vcmp.lt.s32.totalorder %v153, 11
    %vm175 = vcmp.lt.s32.totalorder %v154, 11
    %vm176 = vcmp.lt.s32.totalorder %v155, 11
    %vm177 = vmand %vm171, %vm174
    %vm178 = vmand %vm172, %vm175
    %vm179 = vmand %vm173, %vm176
    %vm180 = vmor %vm168, %vm177
    %vm181 = vmor %vm169, %vm178
    %vm182 = vmor %vm170, %vm179
    %vm183 = vcmp.ge.s32.totalorder %v153, 9
    %vm184 = vcmp.ge.s32.totalorder %v154, 9
    %vm185 = vcmp.ge.s32.totalorder %v155, 9
    %vm186 = vcmp.lt.s32.totalorder %v153, 10
    %vm187 = vcmp.lt.s32.totalorder %v154, 10
    %vm188 = vcmp.lt.s32.totalorder %v155, 10
    %vm189 = vmand %vm183, %vm186
    %vm190 = vmand %vm184, %vm187
    %vm191 = vmand %vm185, %vm188
    %vm192 = vmor %vm156, %vm189
    %vm193 = vmor %vm157, %vm190
    %vm194 = vmor %vm158, %vm191
    %vm195 = vcmp.ge.s32.totalorder %v153, 19
    %vm196 = vcmp.ge.s32.totalorder %v154, 19
    %vm197 = vcmp.ge.s32.totalorder %v155, 19
    %vm198 = vcmp.lt.s32.totalorder %v153, 20
    %vm199 = vcmp.lt.s32.totalorder %v154, 20
    %vm200 = vcmp.lt.s32.totalorder %v155, 20
    %vm201 = vmand %vm195, %vm198
    %vm202 = vmand %vm196, %vm199
    %vm203 = vmand %vm197, %vm200
    %vm204 = vmor %vm192, %vm201
    %vm205 = vmor %vm193, %vm202
    %vm206 = vmor %vm194, %vm203
    %v208 = vrot.slane %v147, 3
    %vm212 = vcmask 1040384
    %v213 = vrot.slane %v139, 7
    %v214 = vrot.slane %v142, 7
    %v215 = vsel %vm212, %v213, %v214
    %v216 = vrot.slane %v147, 7
    %v217 = vsel %vm212, %v214, %v216
    %v221 = vsel %vm212, %v208, %v213
    %v222 = vsel %vm180, 0.0, %v221
    %v223 = vsel %vm181, 0.0, %v215
    %v224 = vsel %vm182, 0.0, %v217
    %v225 = vld [vmem:[%s4] sm:$0xf]
    %v226 = vld [vmem:[%s4 + $0x4] sm:$0xf]
    %v227 = vld [vmem:[%s4 + $0x8] sm:$0xf]
    %v228 = vld [vmem:[%s4 + $0xc] sm:$0xf]
    %v229 = vld [vmem:[%s4 + $0x10] sm:$0xf]
    %v230 = vld [vmem:[%s4 + $0x14] sm:$0xf]
    %v231 = vld [vmem:[%s4 + $0x18] sm:$0xf]
    %v232 = vld [vmem:[%s4 + $0x1c] sm:$0xf]
    %v233 = vpack.c.bf16 %v223, %v222
    %v234 = vpack.c.bf16 %v224, %v224
    %s235 = scalar_lea.vmem %s4, 32
    %v236 = vld [vmem:[%s235] sm:$0xf]
    %v237 = vld [vmem:[%s235 + $0x4] sm:$0xf]
    %v238 = vld [vmem:[%s235 + $0x8] sm:$0xf]
    %v239 = vld [vmem:[%s235 + $0xc] sm:$0xf]
    %v240 = vld [vmem:[%s235 + $0x10] sm:$0xf]
    %v241 = vld [vmem:[%s235 + $0x14] sm:$0xf]
    %v242 = vld [vmem:[%s235 + $0x18] sm:$0xf]
    %v243 = vld [vmem:[%s235 + $0x1c] sm:$0xf]
    %v244 = vpack.c.bf16 %v142, %v139
    %v245 = vpack.c.bf16 %v147, %v147
    %v254 = vunpack.c.l.b16 %v236
    %v255 = vunpack.c.l.b16 %v237
    %v256 = vunpack.c.l.b16 %v238
    %v257 = vunpack.c.l.b16 %v239
    %v258 = vunpack.c.l.b16 %v240
    %v259 = vunpack.c.l.b16 %v241
    %v260 = vunpack.c.l.b16 %v242
    %v261 = vunpack.c.l.b16 %v243
    %v262 = vpack.c.b16 %v255, %v254
    %v263 = vpack.c.b16 %v257, %v256
    %v264 = vpack.c.b16 %v259, %v258
    %v265 = vpack.c.b16 %v261, %v260
    %vm270 = vcmask 523264
    %v272 = vsel %vm270, %v244, 0
    %v275 = vsel %vm270, %v245, 0
    %277 = vmatprep.subr.bf16.mxu0 0
    %278 = vmatpush1.bf16.msra.mxu0 %v262
    %279 = vmatprep.subr.bf16.mxu0 0
    %280 = vmatpush1.bf16.msra.mxu0 %v263
    %281 = vmatprep.subr.bf16.mxu0 0
    %282 = vmatpush1.bf16.msra.mxu0 %v264
    %283 = vmatprep.subr.bf16.mxu0 0
    %284 = vmatpush1.bf16.msra.mxu0 %v265
    %285 = vmatprep.subr.bf16.mxu0 0
    %286 = vmatpush1.bf16.msra.mxu0 0
    %287 = vmatprep.subr.bf16.mxu0 0
    %288 = vmatpush1.bf16.msra.mxu0 0
    %289 = vmatprep.subr.bf16.mxu0 0
    %290 = vmatpush1.bf16.msra.mxu0 0
    %291 = vmatprep.subr.bf16.mxu0 0
    %292 = vmatpush1.bf16.msra.mxu0 0
    %293 = vmatprep.subr.bf16.mxu0 0
    %294 = vmatpush1.bf16.msra.mxu0 0
    %295 = vmatprep.subr.bf16.mxu0 0
    %296 = vmatpush1.bf16.msra.mxu0 0
    %297 = vmatprep.subr.bf16.mxu0 0
    %298 = vmatpush1.bf16.msra.mxu0 0
    %299 = vmatprep.subr.bf16.mxu0 0
    %300 = vmatpush1.bf16.msra.mxu0 0
    %301 = vmatprep.subr.bf16.mxu0 0
    %302 = vmatpush1.bf16.msra.mxu0 0
    %303 = vmatprep.subr.bf16.mxu0 0
    %304 = vmatpush1.bf16.msra.mxu0 0
    %305 = vmatprep.subr.bf16.mxu0 0
    %306 = vmatpush1.bf16.msra.mxu0 0
    %307 = vmatprep.subr.bf16.mxu0 0
    %308 = vmatpush1.bf16.msra.mxu0 0
    %309 = vmatprep.mubr.bf16.mxu0 0
    %310 = vmatmul.mubr.bf16.gmra.mrb[0].mxu0 %v272
    %v311 = vpop.f32.mrb[0].mxu0
    %v312 = vadd.f32 0.0, %v311
    %v313 = vpop.f32.mrb[0].mxu0
    %v314 = vpop.f32.mrb[0].mxu0
    %v315 = vadd.f32 0.0, %v314
    %v316 = vpop.f32.mrb[0].mxu0
    %317 = vmatprep.mubr.bf16.mxu0 0
    %318 = vmatmul.mubr.bf16.gmra.mrb[0].mxu0 %v275
    %v319 = vpop.f32.mrb[0].mxu0
    %v320 = vadd.f32 0.0, %v319
    %v321 = vpop.f32.mrb[0].mxu0
    %v322 = vpop.f32.mrb[0].mxu0
    %v323 = vpop.f32.mrb[0].mxu0
    %324 = vdwg.mxu0
    %v333 = vunpack.c.l.b16 %v225
    %v334 = vunpack.c.l.b16 %v226
    %v335 = vunpack.c.l.b16 %v227
    %v336 = vunpack.c.l.b16 %v228
    %v337 = vunpack.c.l.b16 %v229
    %v338 = vunpack.c.l.b16 %v230
    %v339 = vunpack.c.l.b16 %v231
    %v340 = vunpack.c.l.b16 %v232
    %v341 = vpack.c.b16 %v334, %v333
    %v342 = vpack.c.b16 %v336, %v335
    %v343 = vpack.c.b16 %v338, %v337
    %v344 = vpack.c.b16 %v340, %v339
    %v350 = vsel %vm270, %v233, 0
    %v353 = vsel %vm270, %v234, 0
    %355 = vmatprep.subr.bf16.mxu0 0
    %356 = vmatpush1.bf16.msra.mxu0 %v341
    %357 = vmatprep.subr.bf16.mxu0 0
    %358 = vmatpush1.bf16.msra.mxu0 %v342
    %359 = vmatprep.subr.bf16.mxu0 0
    %360 = vmatpush1.bf16.msra.mxu0 %v343
    %361 = vmatprep.subr.bf16.mxu0 0
    %362 = vmatpush1.bf16.msra.mxu0 %v344
    %363 = vmatprep.subr.bf16.mxu0 0
    %364 = vmatpush1.bf16.msra.mxu0 0
    %365 = vmatprep.subr.bf16.mxu0 0
    %366 = vmatpush1.bf16.msra.mxu0 0
    %367 = vmatprep.subr.bf16.mxu0 0
    %368 = vmatpush1.bf16.msra.mxu0 0
    %369 = vmatprep.subr.bf16.mxu0 0
    %370 = vmatpush1.bf16.msra.mxu0 0
    %371 = vmatprep.subr.bf16.mxu0 0
    %372 = vmatpush1.bf16.msra.mxu0 0
    %373 = vmatprep.subr.bf16.mxu0 0
    %374 = vmatpush1.bf16.msra.mxu0 0
    %375 = vmatprep.subr.bf16.mxu0 0
    %376 = vmatpush1.bf16.msra.mxu0 0
    %377 = vmatprep.subr.bf16.mxu0 0
    %378 = vmatpush1.bf16.msra.mxu0 0
    %379 = vmatprep.subr.bf16.mxu0 0
    %380 = vmatpush1.bf16.msra.mxu0 0
    %381 = vmatprep.subr.bf16.mxu0 0
    %382 = vmatpush1.bf16.msra.mxu0 0
    %383 = vmatprep.subr.bf16.mxu0 0
    %384 = vmatpush1.bf16.msra.mxu0 0
    %385 = vmatprep.subr.bf16.mxu0 0
    %386 = vmatpush1.bf16.msra.mxu0 0
    %387 = vmatprep.mubr.bf16.mxu0 0
    %388 = vmatmul.mubr.bf16.gmra.mrb[0].mxu0 %v350
    %v389 = vpop.f32.mrb[0].mxu0
    %v390 = vadd.f32 %v312, %v389
    %v391 = vpop.f32.mrb[0].mxu0
    %v392 = vpop.f32.mrb[0].mxu0
    %v393 = vadd.f32 %v315, %v392
    %v394 = vpop.f32.mrb[0].mxu0
    %395 = vmatprep.mubr.bf16.mxu0 0
    %396 = vmatmul.mubr.bf16.gmra.mrb[0].mxu0 %v353
    %v397 = vpop.f32.mrb[0].mxu0
    %v398 = vadd.f32 %v320, %v397
    %v399 = vpop.f32.mrb[0].mxu0
    %v400 = vpop.f32.mrb[0].mxu0
    %v401 = vpop.f32.mrb[0].mxu0
    %402 = vdwg.mxu0
    %vm403 = vcmask 1046528
    %v404 = vrot.slane %v139, 1
    %v405 = vrot.slane %v142, 1
    %v406 = vsel %vm403, %v404, %v405
    %v407 = vrot.slane %v147, 1
    %v408 = vsel %vm403, %v405, %v407
    %v412 = vrot.slane %v139, 5
    %vm414 = vcmask 1042432
    %v415 = vsel %vm414, %v407, %v412
    %v416 = vsel %vm204, 0.0, %v406
    %v417 = vsel %vm205, 0.0, %v408
    %v418 = vsel %vm206, 0.0, %v415
    %s419 = scalar_lea.vmem %s4, 64
    %v420 = vld [vmem:[%s419] sm:$0xf]
    %v421 = vld [vmem:[%s419 + $0x4] sm:$0xf]
    %v422 = vld [vmem:[%s419 + $0x8] sm:$0xf]
    %v423 = vld [vmem:[%s419 + $0xc] sm:$0xf]
    %v424 = vld [vmem:[%s419 + $0x10] sm:$0xf]
    %v425 = vld [vmem:[%s419 + $0x14] sm:$0xf]
    %v426 = vld [vmem:[%s419 + $0x18] sm:$0xf]
    %v427 = vld [vmem:[%s419 + $0x1c] sm:$0xf]
    %v428 = vpack.c.bf16 %v417, %v416
    %v429 = vpack.c.bf16 %v418, %v418
    %v438 = vunpack.c.l.b16 %v420
    %v439 = vunpack.c.l.b16 %v421
    %v440 = vunpack.c.l.b16 %v422
    %v441 = vunpack.c.l.b16 %v423
    %v442 = vunpack.c.l.b16 %v424
    %v443 = vunpack.c.l.b16 %v425
    %v444 = vunpack.c.l.b16 %v426
    %v445 = vunpack.c.l.b16 %v427
    %v446 = vpack.c.b16 %v439, %v438
    %v447 = vpack.c.b16 %v441, %v440
    %v448 = vpack.c.b16 %v443, %v442
    %v449 = vpack.c.b16 %v445, %v444
    %v455 = vsel %vm270, %v428, 0
    %v458 = vsel %vm270, %v429, 0
    %460 = vmatprep.subr.bf16.mxu0 0
    %461 = vmatpush1.bf16.msra.mxu0 %v446
    %462 = vmatprep.subr.bf16.mxu0 0
    %463 = vmatpush1.bf16.msra.mxu0 %v447
    %464 = vmatprep.subr.bf16.mxu0 0
    %465 = vmatpush1.bf16.msra.mxu0 %v448
    %466 = vmatprep.subr.bf16.mxu0 0
    %467 = vmatpush1.bf16.msra.mxu0 %v449
    %468 = vmatprep.subr.bf16.mxu0 0
    %469 = vmatpush1.bf16.msra.mxu0 0
    %470 = vmatprep.subr.bf16.mxu0 0
    %471 = vmatpush1.bf16.msra.mxu0 0
    %472 = vmatprep.subr.bf16.mxu0 0
    %473 = vmatpush1.bf16.msra.mxu0 0
    %474 = vmatprep.subr.bf16.mxu0 0
    %475 = vmatpush1.bf16.msra.mxu0 0
    %476 = vmatprep.subr.bf16.mxu0 0
    %477 = vmatpush1.bf16.msra.mxu0 0
    %478 = vmatprep.subr.bf16.mxu0 0
    %479 = vmatpush1.bf16.msra.mxu0 0
    %480 = vmatprep.subr.bf16.mxu0 0
    %481 = vmatpush1.bf16.msra.mxu0 0
    %482 = vmatprep.subr.bf16.mxu0 0
    %483 = vmatpush1.bf16.msra.mxu0 0
    %484 = vmatprep.subr.bf16.mxu0 0
    %485 = vmatpush1.bf16.msra.mxu0 0
    %486 = vmatprep.subr.bf16.mxu0 0
    %487 = vmatpush1.bf16.msra.mxu0 0
    %488 = vmatprep.subr.bf16.mxu0 0
    %489 = vmatpush1.bf16.msra.mxu0 0
    %490 = vmatprep.subr.bf16.mxu0 0
    %491 = vmatpush1.bf16.msra.mxu0 0
    %492 = vmatprep.mubr.bf16.mxu0 0
    %493 = vmatmul.mubr.bf16.gmra.mrb[0].mxu0 %v455
    %v494 = vpop.f32.mrb[0].mxu0
    %v495 = vadd.f32 0.0, %v494
    %v496 = vpop.f32.mrb[0].mxu0
    %v497 = vpop.f32.mrb[0].mxu0
    %v498 = vadd.f32 0.0, %v497
    %v499 = vpop.f32.mrb[0].mxu0
    %500 = vmatprep.mubr.bf16.mxu0 0
    %501 = vmatmul.mubr.bf16.gmra.mrb[0].mxu0 %v458
    %v502 = vpop.f32.mrb[0].mxu0
    %v503 = vadd.f32 0.0, %v502
    %v504 = vpop.f32.mrb[0].mxu0
    %v505 = vpop.f32.mrb[0].mxu0
    %v506 = vpop.f32.mrb[0].mxu0
    %507 = vdwg.mxu0
    %v508 = vadd.f32 %v390, %v495
    %v509 = vadd.f32 %v393, %v498
    %v510 = vadd.f32 %v398, %v503
    %v511 = vld [vmem:[%s5] sm:$0x1]
    %v513 = vlaneseq
    %v514 = vshrl.u32 %v513, 7
    %v515 = vsub.s32 0, %v514
    %v516 = vrot.slane %v511, %v515
    %v518 = vadd.f32 %v508, %v516
    %v519 = vadd.f32 %v509, %v516
    %v520 = vadd.f32 %v510, %v516
    %v521 = vsub.f32 0.0, %v518
    %v522 = vsub.f32 0.0, %v519
    %v523 = vsub.f32 0.0, %v520
    %v524 = vmul.f32 %v521, 1.442695
    %v525 = vpow.pop %v524
    %v526 = vmul.f32 %v522, 1.442695
    %v527 = vpow.pop %v526
    %v528 = vmul.f32 %v523, 1.442695
    %v529 = vpow.pop %v528
    %v530 = vadd.f32 %v525, 1.0
    %v531 = vadd.f32 %v527, 1.0
    %v532 = vadd.f32 %v529, 1.0
    %v533 = vrcp.pop %v530
    %v534 = vrcp.pop %v531
    %v535 = vrcp.pop %v532
    %539 = vrot.lane.b32.xlu0 %v533, 64
    %v540 = vpop.permute.xlu0 %539
    %541 = vrot.lane.b32.xlu0 %v534, 64
    %v542 = vpop.permute.xlu0 %541
    %543 = vrot.lane.b32.xlu0 %v535, 64
    %v544 = vpop.permute.xlu0 %543
    %v548 = vmul.f32 %v518, %v540
    %v549 = vmul.f32 %v519, %v542
    %v550 = vmul.f32 %v520, %v544
    %v551 = vadd.f32 %v548, %v139
    %v552 = vadd.f32 %v549, %v142
    %v553 = vadd.f32 %v550, %v147
    %v554 = vmul.f32 %v551, 0.70710677
    %v555 = vmul.f32 %v552, 0.70710677
    %v556 = vmul.f32 %v553, 0.70710677
    %v558 = vrot.slane %v556, 3
    %v562 = vrot.slane %v554, 7
    %v563 = vrot.slane %v555, 7
    %v564 = vsel %vm212, %v562, %v563
    %v565 = vrot.slane %v556, 7
    %v566 = vsel %vm212, %v563, %v565
    %v570 = vsel %vm212, %v558, %v562
    %v571 = vsel %vm180, 0.0, %v570
    %v572 = vsel %vm181, 0.0, %v564
    %v573 = vsel %vm182, 0.0, %v566
    %s574 = scalar_lea.vmem %s4, 96
    %v575 = vld [vmem:[%s574] sm:$0xf]
    %v576 = vld [vmem:[%s574 + $0x4] sm:$0xf]
    %v577 = vld [vmem:[%s574 + $0x8] sm:$0xf]
    %v578 = vld [vmem:[%s574 + $0xc] sm:$0xf]
    %v579 = vld [vmem:[%s574 + $0x10] sm:$0xf]
    %v580 = vld [vmem:[%s574 + $0x14] sm:$0xf]
    %v581 = vld [vmem:[%s574 + $0x18] sm:$0xf]
    %v582 = vld [vmem:[%s574 + $0x1c] sm:$0xf]
    %v583 = vpack.c.bf16 %v572, %v571
    %v584 = vpack.c.bf16 %v573, %v573
    %s585 = scalar_lea.vmem %s4, 128
    %v586 = vld [vmem:[%s585] sm:$0xf]
    %v587 = vld [vmem:[%s585 + $0x4] sm:$0xf]
    %v588 = vld [vmem:[%s585 + $0x8] sm:$0xf]
    %v589 = vld [vmem:[%s585 + $0xc] sm:$0xf]
    %v590 = vld [vmem:[%s585 + $0x10] sm:$0xf]
    %v591 = vld [vmem:[%s585 + $0x14] sm:$0xf]
    %v592 = vld [vmem:[%s585 + $0x18] sm:$0xf]
    %v593 = vld [vmem:[%s585 + $0x1c] sm:$0xf]
    %v594 = vpack.c.bf16 %v555, %v554
    %v595 = vpack.c.bf16 %v556, %v556
    %v604 = vunpack.c.l.b16 %v586
    %v605 = vunpack.c.l.b16 %v587
    %v606 = vunpack.c.l.b16 %v588
    %v607 = vunpack.c.l.b16 %v589
    %v608 = vunpack.c.l.b16 %v590
    %v609 = vunpack.c.l.b16 %v591
    %v610 = vunpack.c.l.b16 %v592
    %v611 = vunpack.c.l.b16 %v593
    %v612 = vpack.c.b16 %v605, %v604
    %v613 = vpack.c.b16 %v607, %v606
    %v614 = vpack.c.b16 %v609, %v608
    %v615 = vpack.c.b16 %v611, %v610
    %v621 = vsel %vm270, %v594, 0
    %v624 = vsel %vm270, %v595, 0
    %626 = vmatprep.subr.bf16.mxu0 0
    %627 = vmatpush1.bf16.msra.mxu0 %v612
    %628 = vmatprep.subr.bf16.mxu0 0
    %629 = vmatpush1.bf16.msra.mxu0 %v613
    %630 = vmatprep.subr.bf16.mxu0 0
    %631 = vmatpush1.bf16.msra.mxu0 %v614
    %632 = vmatprep.subr.bf16.mxu0 0
    %633 = vmatpush1.bf16.msra.mxu0 %v615
    %634 = vmatprep.subr.bf16.mxu0 0
    %635 = vmatpush1.bf16.msra.mxu0 0
    %636 = vmatprep.subr.bf16.mxu0 0
    %637 = vmatpush1.bf16.msra.mxu0 0
    %638 = vmatprep.subr.bf16.mxu0 0
    %639 = vmatpush1.bf16.msra.mxu0 0
    %640 = vmatprep.subr.bf16.mxu0 0
    %641 = vmatpush1.bf16.msra.mxu0 0
    %642 = vmatprep.subr.bf16.mxu0 0
    %643 = vmatpush1.bf16.msra.mxu0 0
    %644 = vmatprep.subr.bf16.mxu0 0
    %645 = vmatpush1.bf16.msra.mxu0 0
    %646 = vmatprep.subr.bf16.mxu0 0
    %647 = vmatpush1.bf16.msra.mxu0 0
    %648 = vmatprep.subr.bf16.mxu0 0
    %649 = vmatpush1.bf16.msra.mxu0 0
    %650 = vmatprep.subr.bf16.mxu0 0
    %651 = vmatpush1.bf16.msra.mxu0 0
    %652 = vmatprep.subr.bf16.mxu0 0
    %653 = vmatpush1.bf16.msra.mxu0 0
    %654 = vmatprep.subr.bf16.mxu0 0
    %655 = vmatpush1.bf16.msra.mxu0 0
    %656 = vmatprep.subr.bf16.mxu0 0
    %657 = vmatpush1.bf16.msra.mxu0 0
    %658 = vmatprep.mubr.bf16.mxu0 0
    %659 = vmatmul.mubr.bf16.gmra.mrb[0].mxu0 %v621
    %v660 = vpop.f32.mrb[0].mxu0
    %v661 = vadd.f32 0.0, %v660
    %v662 = vpop.f32.mrb[0].mxu0
    %v663 = vpop.f32.mrb[0].mxu0
    %v664 = vadd.f32 0.0, %v663
    %v665 = vpop.f32.mrb[0].mxu0
    %666 = vmatprep.mubr.bf16.mxu0 0
    %667 = vmatmul.mubr.bf16.gmra.mrb[0].mxu0 %v624
    %v668 = vpop.f32.mrb[0].mxu0
    %v669 = vadd.f32 0.0, %v668
    %v670 = vpop.f32.mrb[0].mxu0
    %v671 = vpop.f32.mrb[0].mxu0
    %v672 = vpop.f32.mrb[0].mxu0
    %673 = vdwg.mxu0
    %v682 = vunpack.c.l.b16 %v575
    %v683 = vunpack.c.l.b16 %v576
    %v684 = vunpack.c.l.b16 %v577
    %v685 = vunpack.c.l.b16 %v578
    %v686 = vunpack.c.l.b16 %v579
    %v687 = vunpack.c.l.b16 %v580
    %v688 = vunpack.c.l.b16 %v581
    %v689 = vunpack.c.l.b16 %v582
    %v690 = vpack.c.b16 %v683, %v682
    %v691 = vpack.c.b16 %v685, %v684
    %v692 = vpack.c.b16 %v687, %v686
    %v693 = vpack.c.b16 %v689, %v688
    %v699 = vsel %vm270, %v583, 0
    %v702 = vsel %vm270, %v584, 0
    %704 = vmatprep.subr.bf16.mxu0 0
    %705 = vmatpush1.bf16.msra.mxu0 %v690
    %706 = vmatprep.subr.bf16.mxu0 0
    %707 = vmatpush1.bf16.msra.mxu0 %v691
    %708 = vmatprep.subr.bf16.mxu0 0
    %709 = vmatpush1.bf16.msra.mxu0 %v692
    %710 = vmatprep.subr.bf16.mxu0 0
    %711 = vmatpush1.bf16.msra.mxu0 %v693
    %712 = vmatprep.subr.bf16.mxu0 0
    %713 = vmatpush1.bf16.msra.mxu0 0
    %714 = vmatprep.subr.bf16.mxu0 0
    %715 = vmatpush1.bf16.msra.mxu0 0
    %716 = vmatprep.subr.bf16.mxu0 0
    %717 = vmatpush1.bf16.msra.mxu0 0
    %718 = vmatprep.subr.bf16.mxu0 0
    %719 = vmatpush1.bf16.msra.mxu0 0
    %720 = vmatprep.subr.bf16.mxu0 0
    %721 = vmatpush1.bf16.msra.mxu0 0
    %722 = vmatprep.subr.bf16.mxu0 0
    %723 = vmatpush1.bf16.msra.mxu0 0
    %724 = vmatprep.subr.bf16.mxu0 0
    %725 = vmatpush1.bf16.msra.mxu0 0
    %726 = vmatprep.subr.bf16.mxu0 0
    %727 = vmatpush1.bf16.msra.mxu0 0
    %728 = vmatprep.subr.bf16.mxu0 0
    %729 = vmatpush1.bf16.msra.mxu0 0
    %730 = vmatprep.subr.bf16.mxu0 0
    %731 = vmatpush1.bf16.msra.mxu0 0
    %732 = vmatprep.subr.bf16.mxu0 0
    %733 = vmatpush1.bf16.msra.mxu0 0
    %734 = vmatprep.subr.bf16.mxu0 0
    %735 = vmatpush1.bf16.msra.mxu0 0
    %736 = vmatprep.mubr.bf16.mxu0 0
    %737 = vmatmul.mubr.bf16.gmra.mrb[0].mxu0 %v699
    %v738 = vpop.f32.mrb[0].mxu0
    %v739 = vadd.f32 %v661, %v738
    %v740 = vpop.f32.mrb[0].mxu0
    %v741 = vpop.f32.mrb[0].mxu0
    %v742 = vadd.f32 %v664, %v741
    %v743 = vpop.f32.mrb[0].mxu0
    %744 = vmatprep.mubr.bf16.mxu0 0
    %745 = vmatmul.mubr.bf16.gmra.mrb[0].mxu0 %v702
    %v746 = vpop.f32.mrb[0].mxu0
    %v747 = vadd.f32 %v669, %v746
    %v748 = vpop.f32.mrb[0].mxu0
    %v749 = vpop.f32.mrb[0].mxu0
    %v750 = vpop.f32.mrb[0].mxu0
    %751 = vdwg.mxu0
    %v752 = vrot.slane %v554, 1
    %v753 = vrot.slane %v555, 1
    %v754 = vsel %vm403, %v752, %v753
    %v755 = vrot.slane %v556, 1
    %v756 = vsel %vm403, %v753, %v755
    %v760 = vrot.slane %v554, 5
    %v762 = vsel %vm414, %v755, %v760
    %v763 = vsel %vm204, 0.0, %v754
    %v764 = vsel %vm205, 0.0, %v756
    %v765 = vsel %vm206, 0.0, %v762
    %s766 = scalar_lea.vmem %s4, 160
    %v767 = vld [vmem:[%s766] sm:$0xf]
    %v768 = vld [vmem:[%s766 + $0x4] sm:$0xf]
    %v769 = vld [vmem:[%s766 + $0x8] sm:$0xf]
    %v770 = vld [vmem:[%s766 + $0xc] sm:$0xf]
    %v771 = vld [vmem:[%s766 + $0x10] sm:$0xf]
    %v772 = vld [vmem:[%s766 + $0x14] sm:$0xf]
    %v773 = vld [vmem:[%s766 + $0x18] sm:$0xf]
    %v774 = vld [vmem:[%s766 + $0x1c] sm:$0xf]
    %v775 = vpack.c.bf16 %v764, %v763
    %v776 = vpack.c.bf16 %v765, %v765
    %v785 = vunpack.c.l.b16 %v767
    %v786 = vunpack.c.l.b16 %v768
    %v787 = vunpack.c.l.b16 %v769
    %v788 = vunpack.c.l.b16 %v770
    %v789 = vunpack.c.l.b16 %v771
    %v790 = vunpack.c.l.b16 %v772
    %v791 = vunpack.c.l.b16 %v773
    %v792 = vunpack.c.l.b16 %v774
    %v793 = vpack.c.b16 %v786, %v785
    %v794 = vpack.c.b16 %v788, %v787
    %v795 = vpack.c.b16 %v790, %v789
    %v796 = vpack.c.b16 %v792, %v791
    %v802 = vsel %vm270, %v775, 0
    %v805 = vsel %vm270, %v776, 0
    %807 = vmatprep.subr.bf16.mxu0 0
    %808 = vmatpush1.bf16.msra.mxu0 %v793
    %809 = vmatprep.subr.bf16.mxu0 0
    %810 = vmatpush1.bf16.msra.mxu0 %v794
    %811 = vmatprep.subr.bf16.mxu0 0
    %812 = vmatpush1.bf16.msra.mxu0 %v795
    %813 = vmatprep.subr.bf16.mxu0 0
    %814 = vmatpush1.bf16.msra.mxu0 %v796
    %815 = vmatprep.subr.bf16.mxu0 0
    %816 = vmatpush1.bf16.msra.mxu0 0
    %817 = vmatprep.subr.bf16.mxu0 0
    %818 = vmatpush1.bf16.msra.mxu0 0
    %819 = vmatprep.subr.bf16.mxu0 0
    %820 = vmatpush1.bf16.msra.mxu0 0
    %821 = vmatprep.subr.bf16.mxu0 0
    %822 = vmatpush1.bf16.msra.mxu0 0
    %823 = vmatprep.subr.bf16.mxu0 0
    %824 = vmatpush1.bf16.msra.mxu0 0
    %825 = vmatprep.subr.bf16.mxu0 0
    %826 = vmatpush1.bf16.msra.mxu0 0
    %827 = vmatprep.subr.bf16.mxu0 0
    %828 = vmatpush1.bf16.msra.mxu0 0
    %829 = vmatprep.subr.bf16.mxu0 0
    %830 = vmatpush1.bf16.msra.mxu0 0
    %831 = vmatprep.subr.bf16.mxu0 0
    %832 = vmatpush1.bf16.msra.mxu0 0
    %833 = vmatprep.subr.bf16.mxu0 0
    %834 = vmatpush1.bf16.msra.mxu0 0
    %835 = vmatprep.subr.bf16.mxu0 0
    %836 = vmatpush1.bf16.msra.mxu0 0
    %837 = vmatprep.subr.bf16.mxu0 0
    %838 = vmatpush1.bf16.msra.mxu0 0
    %839 = vmatprep.mubr.bf16.mxu0 0
    %840 = vmatmul.mubr.bf16.gmra.mrb[0].mxu0 %v802
    %v841 = vpop.f32.mrb[0].mxu0
    %v842 = vadd.f32 0.0, %v841
    %v843 = vpop.f32.mrb[0].mxu0
    %v844 = vpop.f32.mrb[0].mxu0
    %v845 = vadd.f32 0.0, %v844
    %v846 = vpop.f32.mrb[0].mxu0
    %847 = vmatprep.mubr.bf16.mxu0 0
    %848 = vmatmul.mubr.bf16.gmra.mrb[0].mxu0 %v805
    %v849 = vpop.f32.mrb[0].mxu0
    %v850 = vadd.f32 0.0, %v849
    %v851 = vpop.f32.mrb[0].mxu0
    %v852 = vpop.f32.mrb[0].mxu0
    %v853 = vpop.f32.mrb[0].mxu0
    %854 = vdwg.mxu0
    %v855 = vadd.f32 %v739, %v842
    %v856 = vadd.f32 %v742, %v845
    %v857 = vadd.f32 %v747, %v850
    %s858 = scalar_lea.vmem %s5, 1
    %v859 = vld [vmem:[%s858] sm:$0x1]
    %v861 = vlaneseq
    %v862 = vshrl.u32 %v861, 7
    %v863 = vsub.s32 0, %v862
    %v864 = vrot.slane %v859, %v863
    %v866 = vadd.f32 %v855, %v864
    %v867 = vadd.f32 %v856, %v864
    %v868 = vadd.f32 %v857, %v864
    %v869 = vsub.f32 0.0, %v866
    %v870 = vsub.f32 0.0, %v867
    %v871 = vsub.f32 0.0, %v868
    %v872 = vmul.f32 %v869, 1.442695
    %v873 = vpow.pop %v872
    %v874 = vmul.f32 %v870, 1.442695
    %v875 = vpow.pop %v874
    %v876 = vmul.f32 %v871, 1.442695
    %v877 = vpow.pop %v876
    %v878 = vadd.f32 %v873, 1.0
    %v879 = vadd.f32 %v875, 1.0
    %v880 = vadd.f32 %v877, 1.0
    %v881 = vrcp.pop %v878
    %v882 = vrcp.pop %v879
    %v883 = vrcp.pop %v880
    %887 = vrot.lane.b32.xlu0 %v881, 64
    %v888 = vpop.permute.xlu0 %887
    %889 = vrot.lane.b32.xlu0 %v882, 64
    %v890 = vpop.permute.xlu0 %889
    %891 = vrot.lane.b32.xlu0 %v883, 64
    %v892 = vpop.permute.xlu0 %891
    %v896 = vmul.f32 %v866, %v888
    %v897 = vmul.f32 %v867, %v890
    %v898 = vmul.f32 %v868, %v892
    %v899 = vadd.f32 %v896, %v554
    %v900 = vadd.f32 %v897, %v555
    %v901 = vadd.f32 %v898, %v556
    %v902 = vmul.f32 %v899, 0.70710677
    %v903 = vmul.f32 %v900, 0.70710677
    %v904 = vmul.f32 %v901, 0.70710677
    %v905 = vld [vmem:[%s6] sm:$0xf]
    %v906 = vld [vmem:[%s6 + $0x4] sm:$0xf]
    %v907 = vld [vmem:[%s6 + $0x8] sm:$0xf]
    %v908 = vld [vmem:[%s6 + $0xc] sm:$0xf]
    %v909 = vld [vmem:[%s6 + $0x10] sm:$0xf]
    %v910 = vld [vmem:[%s6 + $0x14] sm:$0xf]
    %v911 = vld [vmem:[%s6 + $0x18] sm:$0xf]
    %v912 = vld [vmem:[%s6 + $0x1c] sm:$0xf]
    %v913 = vpack.c.bf16 %v903, %v902
    %v914 = vpack.c.bf16 %v904, %v904
    %v915 = vld [vmem:[%s7] sm:$0x1]
    %v917 = vlaneseq
    %v918 = vshrl.u32 %v917, 7
    %v919 = vsub.s32 0, %v918
    %v920 = vrot.slane %v915, %v919
    %v930 = vunpack.c.l.b16 %v905
    %v931 = vunpack.c.l.b16 %v906
    %v932 = vunpack.c.l.b16 %v907
    %v933 = vunpack.c.l.b16 %v908
    %v934 = vunpack.c.l.b16 %v909
    %v935 = vunpack.c.l.b16 %v910
    %v936 = vunpack.c.l.b16 %v911
    %v937 = vunpack.c.l.b16 %v912
    %v938 = vpack.c.b16 %v931, %v930
    %v939 = vpack.c.b16 %v933, %v932
    %v940 = vpack.c.b16 %v935, %v934
    %v941 = vpack.c.b16 %v937, %v936
    %v947 = vsel %vm270, %v913, 0
    %v950 = vsel %vm270, %v914, 0
    %952 = vmatprep.subr.bf16.mxu0 0
    %953 = vmatpush1.bf16.msra.mxu0 %v938
    %954 = vmatprep.subr.bf16.mxu0 0
    %955 = vmatpush1.bf16.msra.mxu0 %v939
    %956 = vmatprep.subr.bf16.mxu0 0
    %957 = vmatpush1.bf16.msra.mxu0 %v940
    %958 = vmatprep.subr.bf16.mxu0 0
    %959 = vmatpush1.bf16.msra.mxu0 %v941
    %960 = vmatprep.subr.bf16.mxu0 0
    %961 = vmatpush1.bf16.msra.mxu0 0
    %962 = vmatprep.subr.bf16.mxu0 0
    %963 = vmatpush1.bf16.msra.mxu0 0
    %964 = vmatprep.subr.bf16.mxu0 0
    %965 = vmatpush1.bf16.msra.mxu0 0
    %966 = vmatprep.subr.bf16.mxu0 0
    %967 = vmatpush1.bf16.msra.mxu0 0
    %968 = vmatprep.subr.bf16.mxu0 0
    %969 = vmatpush1.bf16.msra.mxu0 0
    %970 = vmatprep.subr.bf16.mxu0 0
    %971 = vmatpush1.bf16.msra.mxu0 0
    %972 = vmatprep.subr.bf16.mxu0 0
    %973 = vmatpush1.bf16.msra.mxu0 0
    %974 = vmatprep.subr.bf16.mxu0 0
    %975 = vmatpush1.bf16.msra.mxu0 0
    %976 = vmatprep.subr.bf16.mxu0 0
    %977 = vmatpush1.bf16.msra.mxu0 0
    %978 = vmatprep.subr.bf16.mxu0 0
    %979 = vmatpush1.bf16.msra.mxu0 0
    %980 = vmatprep.subr.bf16.mxu0 0
    %981 = vmatpush1.bf16.msra.mxu0 0
    %982 = vmatprep.subr.bf16.mxu0 0
    %983 = vmatpush1.bf16.msra.mxu0 0
    %984 = vmatprep.mubr.bf16.mxu0 0
    %985 = vmatmul.mubr.bf16.gmra.mrb[0].mxu0 %v947
    %v986 = vpop.f32.mrb[0].mxu0
    %v987 = vadd.f32 %v920, %v986
    %v988 = vpop.f32.mrb[0].mxu0
    %v989 = vpop.f32.mrb[0].mxu0
    %v990 = vadd.f32 %v920, %v989
    %v991 = vpop.f32.mrb[0].mxu0
    %992 = vmatprep.mubr.bf16.mxu0 0
    %993 = vmatmul.mubr.bf16.gmra.mrb[0].mxu0 %v950
    %v994 = vpop.f32.mrb[0].mxu0
    %v995 = vadd.f32 %v920, %v994
    %v996 = vpop.f32.mrb[0].mxu0
    %v997 = vpop.f32.mrb[0].mxu0
    %v998 = vpop.f32.mrb[0].mxu0
    %999 = vdwg.mxu0
    %v1000 = vadd.f32 %v987, %v69
    %v1001 = vadd.f32 %v990, %v70
    %v1002 = vadd.f32 %v995, %v71
    %v1003 = vmul.f32 %v1000, 0.70710677
    %v1004 = vmul.f32 %v1001, 0.70710677
    %v1005 = vmul.f32 %v1002, 0.70710677
    %v1006 = vpack.c.bf16 %v990, %v987
    %v1007 = vpack.c.bf16 %v995, %v995
    %v1008 = vpack.c.bf16 %v1004, %v1003
    %v1009 = vpack.c.bf16 %v1005, %v1005
    %v1010 = vld [vmem:[%s1] sm:$0xff]
    %v1011 = vld [vmem:[%s1 + $0x8] sm:$0xff]
    %v1012 = vld [vmem:[%s8] sm:$0xf]
    %v1013 = vld [vmem:[%s8 + $0x4] sm:$0xf]
    %v1014 = vld [vmem:[%s8 + $0x8] sm:$0xf]
    %v1015 = vld [vmem:[%s8 + $0xc] sm:$0xf]
    %v1016 = vpack.c.bf16 %v1011, %v1010
    %v1017 = vld [vmem:[%s9] sm:$0x1]
    %v1019 = vlaneseq
    %v1020 = vshrl.u32 %v1019, 7
    %v1021 = vsub.s32 0, %v1020
    %v1022 = vrot.slane %v1017, %v1021
    %v1028 = vunpack.c.l.b16 %v1012
    %v1029 = vunpack.c.l.b16 %v1013
    %v1030 = vunpack.c.l.b16 %v1014
    %v1031 = vunpack.c.l.b16 %v1015
    %v1032 = vpack.c.b16 %v1029, %v1028
    %v1033 = vpack.c.b16 %v1031, %v1030
    %v1037 = vsel %vm97, %v1016, 0
    %1039 = vmatprep.subr.bf16.mxu0 0
    %1040 = vmatpush1.bf16.msra.mxu0 %v1032
    %1041 = vmatprep.subr.bf16.mxu0 0
    %1042 = vmatpush1.bf16.msra.mxu0 %v1033
    %1043 = vmatprep.subr.bf16.mxu0 0
    %1044 = vmatpush1.bf16.msra.mxu0 0
    %1045 = vmatprep.subr.bf16.mxu0 0
    %1046 = vmatpush1.bf16.msra.mxu0 0
    %1047 = vmatprep.subr.bf16.mxu0 0
    %1048 = vmatpush1.bf16.msra.mxu0 0
    %1049 = vmatprep.subr.bf16.mxu0 0
    %1050 = vmatpush1.bf16.msra.mxu0 0
    %1051 = vmatprep.subr.bf16.mxu0 0
    %1052 = vmatpush1.bf16.msra.mxu0 0
    %1053 = vmatprep.subr.bf16.mxu0 0
    %1054 = vmatpush1.bf16.msra.mxu0 0
    %1055 = vmatprep.subr.bf16.mxu0 0
    %1056 = vmatpush1.bf16.msra.mxu0 0
    %1057 = vmatprep.subr.bf16.mxu0 0
    %1058 = vmatpush1.bf16.msra.mxu0 0
    %1059 = vmatprep.subr.bf16.mxu0 0
    %1060 = vmatpush1.bf16.msra.mxu0 0
    %1061 = vmatprep.subr.bf16.mxu0 0
    %1062 = vmatpush1.bf16.msra.mxu0 0
    %1063 = vmatprep.subr.bf16.mxu0 0
    %1064 = vmatpush1.bf16.msra.mxu0 0
    %1065 = vmatprep.subr.bf16.mxu0 0
    %1066 = vmatpush1.bf16.msra.mxu0 0
    %1067 = vmatprep.subr.bf16.mxu0 0
    %1068 = vmatpush1.bf16.msra.mxu0 0
    %1069 = vmatprep.subr.bf16.mxu0 0
    %1070 = vmatpush1.bf16.msra.mxu0 0
    %1071 = vmatprep.mubr.bf16.mxu0 0
    %1072 = vmatmul.mubr.bf16.gmra.mrb[0].mxu0 %v1037
    %v1073 = vpop.f32.mrb[0].mxu0
    %v1074 = vadd.f32 %v1022, %v1073
    %v1075 = vpop.f32.mrb[0].mxu0
    %v1076 = vpop.f32.mrb[0].mxu0
    %v1077 = vadd.f32 %v1022, %v1076
    %v1078 = vpop.f32.mrb[0].mxu0
    %1079 = vdwg.mxu0
    %vm1080 = vcmp.lt.s32.totalorder %v153, 2
    %vm1081 = vcmp.lt.s32.totalorder %v154, 2
    %vm1082 = vmand %vm159, %vm1080
    %vm1083 = vmand %vm160, %vm1081
    %vm1084 = vmor %vm156, %vm1082
    %vm1085 = vmor %vm157, %vm1083
    %vm1086 = vcmp.ge.s32.totalorder %v153, 8
    %vm1087 = vcmp.ge.s32.totalorder %v154, 8
    %vm1088 = vmand %vm1086, %vm186
    %vm1089 = vmand %vm1087, %vm187
    %vm1090 = vmor %vm1084, %vm1088
    %vm1091 = vmor %vm1085, %vm1089
    %vm1092 = vcmp.lt.s32.totalorder %v153, 9
    %vm1093 = vcmp.lt.s32.totalorder %v154, 9
    %vm1094 = vmand %vm1086, %vm1092
    %vm1095 = vmand %vm1087, %vm1093
    %vm1096 = vmor %vm168, %vm1094
    %vm1097 = vmor %vm169, %vm1095
    %v1098 = vlaneseq
    %v1099 = vand.u32 %v1098, 127
    %vm1100 = vcmp.lt.s32.totalorder %v153, 8
    %vm1101 = vcmp.lt.s32.totalorder %v154, 8
    %vm1102 = vmand %vm159, %vm1100
    %vm1103 = vmand %vm160, %vm1101
    %vm1104 = vcmp.ge.s32.totalorder %v1099, 0
    %vm1105 = vmand %vm1102, %vm1104
    %vm1106 = vmand %vm1103, %vm1104
    %vm1107 = vcmp.lt.s32.totalorder %v1099, 10
    %vm1108 = vmand %vm1105, %vm1107
    %vm1109 = vmand %vm1106, %vm1107
    %vm1110 = vmor %vm156, %vm1108
    %vm1111 = vmor %vm157, %vm1109
    %vm1112 = vcmp.lt.s32.totalorder %v153, 16
    %vm1113 = vcmp.lt.s32.totalorder %v154, 16
    %vm1114 = vmand %vm1086, %vm1112
    %vm1115 = vmand %vm1087, %vm1113
    %vm1116 = vcmp.ge.s32.totalorder %v1099, 10
    %vm1117 = vmand %vm1114, %vm1116
    %vm1118 = vmand %vm1115, %vm1116
    %vm1119 = vcmp.lt.s32.totalorder %v1099, 20
    %vm1120 = vmand %vm1117, %vm1119
    %vm1121 = vmand %vm1118, %vm1119
    %vm1122 = vmor %vm1110, %vm1120
    %vm1123 = vmor %vm1111, %vm1121
    %v1125 = vrot.slane %v1077, 6
    %vm1128 = vcmask 1041408
    %v1129 = vrot.slane %v1074, 6
    %v1130 = vsel %vm1128, %v1129, %v1125
    %v1133 = vsel %vm1128, %v1125, %v1129
    %v1134 = vsel %vm1090, 1.0, %v1133
    %v1135 = vsel %vm1091, 1.0, %v1130
    %v1136 = vld [vmem:[%s10] sm:$0xf]
    %v1137 = vld [vmem:[%s10 + $0x4] sm:$0xf]
    %v1138 = vld [vmem:[%s10 + $0x8] sm:$0xf]
    %v1139 = vld [vmem:[%s10 + $0xc] sm:$0xf]
    %v1140 = vld [vmem:[%s10 + $0x10] sm:$0xf]
    %v1141 = vld [vmem:[%s10 + $0x14] sm:$0xf]
    %v1142 = vld [vmem:[%s10 + $0x18] sm:$0xf]
    %v1143 = vld [vmem:[%s10 + $0x1c] sm:$0xf]
    %v1144 = vpack.c.bf16 %v1135, %v1134
    %v1145 = vrot.slane %v1077, 7
    %v1147 = vrot.slane %v1074, 7
    %v1148 = vsel %vm212, %v1147, %v1145
    %v1151 = vsel %vm212, %v1145, %v1147
    %v1152 = vsel %vm1096, 1.0, %v1151
    %v1153 = vsel %vm1097, 1.0, %v1148
    %s1154 = scalar_lea.vmem %s10, 32
    %v1155 = vld [vmem:[%s1154] sm:$0xf]
    %v1156 = vld [vmem:[%s1154 + $0x4] sm:$0xf]
    %v1157 = vld [vmem:[%s1154 + $0x8] sm:$0xf]
    %v1158 = vld [vmem:[%s1154 + $0xc] sm:$0xf]
    %v1159 = vld [vmem:[%s1154 + $0x10] sm:$0xf]
    %v1160 = vld [vmem:[%s1154 + $0x14] sm:$0xf]
    %v1161 = vld [vmem:[%s1154 + $0x18] sm:$0xf]
    %v1162 = vld [vmem:[%s1154 + $0x1c] sm:$0xf]
    %v1163 = vpack.c.bf16 %v1153, %v1152
    %v1172 = vunpack.c.l.b16 %v1155
    %v1173 = vunpack.c.l.b16 %v1156
    %v1174 = vunpack.c.l.b16 %v1157
    %v1175 = vunpack.c.l.b16 %v1158
    %v1176 = vunpack.c.l.b16 %v1159
    %v1177 = vunpack.c.l.b16 %v1160
    %v1178 = vunpack.c.l.b16 %v1161
    %v1179 = vunpack.c.l.b16 %v1162
    %v1180 = vpack.c.b16 %v1173, %v1172
    %v1181 = vpack.c.b16 %v1175, %v1174
    %v1182 = vpack.c.b16 %v1177, %v1176
    %v1183 = vpack.c.b16 %v1179, %v1178
    %v1189 = vsel %vm270, %v1163, 0
    %1191 = vmatprep.subr.bf16.mxu0 0
    %1192 = vmatpush1.bf16.msra.mxu0 %v1180
    %1193 = vmatprep.subr.bf16.mxu0 0
    %1194 = vmatpush1.bf16.msra.mxu0 %v1181
    %1195 = vmatprep.subr.bf16.mxu0 0
    %1196 = vmatpush1.bf16.msra.mxu0 %v1182
    %1197 = vmatprep.subr.bf16.mxu0 0
    %1198 = vmatpush1.bf16.msra.mxu0 %v1183
    %1199 = vmatprep.subr.bf16.mxu0 0
    %1200 = vmatpush1.bf16.msra.mxu0 0
    %1201 = vmatprep.subr.bf16.mxu0 0
    %1202 = vmatpush1.bf16.msra.mxu0 0
    %1203 = vmatprep.subr.bf16.mxu0 0
    %1204 = vmatpush1.bf16.msra.mxu0 0
    %1205 = vmatprep.subr.bf16.mxu0 0
    %1206 = vmatpush1.bf16.msra.mxu0 0
    %1207 = vmatprep.subr.bf16.mxu0 0
    %1208 = vmatpush1.bf16.msra.mxu0 0
    %1209 = vmatprep.subr.bf16.mxu0 0
    %1210 = vmatpush1.bf16.msra.mxu0 0
    %1211 = vmatprep.subr.bf16.mxu0 0
    %1212 = vmatpush1.bf16.msra.mxu0 0
    %1213 = vmatprep.subr.bf16.mxu0 0
    %1214 = vmatpush1.bf16.msra.mxu0 0
    %1215 = vmatprep.subr.bf16.mxu0 0
    %1216 = vmatpush1.bf16.msra.mxu0 0
    %1217 = vmatprep.subr.bf16.mxu0 0
    %1218 = vmatpush1.bf16.msra.mxu0 0
    %1219 = vmatprep.subr.bf16.mxu0 0
    %1220 = vmatpush1.bf16.msra.mxu0 0
    %1221 = vmatprep.subr.bf16.mxu0 0
    %1222 = vmatpush1.bf16.msra.mxu0 0
    %1223 = vmatprep.mubr.bf16.mxu0 0
    %1224 = vmatmul.mubr.bf16.gmra.mrb[0].mxu0 %v1189
    %v1225 = vpop.f32.mrb[0].mxu0
    %v1226 = vadd.f32 0.0, %v1225
    %v1227 = vpop.f32.mrb[0].mxu0
    %v1228 = vpop.f32.mrb[0].mxu0
    %v1229 = vadd.f32 0.0, %v1228
    %v1230 = vpop.f32.mrb[0].mxu0
    %1231 = vdwg.mxu0
    %v1240 = vunpack.c.l.b16 %v1136
    %v1241 = vunpack.c.l.b16 %v1137
    %v1242 = vunpack.c.l.b16 %v1138
    %v1243 = vunpack.c.l.b16 %v1139
    %v1244 = vunpack.c.l.b16 %v1140
    %v1245 = vunpack.c.l.b16 %v1141
    %v1246 = vunpack.c.l.b16 %v1142
    %v1247 = vunpack.c.l.b16 %v1143
    %v1248 = vpack.c.b16 %v1241, %v1240
    %v1249 = vpack.c.b16 %v1243, %v1242
    %v1250 = vpack.c.b16 %v1245, %v1244
    %v1251 = vpack.c.b16 %v1247, %v1246
    %v1257 = vsel %vm270, %v1144, 0
    %1259 = vmatprep.subr.bf16.mxu0 0
    %1260 = vmatpush1.bf16.msra.mxu0 %v1248
    %1261 = vmatprep.subr.bf16.mxu0 0
    %1262 = vmatpush1.bf16.msra.mxu0 %v1249
    %1263 = vmatprep.subr.bf16.mxu0 0
    %1264 = vmatpush1.bf16.msra.mxu0 %v1250
    %1265 = vmatprep.subr.bf16.mxu0 0
    %1266 = vmatpush1.bf16.msra.mxu0 %v1251
    %1267 = vmatprep.subr.bf16.mxu0 0
    %1268 = vmatpush1.bf16.msra.mxu0 0
    %1269 = vmatprep.subr.bf16.mxu0 0
    %1270 = vmatpush1.bf16.msra.mxu0 0
    %1271 = vmatprep.subr.bf16.mxu0 0
    %1272 = vmatpush1.bf16.msra.mxu0 0
    %1273 = vmatprep.subr.bf16.mxu0 0
    %1274 = vmatpush1.bf16.msra.mxu0 0
    %1275 = vmatprep.subr.bf16.mxu0 0
    %1276 = vmatpush1.bf16.msra.mxu0 0
    %1277 = vmatprep.subr.bf16.mxu0 0
    %1278 = vmatpush1.bf16.msra.mxu0 0
    %1279 = vmatprep.subr.bf16.mxu0 0
    %1280 = vmatpush1.bf16.msra.mxu0 0
    %1281 = vmatprep.subr.bf16.mxu0 0
    %1282 = vmatpush1.bf16.msra.mxu0 0
    %1283 = vmatprep.subr.bf16.mxu0 0
    %1284 = vmatpush1.bf16.msra.mxu0 0
    %1285 = vmatprep.subr.bf16.mxu0 0
    %1286 = vmatpush1.bf16.msra.mxu0 0
    %1287 = vmatprep.subr.bf16.mxu0 0
    %1288 = vmatpush1.bf16.msra.mxu0 0
    %1289 = vmatprep.subr.bf16.mxu0 0
    %1290 = vmatpush1.bf16.msra.mxu0 0
    %1291 = vmatprep.mubr.bf16.mxu0 0
    %1292 = vmatmul.mubr.bf16.gmra.mrb[0].mxu0 %v1257
    %v1293 = vpop.f32.mrb[0].mxu0
    %v1294 = vadd.f32 %v1226, %v1293
    %v1295 = vpop.f32.mrb[0].mxu0
    %v1296 = vpop.f32.mrb[0].mxu0
    %v1297 = vadd.f32 %v1229, %v1296
    %v1298 = vpop.f32.mrb[0].mxu0
    %1299 = vdwg.mxu0
    %s1300 = scalar_lea.vmem %s10, 64
    %v1301 = vld [vmem:[%s1300] sm:$0xf]
    %v1302 = vld [vmem:[%s1300 + $0x4] sm:$0xf]
    %v1303 = vld [vmem:[%s1300 + $0x8] sm:$0xf]
    %v1304 = vld [vmem:[%s1300 + $0xc] sm:$0xf]
    %v1305 = vld [vmem:[%s1300 + $0x10] sm:$0xf]
    %v1306 = vld [vmem:[%s1300 + $0x14] sm:$0xf]
    %v1307 = vld [vmem:[%s1300 + $0x18] sm:$0xf]
    %v1308 = vld [vmem:[%s1300 + $0x1c] sm:$0xf]
    %v1309 = vpack.c.bf16 %v1077, %v1074
    %v1318 = vunpack.c.l.b16 %v1301
    %v1319 = vunpack.c.l.b16 %v1302
    %v1320 = vunpack.c.l.b16 %v1303
    %v1321 = vunpack.c.l.b16 %v1304
    %v1322 = vunpack.c.l.b16 %v1305
    %v1323 = vunpack.c.l.b16 %v1306
    %v1324 = vunpack.c.l.b16 %v1307
    %v1325 = vunpack.c.l.b16 %v1308
    %v1326 = vpack.c.b16 %v1319, %v1318
    %v1327 = vpack.c.b16 %v1321, %v1320
    %v1328 = vpack.c.b16 %v1323, %v1322
    %v1329 = vpack.c.b16 %v1325, %v1324
    %v1335 = vsel %vm270, %v1309, 0
    %1337 = vmatprep.subr.bf16.mxu0 0
    %1338 = vmatpush1.bf16.msra.mxu0 %v1326
    %1339 = vmatprep.subr.bf16.mxu0 0
    %1340 = vmatpush1.bf16.msra.mxu0 %v1327
    %1341 = vmatprep.subr.bf16.mxu0 0
    %1342 = vmatpush1.bf16.msra.mxu0 %v1328
    %1343 = vmatprep.subr.bf16.mxu0 0
    %1344 = vmatpush1.bf16.msra.mxu0 %v1329
    %1345 = vmatprep.subr.bf16.mxu0 0
    %1346 = vmatpush1.bf16.msra.mxu0 0
    %1347 = vmatprep.subr.bf16.mxu0 0
    %1348 = vmatpush1.bf16.msra.mxu0 0
    %1349 = vmatprep.subr.bf16.mxu0 0
    %1350 = vmatpush1.bf16.msra.mxu0 0
    %1351 = vmatprep.subr.bf16.mxu0 0
    %1352 = vmatpush1.bf16.msra.mxu0 0
    %1353 = vmatprep.subr.bf16.mxu0 0
    %1354 = vmatpush1.bf16.msra.mxu0 0
    %1355 = vmatprep.subr.bf16.mxu0 0
    %1356 = vmatpush1.bf16.msra.mxu0 0
    %1357 = vmatprep.subr.bf16.mxu0 0
    %1358 = vmatpush1.bf16.msra.mxu0 0
    %1359 = vmatprep.subr.bf16.mxu0 0
    %1360 = vmatpush1.bf16.msra.mxu0 0
    %1361 = vmatprep.subr.bf16.mxu0 0
    %1362 = vmatpush1.bf16.msra.mxu0 0
    %1363 = vmatprep.subr.bf16.mxu0 0
    %1364 = vmatpush1.bf16.msra.mxu0 0
    %1365 = vmatprep.subr.bf16.mxu0 0
    %1366 = vmatpush1.bf16.msra.mxu0 0
    %1367 = vmatprep.subr.bf16.mxu0 0
    %1368 = vmatpush1.bf16.msra.mxu0 0
    %1369 = vmatprep.mubr.bf16.mxu0 0
    %1370 = vmatmul.mubr.bf16.gmra.mrb[0].mxu0 %v1335
    %v1371 = vpop.f32.mrb[0].mxu0
    %v1372 = vadd.f32 0.0, %v1371
    %v1373 = vpop.f32.mrb[0].mxu0
    %v1374 = vpop.f32.mrb[0].mxu0
    %v1375 = vadd.f32 0.0, %v1374
    %v1376 = vpop.f32.mrb[0].mxu0
    %1377 = vdwg.mxu0
    %v1378 = vadd.f32 %v1294, %v1372
    %v1379 = vadd.f32 %v1297, %v1375
    %v1380 = vld [vmem:[%s11] sm:$0x1]
    %v1382 = vlaneseq
    %v1383 = vshrl.u32 %v1382, 7
    %v1384 = vsub.s32 0, %v1383
    %v1385 = vrot.slane %v1380, %v1384
    %v1387 = vadd.f32 %v1378, %v1385
    %v1388 = vadd.f32 %v1379, %v1385
    %v1389 = vsub.f32 0.0, %v1387
    %v1390 = vsub.f32 0.0, %v1388
    %v1391 = vmul.f32 %v1389, 1.442695
    %v1392 = vpow.pop %v1391
    %v1393 = vmul.f32 %v1390, 1.442695
    %v1394 = vpow.pop %v1393
    %v1395 = vadd.f32 %v1392, 1.0
    %v1396 = vadd.f32 %v1394, 1.0
    %v1397 = vrcp.pop %v1395
    %v1398 = vrcp.pop %v1396
    %1401 = vrot.lane.b32.xlu0 %v1397, 64
    %v1402 = vpop.permute.xlu0 %1401
    %1403 = vrot.lane.b32.xlu0 %v1398, 64
    %v1404 = vpop.permute.xlu0 %1403
    %v1407 = vmul.f32 %v1387, %v1402
    %v1408 = vmul.f32 %v1388, %v1404
    %v1409 = vld [vmem:[%s12] sm:$0xf]
    %v1410 = vld [vmem:[%s12 + $0x4] sm:$0xf]
    %v1411 = vld [vmem:[%s12 + $0x8] sm:$0xf]
    %v1412 = vld [vmem:[%s12 + $0xc] sm:$0xf]
    %v1413 = vld [vmem:[%s12 + $0x10] sm:$0xf]
    %v1414 = vld [vmem:[%s12 + $0x14] sm:$0xf]
    %v1415 = vld [vmem:[%s12 + $0x18] sm:$0xf]
    %v1416 = vld [vmem:[%s12 + $0x1c] sm:$0xf]
    %v1417 = vpack.c.bf16 %v1408, %v1407
    %v1418 = vld [vmem:[%s13] sm:$0x1]
    %v1420 = vlaneseq
    %v1421 = vshrl.u32 %v1420, 7
    %v1422 = vsub.s32 0, %v1421
    %v1423 = vrot.slane %v1418, %v1422
    %v1433 = vunpack.c.l.b16 %v1409
    %v1434 = vunpack.c.l.b16 %v1410
    %v1435 = vunpack.c.l.b16 %v1411
    %v1436 = vunpack.c.l.b16 %v1412
    %v1437 = vunpack.c.l.b16 %v1413
    %v1438 = vunpack.c.l.b16 %v1414
    %v1439 = vunpack.c.l.b16 %v1415
    %v1440 = vunpack.c.l.b16 %v1416
    %v1441 = vpack.c.b16 %v1434, %v1433
    %v1442 = vpack.c.b16 %v1436, %v1435
    %v1443 = vpack.c.b16 %v1438, %v1437
    %v1444 = vpack.c.b16 %v1440, %v1439
    %v1450 = vsel %vm270, %v1417, 0
    %1452 = vmatprep.subr.bf16.mxu0 0
    %1453 = vmatpush1.bf16.msra.mxu0 %v1441
    %1454 = vmatprep.subr.bf16.mxu0 0
    %1455 = vmatpush1.bf16.msra.mxu0 %v1442
    %1456 = vmatprep.subr.bf16.mxu0 0
    %1457 = vmatpush1.bf16.msra.mxu0 %v1443
    %1458 = vmatprep.subr.bf16.mxu0 0
    %1459 = vmatpush1.bf16.msra.mxu0 %v1444
    %1460 = vmatprep.subr.bf16.mxu0 0
    %1461 = vmatpush1.bf16.msra.mxu0 0
    %1462 = vmatprep.subr.bf16.mxu0 0
    %1463 = vmatpush1.bf16.msra.mxu0 0
    %1464 = vmatprep.subr.bf16.mxu0 0
    %1465 = vmatpush1.bf16.msra.mxu0 0
    %1466 = vmatprep.subr.bf16.mxu0 0
    %1467 = vmatpush1.bf16.msra.mxu0 0
    %1468 = vmatprep.subr.bf16.mxu0 0
    %1469 = vmatpush1.bf16.msra.mxu0 0
    %1470 = vmatprep.subr.bf16.mxu0 0
    %1471 = vmatpush1.bf16.msra.mxu0 0
    %1472 = vmatprep.subr.bf16.mxu0 0
    %1473 = vmatpush1.bf16.msra.mxu0 0
    %1474 = vmatprep.subr.bf16.mxu0 0
    %1475 = vmatpush1.bf16.msra.mxu0 0
    %1476 = vmatprep.subr.bf16.mxu0 0
    %1477 = vmatpush1.bf16.msra.mxu0 0
    %1478 = vmatprep.subr.bf16.mxu0 0
    %1479 = vmatpush1.bf16.msra.mxu0 0
    %1480 = vmatprep.subr.bf16.mxu0 0
    %1481 = vmatpush1.bf16.msra.mxu0 0
    %1482 = vmatprep.subr.bf16.mxu0 0
    %1483 = vmatpush1.bf16.msra.mxu0 0
    %1484 = vmatprep.mubr.bf16.mxu0 0
    %1485 = vmatmul.mubr.bf16.gmra.mrb[0].mxu0 %v1450
    %v1486 = vpop.f32.mrb[0].mxu0
    %v1487 = vadd.f32 %v1423, %v1486
    %v1488 = vpop.f32.mrb[0].mxu0
    %v1489 = vpop.f32.mrb[0].mxu0
    %v1490 = vadd.f32 %v1423, %v1489
    %v1491 = vpop.f32.mrb[0].mxu0
    %1492 = vdwg.mxu0
    %v1493 = vadd.f32 %v1487, %v1010
    %v1494 = vadd.f32 %v1490, %v1011
    %v1495 = vmul.f32 %v1493, 0.70710677
    %v1496 = vmul.f32 %v1494, 0.70710677
    %v1497 = vpack.c.bf16 %v1496, %v1495
    %v1499 = vsel %vm97, %v1497, 0
    %v1502 = vsel %vm97, %v1006, 0
    %v1505 = vsel %vm97, %v1007, 0
    %1507 = vmatprep.subr.bf16.mxu0 0
    %1508 = vmatpush1.bf16.xpose.msra.mxu0 %v1502
    %1509 = vmatprep.subr.bf16.mxu0 0
    %1510 = vmatpush1.bf16.xpose.msra.mxu0 %v1505
    %1511 = vmatprep.subr.bf16.mxu0 0
    %1512 = vmatpush1.bf16.xpose.msra.mxu0 0
    %1513 = vmatprep.subr.bf16.mxu0 0
    %1514 = vmatpush1.bf16.xpose.msra.mxu0 0
    %1515 = vmatprep.subr.bf16.mxu0 0
    %1516 = vmatpush1.bf16.xpose.msra.mxu0 0
    %1517 = vmatprep.subr.bf16.mxu0 0
    %1518 = vmatpush1.bf16.xpose.msra.mxu0 0
    %1519 = vmatprep.subr.bf16.mxu0 0
    %1520 = vmatpush1.bf16.xpose.msra.mxu0 0
    %1521 = vmatprep.subr.bf16.mxu0 0
    %1522 = vmatpush1.bf16.xpose.msra.mxu0 0
    %1523 = vmatprep.subr.bf16.mxu0 0
    %1524 = vmatpush1.bf16.xpose.msra.mxu0 0
    %1525 = vmatprep.subr.bf16.mxu0 0
    %1526 = vmatpush1.bf16.xpose.msra.mxu0 0
    %1527 = vmatprep.subr.bf16.mxu0 0
    %1528 = vmatpush1.bf16.xpose.msra.mxu0 0
    %1529 = vmatprep.subr.bf16.mxu0 0
    %1530 = vmatpush1.bf16.xpose.msra.mxu0 0
    %1531 = vmatprep.subr.bf16.mxu0 0
    %1532 = vmatpush1.bf16.xpose.msra.mxu0 0
    %1533 = vmatprep.subr.bf16.mxu0 0
    %1534 = vmatpush1.bf16.xpose.msra.mxu0 0
    %1535 = vmatprep.subr.bf16.mxu0 0
    %1536 = vmatpush1.bf16.xpose.msra.mxu0 0
    %1537 = vmatprep.subr.bf16.mxu0 0
    %1538 = vmatpush1.bf16.xpose.msra.mxu0 0
    %1539 = vmatprep.mubr.bf16.mxu0 0
    %1540 = vmatmul.mubr.bf16.gmra.mrb[0].mxu0 %v1499
    %v1541 = vpop.f32.mrb[0].mxu0
    %v1542 = vadd.f32 0.0, %v1541
    %v1543 = vpop.f32.mrb[0].mxu0
    %v1544 = vpop.f32.mrb[0].mxu0
    %v1545 = vadd.f32 0.0, %v1544
    %v1546 = vpop.f32.mrb[0].mxu0
    %1547 = vdwg.mxu0
    %v1548 = vsel %vm1122, %v1542, -1e+30
    %v1549 = vsel %vm1123, %v1545, -1e+30
    %vm1550 = vcmask 162816
    %v1551 = vsel %vm1550, %v1548, -inf
    %1552 = vmax.xlane.f32.xlu0 %v1551
    %v1553 = vpop.xlane.xlu0 %1552
    %v1554 = vsel %vm1550, %v1549, -inf
    %1555 = vmax.xlane.f32.xlu0 %v1554
    %v1556 = vpop.xlane.xlu0 %1555
    %v1557 = vsub.f32 %v1548, %v1553
    %v1558 = vsub.f32 %v1549, %v1556
    %v1559 = vmul.f32 %v1557, 1.442695
    %v1560 = vpow.pop %v1559
    %v1561 = vmul.f32 %v1558, 1.442695
    %v1562 = vpow.pop %v1561
    %v1563 = vsel %vm1550, %v1560, 0.0
    %1564 = vadd.xlane.f32.xlu0 %v1563
    %v1565 = vpop.xlane.xlu0 %1564
    %v1566 = vsel %vm1550, %v1562, 0.0
    %1567 = vadd.xlane.f32.xlu0 %v1566
    %v1568 = vpop.xlane.xlu0 %1567
    %v1569 = vrcp.pop %v1565
    %v1570 = vrcp.pop %v1568
    %v1571 = vmul.f32 %v1560, %v1569
    %v1572 = vmul.f32 %v1562, %v1570
    %v1573 = vpack.c.bf16 %v1572, %v1571
    %v1575 = vsel %vm1550, %v1573, 0
    %v1578 = vsel %vm1128, %v1009, 0
    %1580 = vmatprep.subr.bf16.mxu0 0
    %1581 = vmatpush1.bf16.msra.mxu0 %v1008
    %1582 = vmatprep.subr.bf16.mxu0 0
    %1583 = vmatpush1.bf16.msra.mxu0 %v1578
    %1584 = vmatprep.subr.bf16.mxu0 0
    %1585 = vmatpush1.bf16.msra.mxu0 0
    %1586 = vmatprep.subr.bf16.mxu0 0
    %1587 = vmatpush1.bf16.msra.mxu0 0
    %1588 = vmatprep.subr.bf16.mxu0 0
    %1589 = vmatpush1.bf16.msra.mxu0 0
    %1590 = vmatprep.subr.bf16.mxu0 0
    %1591 = vmatpush1.bf16.msra.mxu0 0
    %1592 = vmatprep.subr.bf16.mxu0 0
    %1593 = vmatpush1.bf16.msra.mxu0 0
    %1594 = vmatprep.subr.bf16.mxu0 0
    %1595 = vmatpush1.bf16.msra.mxu0 0
    %1596 = vmatprep.subr.bf16.mxu0 0
    %1597 = vmatpush1.bf16.msra.mxu0 0
    %1598 = vmatprep.subr.bf16.mxu0 0
    %1599 = vmatpush1.bf16.msra.mxu0 0
    %1600 = vmatprep.subr.bf16.mxu0 0
    %1601 = vmatpush1.bf16.msra.mxu0 0
    %1602 = vmatprep.subr.bf16.mxu0 0
    %1603 = vmatpush1.bf16.msra.mxu0 0
    %1604 = vmatprep.subr.bf16.mxu0 0
    %1605 = vmatpush1.bf16.msra.mxu0 0
    %1606 = vmatprep.subr.bf16.mxu0 0
    %1607 = vmatpush1.bf16.msra.mxu0 0
    %1608 = vmatprep.subr.bf16.mxu0 0
    %1609 = vmatpush1.bf16.msra.mxu0 0
    %1610 = vmatprep.subr.bf16.mxu0 0
    %1611 = vmatpush1.bf16.msra.mxu0 0
    %1612 = vmatprep.mubr.bf16.mxu0 0
    %1613 = vmatmul.mubr.bf16.gmra.mrb[0].mxu0 %v1575
    %v1614 = vpop.f32.mrb[0].mxu0
    %v1615 = vadd.f32 0.0, %v1614
    %v1616 = vpop.f32.mrb[0].mxu0
    %v1617 = vpop.f32.mrb[0].mxu0
    %v1618 = vadd.f32 0.0, %v1617
    %v1619 = vpop.f32.mrb[0].mxu0
    %1620 = vdwg.mxu0
    %v1621 = vld [vmem:[%s14] sm:$0xf]
    %v1622 = vld [vmem:[%s14 + $0x4] sm:$0xf]
    %v1623 = vld [vmem:[%s14 + $0x8] sm:$0xf]
    %v1624 = vld [vmem:[%s14 + $0xc] sm:$0xf]
    %v1625 = vpack.c.bf16 %v1618, %v1615
    %v1626 = vld [vmem:[%s15] sm:$0x1]
    %v1628 = vlaneseq
    %v1629 = vshrl.u32 %v1628, 7
    %v1630 = vsub.s32 0, %v1629
    %v1631 = vrot.slane %v1626, %v1630
    %v1637 = vunpack.c.l.b16 %v1621
    %v1638 = vunpack.c.l.b16 %v1622
    %v1639 = vunpack.c.l.b16 %v1623
    %v1640 = vunpack.c.l.b16 %v1624
    %v1641 = vpack.c.b16 %v1638, %v1637
    %v1642 = vpack.c.b16 %v1640, %v1639
    %v1646 = vsel %vm97, %v1625, 0
    %1648 = vmatprep.subr.bf16.mxu0 0
    %1649 = vmatpush1.bf16.msra.mxu0 %v1641
    %1650 = vmatprep.subr.bf16.mxu0 0
    %1651 = vmatpush1.bf16.msra.mxu0 %v1642
    %1652 = vmatprep.subr.bf16.mxu0 0
    %1653 = vmatpush1.bf16.msra.mxu0 0
    %1654 = vmatprep.subr.bf16.mxu0 0
    %1655 = vmatpush1.bf16.msra.mxu0 0
    %1656 = vmatprep.subr.bf16.mxu0 0
    %1657 = vmatpush1.bf16.msra.mxu0 0
    %1658 = vmatprep.subr.bf16.mxu0 0
    %1659 = vmatpush1.bf16.msra.mxu0 0
    %1660 = vmatprep.subr.bf16.mxu0 0
    %1661 = vmatpush1.bf16.msra.mxu0 0
    %1662 = vmatprep.subr.bf16.mxu0 0
    %1663 = vmatpush1.bf16.msra.mxu0 0
    %1664 = vmatprep.subr.bf16.mxu0 0
    %1665 = vmatpush1.bf16.msra.mxu0 0
    %1666 = vmatprep.subr.bf16.mxu0 0
    %1667 = vmatpush1.bf16.msra.mxu0 0
    %1668 = vmatprep.subr.bf16.mxu0 0
    %1669 = vmatpush1.bf16.msra.mxu0 0
    %1670 = vmatprep.subr.bf16.mxu0 0
    %1671 = vmatpush1.bf16.msra.mxu0 0
    %1672 = vmatprep.subr.bf16.mxu0 0
    %1673 = vmatpush1.bf16.msra.mxu0 0
    %1674 = vmatprep.subr.bf16.mxu0 0
    %1675 = vmatpush1.bf16.msra.mxu0 0
    %1676 = vmatprep.subr.bf16.mxu0 0
    %1677 = vmatpush1.bf16.msra.mxu0 0
    %1678 = vmatprep.subr.bf16.mxu0 0
    %1679 = vmatpush1.bf16.msra.mxu0 0
    %1680 = vmatprep.mubr.bf16.mxu0 0
    %1681 = vmatmul.mubr.bf16.gmra.mrb[0].mxu0 %v1646
    %v1682 = vpop.f32.mrb[0].mxu0
    %v1683 = vadd.f32 %v1631, %v1682
    %v1684 = vpop.f32.mrb[0].mxu0
    %v1685 = vpop.f32.mrb[0].mxu0
    %v1686 = vadd.f32 %v1631, %v1685
    %v1687 = vpop.f32.mrb[0].mxu0
    %1688 = vdwg.mxu0
    %v1689 = vadd.f32 %v1407, %v1683
    %v1690 = vadd.f32 %v1408, %v1686
    %v1691 = vmul.f32 %v1689, 0.70710677
    %v1692 = vmul.f32 %v1690, 0.70710677
    %v1693 = vadd.f32 %v1691, %v1074
    %v1694 = vadd.f32 %v1692, %v1077
    %v1695 = vmul.f32 %v1693, 0.70710677
    %v1696 = vmul.f32 %v1694, 0.70710677
    %v1698 = vrot.slane %v1696, 6
    %v1701 = vrot.slane %v1695, 6
    %v1702 = vsel %vm1128, %v1701, %v1698
    %v1705 = vsel %vm1128, %v1698, %v1701
    %v1706 = vsel %vm1090, 1.0, %v1705
    %v1707 = vsel %vm1091, 1.0, %v1702
    %s1708 = scalar_lea.vmem %s10, 96
    %v1709 = vld [vmem:[%s1708] sm:$0xf]
    %v1710 = vld [vmem:[%s1708 + $0x4] sm:$0xf]
    %v1711 = vld [vmem:[%s1708 + $0x8] sm:$0xf]
    %v1712 = vld [vmem:[%s1708 + $0xc] sm:$0xf]
    %v1713 = vld [vmem:[%s1708 + $0x10] sm:$0xf]
    %v1714 = vld [vmem:[%s1708 + $0x14] sm:$0xf]
    %v1715 = vld [vmem:[%s1708 + $0x18] sm:$0xf]
    %v1716 = vld [vmem:[%s1708 + $0x1c] sm:$0xf]
    %v1717 = vpack.c.bf16 %v1707, %v1706
    %v1718 = vrot.slane %v1696, 7
    %v1720 = vrot.slane %v1695, 7
    %v1721 = vsel %vm212, %v1720, %v1718
    %v1724 = vsel %vm212, %v1718, %v1720
    %v1725 = vsel %vm1096, 1.0, %v1724
    %v1726 = vsel %vm1097, 1.0, %v1721
    %s1727 = scalar_lea.vmem %s10, 128
    %v1728 = vld [vmem:[%s1727] sm:$0xf]
    %v1729 = vld [vmem:[%s1727 + $0x4] sm:$0xf]
    %v1730 = vld [vmem:[%s1727 + $0x8] sm:$0xf]
    %v1731 = vld [vmem:[%s1727 + $0xc] sm:$0xf]
    %v1732 = vld [vmem:[%s1727 + $0x10] sm:$0xf]
    %v1733 = vld [vmem:[%s1727 + $0x14] sm:$0xf]
    %v1734 = vld [vmem:[%s1727 + $0x18] sm:$0xf]
    %v1735 = vld [vmem:[%s1727 + $0x1c] sm:$0xf]
    %v1736 = vpack.c.bf16 %v1726, %v1725
    %v1745 = vunpack.c.l.b16 %v1728
    %v1746 = vunpack.c.l.b16 %v1729
    %v1747 = vunpack.c.l.b16 %v1730
    %v1748 = vunpack.c.l.b16 %v1731
    %v1749 = vunpack.c.l.b16 %v1732
    %v1750 = vunpack.c.l.b16 %v1733
    %v1751 = vunpack.c.l.b16 %v1734
    %v1752 = vunpack.c.l.b16 %v1735
    %v1753 = vpack.c.b16 %v1746, %v1745
    %v1754 = vpack.c.b16 %v1748, %v1747
    %v1755 = vpack.c.b16 %v1750, %v1749
    %v1756 = vpack.c.b16 %v1752, %v1751
    %v1762 = vsel %vm270, %v1736, 0
    %1764 = vmatprep.subr.bf16.mxu0 0
    %1765 = vmatpush1.bf16.msra.mxu0 %v1753
    %1766 = vmatprep.subr.bf16.mxu0 0
    %1767 = vmatpush1.bf16.msra.mxu0 %v1754
    %1768 = vmatprep.subr.bf16.mxu0 0
    %1769 = vmatpush1.bf16.msra.mxu0 %v1755
    %1770 = vmatprep.subr.bf16.mxu0 0
    %1771 = vmatpush1.bf16.msra.mxu0 %v1756
    %1772 = vmatprep.subr.bf16.mxu0 0
    %1773 = vmatpush1.bf16.msra.mxu0 0
    %1774 = vmatprep.subr.bf16.mxu0 0
    %1775 = vmatpush1.bf16.msra.mxu0 0
    %1776 = vmatprep.subr.bf16.mxu0 0
    %1777 = vmatpush1.bf16.msra.mxu0 0
    %1778 = vmatprep.subr.bf16.mxu0 0
    %1779 = vmatpush1.bf16.msra.mxu0 0
    %1780 = vmatprep.subr.bf16.mxu0 0
    %1781 = vmatpush1.bf16.msra.mxu0 0
    %1782 = vmatprep.subr.bf16.mxu0 0
    %1783 = vmatpush1.bf16.msra.mxu0 0
    %1784 = vmatprep.subr.bf16.mxu0 0
    %1785 = vmatpush1.bf16.msra.mxu0 0
    %1786 = vmatprep.subr.bf16.mxu0 0
    %1787 = vmatpush1.bf16.msra.mxu0 0
    %1788 = vmatprep.subr.bf16.mxu0 0
    %1789 = vmatpush1.bf16.msra.mxu0 0
    %1790 = vmatprep.subr.bf16.mxu0 0
    %1791 = vmatpush1.bf16.msra.mxu0 0
    %1792 = vmatprep.subr.bf16.mxu0 0
    %1793 = vmatpush1.bf16.msra.mxu0 0
    %1794 = vmatprep.subr.bf16.mxu0 0
    %1795 = vmatpush1.bf16.msra.mxu0 0
    %1796 = vmatprep.mubr.bf16.mxu0 0
    %1797 = vmatmul.mubr.bf16.gmra.mrb[0].mxu0 %v1762
    %v1798 = vpop.f32.mrb[0].mxu0
    %v1799 = vadd.f32 0.0, %v1798
    %v1800 = vpop.f32.mrb[0].mxu0
    %v1801 = vpop.f32.mrb[0].mxu0
    %v1802 = vadd.f32 0.0, %v1801
    %v1803 = vpop.f32.mrb[0].mxu0
    %1804 = vdwg.mxu0
    %v1813 = vunpack.c.l.b16 %v1709
    %v1814 = vunpack.c.l.b16 %v1710
    %v1815 = vunpack.c.l.b16 %v1711
    %v1816 = vunpack.c.l.b16 %v1712
    %v1817 = vunpack.c.l.b16 %v1713
    %v1818 = vunpack.c.l.b16 %v1714
    %v1819 = vunpack.c.l.b16 %v1715
    %v1820 = vunpack.c.l.b16 %v1716
    %v1821 = vpack.c.b16 %v1814, %v1813
    %v1822 = vpack.c.b16 %v1816, %v1815
    %v1823 = vpack.c.b16 %v1818, %v1817
    %v1824 = vpack.c.b16 %v1820, %v1819
    %v1830 = vsel %vm270, %v1717, 0
    %1832 = vmatprep.subr.bf16.mxu0 0
    %1833 = vmatpush1.bf16.msra.mxu0 %v1821
    %1834 = vmatprep.subr.bf16.mxu0 0
    %1835 = vmatpush1.bf16.msra.mxu0 %v1822
    %1836 = vmatprep.subr.bf16.mxu0 0
    %1837 = vmatpush1.bf16.msra.mxu0 %v1823
    %1838 = vmatprep.subr.bf16.mxu0 0
    %1839 = vmatpush1.bf16.msra.mxu0 %v1824
    %1840 = vmatprep.subr.bf16.mxu0 0
    %1841 = vmatpush1.bf16.msra.mxu0 0
    %1842 = vmatprep.subr.bf16.mxu0 0
    %1843 = vmatpush1.bf16.msra.mxu0 0
    %1844 = vmatprep.subr.bf16.mxu0 0
    %1845 = vmatpush1.bf16.msra.mxu0 0
    %1846 = vmatprep.subr.bf16.mxu0 0
    %1847 = vmatpush1.bf16.msra.mxu0 0
    %1848 = vmatprep.subr.bf16.mxu0 0
    %1849 = vmatpush1.bf16.msra.mxu0 0
    %1850 = vmatprep.subr.bf16.mxu0 0
    %1851 = vmatpush1.bf16.msra.mxu0 0
    %1852 = vmatprep.subr.bf16.mxu0 0
    %1853 = vmatpush1.bf16.msra.mxu0 0
    %1854 = vmatprep.subr.bf16.mxu0 0
    %1855 = vmatpush1.bf16.msra.mxu0 0
    %1856 = vmatprep.subr.bf16.mxu0 0
    %1857 = vmatpush1.bf16.msra.mxu0 0
    %1858 = vmatprep.subr.bf16.mxu0 0
    %1859 = vmatpush1.bf16.msra.mxu0 0
    %1860 = vmatprep.subr.bf16.mxu0 0
    %1861 = vmatpush1.bf16.msra.mxu0 0
    %1862 = vmatprep.subr.bf16.mxu0 0
    %1863 = vmatpush1.bf16.msra.mxu0 0
    %1864 = vmatprep.mubr.bf16.mxu0 0
    %1865 = vmatmul.mubr.bf16.gmra.mrb[0].mxu0 %v1830
    %v1866 = vpop.f32.mrb[0].mxu0
    %v1867 = vadd.f32 %v1799, %v1866
    %v1868 = vpop.f32.mrb[0].mxu0
    %v1869 = vpop.f32.mrb[0].mxu0
    %v1870 = vadd.f32 %v1802, %v1869
    %v1871 = vpop.f32.mrb[0].mxu0
    %1872 = vdwg.mxu0
    %s1873 = scalar_lea.vmem %s10, 160
    %v1874 = vld [vmem:[%s1873] sm:$0xf]
    %v1875 = vld [vmem:[%s1873 + $0x4] sm:$0xf]
    %v1876 = vld [vmem:[%s1873 + $0x8] sm:$0xf]
    %v1877 = vld [vmem:[%s1873 + $0xc] sm:$0xf]
    %v1878 = vld [vmem:[%s1873 + $0x10] sm:$0xf]
    %v1879 = vld [vmem:[%s1873 + $0x14] sm:$0xf]
    %v1880 = vld [vmem:[%s1873 + $0x18] sm:$0xf]
    %v1881 = vld [vmem:[%s1873 + $0x1c] sm:$0xf]
    %v1882 = vpack.c.bf16 %v1696, %v1695
    %v1891 = vunpack.c.l.b16 %v1874
    %v1892 = vunpack.c.l.b16 %v1875
    %v1893 = vunpack.c.l.b16 %v1876
    %v1894 = vunpack.c.l.b16 %v1877
    %v1895 = vunpack.c.l.b16 %v1878
    %v1896 = vunpack.c.l.b16 %v1879
    %v1897 = vunpack.c.l.b16 %v1880
    %v1898 = vunpack.c.l.b16 %v1881
    %v1899 = vpack.c.b16 %v1892, %v1891
    %v1900 = vpack.c.b16 %v1894, %v1893
    %v1901 = vpack.c.b16 %v1896, %v1895
    %v1902 = vpack.c.b16 %v1898, %v1897
    %v1908 = vsel %vm270, %v1882, 0
    %1910 = vmatprep.subr.bf16.mxu0 0
    %1911 = vmatpush1.bf16.msra.mxu0 %v1899
    %1912 = vmatprep.subr.bf16.mxu0 0
    %1913 = vmatpush1.bf16.msra.mxu0 %v1900
    %1914 = vmatprep.subr.bf16.mxu0 0
    %1915 = vmatpush1.bf16.msra.mxu0 %v1901
    %1916 = vmatprep.subr.bf16.mxu0 0
    %1917 = vmatpush1.bf16.msra.mxu0 %v1902
    %1918 = vmatprep.subr.bf16.mxu0 0
    %1919 = vmatpush1.bf16.msra.mxu0 0
    %1920 = vmatprep.subr.bf16.mxu0 0
    %1921 = vmatpush1.bf16.msra.mxu0 0
    %1922 = vmatprep.subr.bf16.mxu0 0
    %1923 = vmatpush1.bf16.msra.mxu0 0
    %1924 = vmatprep.subr.bf16.mxu0 0
    %1925 = vmatpush1.bf16.msra.mxu0 0
    %1926 = vmatprep.subr.bf16.mxu0 0
    %1927 = vmatpush1.bf16.msra.mxu0 0
    %1928 = vmatprep.subr.bf16.mxu0 0
    %1929 = vmatpush1.bf16.msra.mxu0 0
    %1930 = vmatprep.subr.bf16.mxu0 0
    %1931 = vmatpush1.bf16.msra.mxu0 0
    %1932 = vmatprep.subr.bf16.mxu0 0
    %1933 = vmatpush1.bf16.msra.mxu0 0
    %1934 = vmatprep.subr.bf16.mxu0 0
    %1935 = vmatpush1.bf16.msra.mxu0 0
    %1936 = vmatprep.subr.bf16.mxu0 0
    %1937 = vmatpush1.bf16.msra.mxu0 0
    %1938 = vmatprep.subr.bf16.mxu0 0
    %1939 = vmatpush1.bf16.msra.mxu0 0
    %1940 = vmatprep.subr.bf16.mxu0 0
    %1941 = vmatpush1.bf16.msra.mxu0 0
    %1942 = vmatprep.mubr.bf16.mxu0 0
    %1943 = vmatmul.mubr.bf16.gmra.mrb[0].mxu0 %v1908
    %v1944 = vpop.f32.mrb[0].mxu0
    %v1945 = vadd.f32 0.0, %v1944
    %v1946 = vpop.f32.mrb[0].mxu0
    %v1947 = vpop.f32.mrb[0].mxu0
    %v1948 = vadd.f32 0.0, %v1947
    %v1949 = vpop.f32.mrb[0].mxu0
    %1950 = vdwg.mxu0
    %v1951 = vadd.f32 %v1867, %v1945
    %v1952 = vadd.f32 %v1870, %v1948
    %s1953 = scalar_lea.vmem %s11, 1
    %v1954 = vld [vmem:[%s1953] sm:$0x1]
    %v1956 = vlaneseq
    %v1957 = vshrl.u32 %v1956, 7
    %v1958 = vsub.s32 0, %v1957
    %v1959 = vrot.slane %v1954, %v1958
    %v1961 = vadd.f32 %v1951, %v1959
    %v1962 = vadd.f32 %v1952, %v1959
    %v1963 = vsub.f32 0.0, %v1961
    %v1964 = vsub.f32 0.0, %v1962
    %v1965 = vmul.f32 %v1963, 1.442695
    %v1966 = vpow.pop %v1965
    %v1967 = vmul.f32 %v1964, 1.442695
    %v1968 = vpow.pop %v1967
    %v1969 = vadd.f32 %v1966, 1.0
    %v1970 = vadd.f32 %v1968, 1.0
    %v1971 = vrcp.pop %v1969
    %v1972 = vrcp.pop %v1970
    %1975 = vrot.lane.b32.xlu0 %v1971, 64
    %v1976 = vpop.permute.xlu0 %1975
    %1977 = vrot.lane.b32.xlu0 %v1972, 64
    %v1978 = vpop.permute.xlu0 %1977
    %v1981 = vmul.f32 %v1961, %v1976
    %v1982 = vmul.f32 %v1962, %v1978
    %v1983 = vpack.c.bf16 %v1982, %v1981
    %v1985 = vsel %vm270, %v1983, 0
    %1987 = vmatprep.subr.bf16.mxu0 0
    %1988 = vmatpush1.bf16.msra.mxu0 %v1441
    %1989 = vmatprep.subr.bf16.mxu0 0
    %1990 = vmatpush1.bf16.msra.mxu0 %v1442
    %1991 = vmatprep.subr.bf16.mxu0 0
    %1992 = vmatpush1.bf16.msra.mxu0 %v1443
    %1993 = vmatprep.subr.bf16.mxu0 0
    %1994 = vmatpush1.bf16.msra.mxu0 %v1444
    %1995 = vmatprep.subr.bf16.mxu0 0
    %1996 = vmatpush1.bf16.msra.mxu0 0
    %1997 = vmatprep.subr.bf16.mxu0 0
    %1998 = vmatpush1.bf16.msra.mxu0 0
    %1999 = vmatprep.subr.bf16.mxu0 0
    %2000 = vmatpush1.bf16.msra.mxu0 0
    %2001 = vmatprep.subr.bf16.mxu0 0
    %2002 = vmatpush1.bf16.msra.mxu0 0
    %2003 = vmatprep.subr.bf16.mxu0 0
    %2004 = vmatpush1.bf16.msra.mxu0 0
    %2005 = vmatprep.subr.bf16.mxu0 0
    %2006 = vmatpush1.bf16.msra.mxu0 0
    %2007 = vmatprep.subr.bf16.mxu0 0
    %2008 = vmatpush1.bf16.msra.mxu0 0
    %2009 = vmatprep.subr.bf16.mxu0 0
    %2010 = vmatpush1.bf16.msra.mxu0 0
    %2011 = vmatprep.subr.bf16.mxu0 0
    %2012 = vmatpush1.bf16.msra.mxu0 0
    %2013 = vmatprep.subr.bf16.mxu0 0
    %2014 = vmatpush1.bf16.msra.mxu0 0
    %2015 = vmatprep.subr.bf16.mxu0 0
    %2016 = vmatpush1.bf16.msra.mxu0 0
    %2017 = vmatprep.subr.bf16.mxu0 0
    %2018 = vmatpush1.bf16.msra.mxu0 0
    %2019 = vmatprep.mubr.bf16.mxu0 0
    %2020 = vmatmul.mubr.bf16.gmra.mrb[0].mxu0 %v1985
    %v2021 = vpop.f32.mrb[0].mxu0
    %v2022 = vadd.f32 %v1423, %v2021
    %v2023 = vpop.f32.mrb[0].mxu0
    %v2024 = vpop.f32.mrb[0].mxu0
    %v2025 = vadd.f32 %v1423, %v2024
    %v2026 = vpop.f32.mrb[0].mxu0
    %2027 = vdwg.mxu0
    %v2028 = vadd.f32 %v2022, %v1010
    %v2029 = vadd.f32 %v2025, %v1011
    %v2030 = vmul.f32 %v2028, 0.70710677
    %v2031 = vmul.f32 %v2029, 0.70710677
    %v2032 = vpack.c.bf16 %v2031, %v2030
    %v2034 = vsel %vm97, %v2032, 0
    %2036 = vmatprep.subr.bf16.mxu0 0
    %2037 = vmatpush1.bf16.xpose.msra.mxu0 %v1502
    %2038 = vmatprep.subr.bf16.mxu0 0
    %2039 = vmatpush1.bf16.xpose.msra.mxu0 %v1505
    %2040 = vmatprep.subr.bf16.mxu0 0
    %2041 = vmatpush1.bf16.xpose.msra.mxu0 0
    %2042 = vmatprep.subr.bf16.mxu0 0
    %2043 = vmatpush1.bf16.xpose.msra.mxu0 0
    %2044 = vmatprep.subr.bf16.mxu0 0
    %2045 = vmatpush1.bf16.xpose.msra.mxu0 0
    %2046 = vmatprep.subr.bf16.mxu0 0
    %2047 = vmatpush1.bf16.xpose.msra.mxu0 0
    %2048 = vmatprep.subr.bf16.mxu0 0
    %2049 = vmatpush1.bf16.xpose.msra.mxu0 0
    %2050 = vmatprep.subr.bf16.mxu0 0
    %2051 = vmatpush1.bf16.xpose.msra.mxu0 0
    %2052 = vmatprep.subr.bf16.mxu0 0
    %2053 = vmatpush1.bf16.xpose.msra.mxu0 0
    %2054 = vmatprep.subr.bf16.mxu0 0
    %2055 = vmatpush1.bf16.xpose.msra.mxu0 0
    %2056 = vmatprep.subr.bf16.mxu0 0
    %2057 = vmatpush1.bf16.xpose.msra.mxu0 0
    %2058 = vmatprep.subr.bf16.mxu0 0
    %2059 = vmatpush1.bf16.xpose.msra.mxu0 0
    %2060 = vmatprep.subr.bf16.mxu0 0
    %2061 = vmatpush1.bf16.xpose.msra.mxu0 0
    %2062 = vmatprep.subr.bf16.mxu0 0
    %2063 = vmatpush1.bf16.xpose.msra.mxu0 0
    %2064 = vmatprep.subr.bf16.mxu0 0
    %2065 = vmatpush1.bf16.xpose.msra.mxu0 0
    %2066 = vmatprep.subr.bf16.mxu0 0
    %2067 = vmatpush1.bf16.xpose.msra.mxu0 0
    %2068 = vmatprep.mubr.bf16.mxu0 0
    %2069 = vmatmul.mubr.bf16.gmra.mrb[0].mxu0 %v2034
    %v2070 = vpop.f32.mrb[0].mxu0
    %v2071 = vadd.f32 0.0, %v2070
    %v2072 = vpop.f32.mrb[0].mxu0
    %v2073 = vpop.f32.mrb[0].mxu0
    %v2074 = vadd.f32 0.0, %v2073
    %v2075 = vpop.f32.mrb[0].mxu0
    %2076 = vdwg.mxu0
    %v2077 = vsel %vm1122, %v2071, -1e+30
    %v2078 = vsel %vm1123, %v2074, -1e+30
    %v2079 = vsel %vm1550, %v2077, -inf
    %2080 = vmax.xlane.f32.xlu0 %v2079
    %v2081 = vpop.xlane.xlu0 %2080
    %v2082 = vsel %vm1550, %v2078, -inf
    %2083 = vmax.xlane.f32.xlu0 %v2082
    %v2084 = vpop.xlane.xlu0 %2083
    %v2085 = vsub.f32 %v2077, %v2081
    %v2086 = vsub.f32 %v2078, %v2084
    %v2087 = vmul.f32 %v2085, 1.442695
    %v2088 = vpow.pop %v2087
    %v2089 = vmul.f32 %v2086, 1.442695
    %v2090 = vpow.pop %v2089
    %v2091 = vsel %vm1550, %v2088, 0.0
    %2092 = vadd.xlane.f32.xlu0 %v2091
    %v2093 = vpop.xlane.xlu0 %2092
    %v2094 = vsel %vm1550, %v2090, 0.0
    %2095 = vadd.xlane.f32.xlu0 %v2094
    %v2096 = vpop.xlane.xlu0 %2095
    %v2097 = vrcp.pop %v2093
    %v2098 = vrcp.pop %v2096
    %v2099 = vmul.f32 %v2088, %v2097
    %v2100 = vmul.f32 %v2090, %v2098
    %vm2101 = vcmask 80896
    %2102 = vst.msk [vmem:[#allocation2] sm:$0xff] %vm2101, %v2099
    %2104 = vrot.lane.b32.xlu0 %v2100, 118
    %v2105 = vpop.permute.xlu0 %2104
    %s2107 = scalar_lea.vmem [#allocation2], 8
    %2108 = vst.msk [vmem:[%s2107] sm:$0xff] %vm2101, %v2105
    %v2109 = vpack.c.bf16 %v2100, %v2099
    %v2111 = vsel %vm1550, %v2109, 0
    %2113 = vmatprep.subr.bf16.mxu0 0
    %2114 = vmatpush1.bf16.msra.mxu0 %v1008
    %2115 = vmatprep.subr.bf16.mxu0 0
    %2116 = vmatpush1.bf16.msra.mxu0 %v1578
    %2117 = vmatprep.subr.bf16.mxu0 0
    %2118 = vmatpush1.bf16.msra.mxu0 0
    %2119 = vmatprep.subr.bf16.mxu0 0
    %2120 = vmatpush1.bf16.msra.mxu0 0
    %2121 = vmatprep.subr.bf16.mxu0 0
    %2122 = vmatpush1.bf16.msra.mxu0 0
    %2123 = vmatprep.subr.bf16.mxu0 0
    %2124 = vmatpush1.bf16.msra.mxu0 0
    %2125 = vmatprep.subr.bf16.mxu0 0
    %2126 = vmatpush1.bf16.msra.mxu0 0
    %2127 = vmatprep.subr.bf16.mxu0 0
    %2128 = vmatpush1.bf16.msra.mxu0 0
    %2129 = vmatprep.subr.bf16.mxu0 0
    %2130 = vmatpush1.bf16.msra.mxu0 0
    %2131 = vmatprep.subr.bf16.mxu0 0
    %2132 = vmatpush1.bf16.msra.mxu0 0
    %2133 = vmatprep.subr.bf16.mxu0 0
    %2134 = vmatpush1.bf16.msra.mxu0 0
    %2135 = vmatprep.subr.bf16.mxu0 0
    %2136 = vmatpush1.bf16.msra.mxu0 0
    %2137 = vmatprep.subr.bf16.mxu0 0
    %2138 = vmatpush1.bf16.msra.mxu0 0
    %2139 = vmatprep.subr.bf16.mxu0 0
    %2140 = vmatpush1.bf16.msra.mxu0 0
    %2141 = vmatprep.subr.bf16.mxu0 0
    %2142 = vmatpush1.bf16.msra.mxu0 0
    %2143 = vmatprep.subr.bf16.mxu0 0
    %2144 = vmatpush1.bf16.msra.mxu0 0
    %2145 = vmatprep.mubr.bf16.mxu0 0
    %2146 = vmatmul.mubr.bf16.gmra.mrb[0].mxu0 %v2111
    %v2147 = vpop.f32.mrb[0].mxu0
    %v2148 = vadd.f32 0.0, %v2147
    %v2149 = vpop.f32.mrb[0].mxu0
    %v2150 = vpop.f32.mrb[0].mxu0
    %v2151 = vadd.f32 0.0, %v2150
    %v2152 = vpop.f32.mrb[0].mxu0
    %2153 = vdwg.mxu0
    %v2154 = vld [vmem:[%s14] sm:$0xf]
    %v2155 = vld [vmem:[%s14 + $0x4] sm:$0xf]
    %v2156 = vld [vmem:[%s14 + $0x8] sm:$0xf]
    %v2157 = vld [vmem:[%s14 + $0xc] sm:$0xf]
    %v2158 = vpack.c.bf16 %v2151, %v2148
    %v2159 = vld [vmem:[%s15] sm:$0x1]
    %v2161 = vlaneseq
    %v2162 = vshrl.u32 %v2161, 7
    %v2163 = vsub.s32 0, %v2162
    %v2164 = vrot.slane %v2159, %v2163
    %v2170 = vunpack.c.l.b16 %v2154
    %v2171 = vunpack.c.l.b16 %v2155
    %v2172 = vunpack.c.l.b16 %v2156
    %v2173 = vunpack.c.l.b16 %v2157
    %v2174 = vpack.c.b16 %v2171, %v2170
    %v2175 = vpack.c.b16 %v2173, %v2172
    %v2179 = vsel %vm97, %v2158, 0
    %2181 = vmatprep.subr.bf16.mxu0 0
    %2182 = vmatpush1.bf16.msra.mxu0 %v2174
    %2183 = vmatprep.subr.bf16.mxu0 0
    %2184 = vmatpush1.bf16.msra.mxu0 %v2175
    %2185 = vmatprep.subr.bf16.mxu0 0
    %2186 = vmatpush1.bf16.msra.mxu0 0
    %2187 = vmatprep.subr.bf16.mxu0 0
    %2188 = vmatpush1.bf16.msra.mxu0 0
    %2189 = vmatprep.subr.bf16.mxu0 0
    %2190 = vmatpush1.bf16.msra.mxu0 0
    %2191 = vmatprep.subr.bf16.mxu0 0
    %2192 = vmatpush1.bf16.msra.mxu0 0
    %2193 = vmatprep.subr.bf16.mxu0 0
    %2194 = vmatpush1.bf16.msra.mxu0 0
    %2195 = vmatprep.subr.bf16.mxu0 0
    %2196 = vmatpush1.bf16.msra.mxu0 0
    %2197 = vmatprep.subr.bf16.mxu0 0
    %2198 = vmatpush1.bf16.msra.mxu0 0
    %2199 = vmatprep.subr.bf16.mxu0 0
    %2200 = vmatpush1.bf16.msra.mxu0 0
    %2201 = vmatprep.subr.bf16.mxu0 0
    %2202 = vmatpush1.bf16.msra.mxu0 0
    %2203 = vmatprep.subr.bf16.mxu0 0
    %2204 = vmatpush1.bf16.msra.mxu0 0
    %2205 = vmatprep.subr.bf16.mxu0 0
    %2206 = vmatpush1.bf16.msra.mxu0 0
    %2207 = vmatprep.subr.bf16.mxu0 0
    %2208 = vmatpush1.bf16.msra.mxu0 0
    %2209 = vmatprep.subr.bf16.mxu0 0
    %2210 = vmatpush1.bf16.msra.mxu0 0
    %2211 = vmatprep.subr.bf16.mxu0 0
    %2212 = vmatpush1.bf16.msra.mxu0 0
    %2213 = vmatprep.mubr.bf16.mxu0 0
    %2214 = vmatmul.mubr.bf16.gmra.mrb[0].mxu0 %v2179
    %v2215 = vpop.f32.mrb[0].mxu0
    %v2216 = vadd.f32 %v2164, %v2215
    %v2217 = vpop.f32.mrb[0].mxu0
    %v2218 = vpop.f32.mrb[0].mxu0
    %v2219 = vadd.f32 %v2164, %v2218
    %v2220 = vpop.f32.mrb[0].mxu0
    %2221 = vdwg.mxu0
    %v2222 = vadd.f32 %v1981, %v2216
    %v2223 = vadd.f32 %v1982, %v2219
    %v2224 = vmul.f32 %v2222, 0.70710677
    %v2225 = vmul.f32 %v2223, 0.70710677
    %v2226 = vadd.f32 %v2224, %v1695
    %v2227 = vadd.f32 %v2225, %v1696
    %v2228 = vmul.f32 %v2226, 0.70710677
    %v2229 = vmul.f32 %v2227, 0.70710677
    %v2230 = vld [vmem:[%s16] sm:$0xf]
    %v2231 = vld [vmem:[%s16 + $0x4] sm:$0xf]
    %v2232 = vld [vmem:[%s16 + $0x8] sm:$0xf]
    %v2233 = vld [vmem:[%s16 + $0xc] sm:$0xf]
    %v2234 = vld [vmem:[%s16 + $0x10] sm:$0xf]
    %v2235 = vld [vmem:[%s16 + $0x14] sm:$0xf]
    %v2236 = vld [vmem:[%s16 + $0x18] sm:$0xf]
    %v2237 = vld [vmem:[%s16 + $0x1c] sm:$0xf]
    %v2238 = vpack.c.bf16 %v2229, %v2228
    %v2239 = vld [vmem:[%s17] sm:$0x1]
    %v2241 = vlaneseq
    %v2242 = vshrl.u32 %v2241, 7
    %v2243 = vsub.s32 0, %v2242
    %v2244 = vrot.slane %v2239, %v2243
    %v2254 = vunpack.c.l.b16 %v2230
    %v2255 = vunpack.c.l.b16 %v2231
    %v2256 = vunpack.c.l.b16 %v2232
    %v2257 = vunpack.c.l.b16 %v2233
    %v2258 = vunpack.c.l.b16 %v2234
    %v2259 = vunpack.c.l.b16 %v2235
    %v2260 = vunpack.c.l.b16 %v2236
    %v2261 = vunpack.c.l.b16 %v2237
    %v2262 = vpack.c.b16 %v2255, %v2254
    %v2263 = vpack.c.b16 %v2257, %v2256
    %v2264 = vpack.c.b16 %v2259, %v2258
    %v2265 = vpack.c.b16 %v2261, %v2260
    %v2271 = vsel %vm270, %v2238, 0
    %2273 = vmatprep.subr.bf16.mxu0 0
    %2274 = vmatpush1.bf16.msra.mxu0 %v2262
    %2275 = vmatprep.subr.bf16.mxu0 0
    %2276 = vmatpush1.bf16.msra.mxu0 %v2263
    %2277 = vmatprep.subr.bf16.mxu0 0
    %2278 = vmatpush1.bf16.msra.mxu0 %v2264
    %2279 = vmatprep.subr.bf16.mxu0 0
    %2280 = vmatpush1.bf16.msra.mxu0 %v2265
    %2281 = vmatprep.subr.bf16.mxu0 0
    %2282 = vmatpush1.bf16.msra.mxu0 0
    %2283 = vmatprep.subr.bf16.mxu0 0
    %2284 = vmatpush1.bf16.msra.mxu0 0
    %2285 = vmatprep.subr.bf16.mxu0 0
    %2286 = vmatpush1.bf16.msra.mxu0 0
    %2287 = vmatprep.subr.bf16.mxu0 0
    %2288 = vmatpush1.bf16.msra.mxu0 0
    %2289 = vmatprep.subr.bf16.mxu0 0
    %2290 = vmatpush1.bf16.msra.mxu0 0
    %2291 = vmatprep.subr.bf16.mxu0 0
    %2292 = vmatpush1.bf16.msra.mxu0 0
    %2293 = vmatprep.subr.bf16.mxu0 0
    %2294 = vmatpush1.bf16.msra.mxu0 0
    %2295 = vmatprep.subr.bf16.mxu0 0
    %2296 = vmatpush1.bf16.msra.mxu0 0
    %2297 = vmatprep.subr.bf16.mxu0 0
    %2298 = vmatpush1.bf16.msra.mxu0 0
    %2299 = vmatprep.subr.bf16.mxu0 0
    %2300 = vmatpush1.bf16.msra.mxu0 0
    %2301 = vmatprep.subr.bf16.mxu0 0
    %2302 = vmatpush1.bf16.msra.mxu0 0
    %2303 = vmatprep.subr.bf16.mxu0 0
    %2304 = vmatpush1.bf16.msra.mxu0 0
    %2305 = vmatprep.mubr.bf16.mxu0 0
    %2306 = vmatmul.mubr.bf16.gmra.mrb[0].mxu0 %v2271
    %v2307 = vpop.f32.mrb[0].mxu0
    %v2308 = vadd.f32 %v2244, %v2307
    %v2309 = vpop.f32.mrb[0].mxu0
    %v2310 = vpop.f32.mrb[0].mxu0
    %v2311 = vadd.f32 %v2244, %v2310
    %v2312 = vpop.f32.mrb[0].mxu0
    %2313 = vdwg.mxu0
    %v2314 = vld [vmem:[%s18] sm:$0xf]
    %v2315 = vld [vmem:[%s18 + $0x4] sm:$0xf]
    %v2316 = vld [vmem:[%s18 + $0x8] sm:$0xf]
    %v2317 = vld [vmem:[%s18 + $0xc] sm:$0xf]
    %v2318 = vpack.c.bf16 %v2311, %v2308
    %v2319 = vld [vmem:[%s19] sm:$0x1]
    %v2321 = vlaneseq
    %v2322 = vshrl.u32 %v2321, 7
    %v2323 = vsub.s32 0, %v2322
    %v2324 = vrot.slane %v2319, %v2323
    %v2330 = vunpack.c.l.b16 %v2314
    %v2331 = vunpack.c.l.b16 %v2315
    %v2332 = vunpack.c.l.b16 %v2316
    %v2333 = vunpack.c.l.b16 %v2317
    %v2334 = vpack.c.b16 %v2331, %v2330
    %v2335 = vpack.c.b16 %v2333, %v2332
    %v2339 = vsel %vm97, %v2318, 0
    %2341 = vmatprep.subr.bf16.mxu0 0
    %2342 = vmatpush1.bf16.msra.mxu0 %v2334
    %2343 = vmatprep.subr.bf16.mxu0 0
    %2344 = vmatpush1.bf16.msra.mxu0 %v2335
    %2345 = vmatprep.subr.bf16.mxu0 0
    %2346 = vmatpush1.bf16.msra.mxu0 0
    %2347 = vmatprep.subr.bf16.mxu0 0
    %2348 = vmatpush1.bf16.msra.mxu0 0
    %2349 = vmatprep.subr.bf16.mxu0 0
    %2350 = vmatpush1.bf16.msra.mxu0 0
    %2351 = vmatprep.subr.bf16.mxu0 0
    %2352 = vmatpush1.bf16.msra.mxu0 0
    %2353 = vmatprep.subr.bf16.mxu0 0
    %2354 = vmatpush1.bf16.msra.mxu0 0
    %2355 = vmatprep.subr.bf16.mxu0 0
    %2356 = vmatpush1.bf16.msra.mxu0 0
    %2357 = vmatprep.subr.bf16.mxu0 0
    %2358 = vmatpush1.bf16.msra.mxu0 0
    %2359 = vmatprep.subr.bf16.mxu0 0
    %2360 = vmatpush1.bf16.msra.mxu0 0
    %2361 = vmatprep.subr.bf16.mxu0 0
    %2362 = vmatpush1.bf16.msra.mxu0 0
    %2363 = vmatprep.subr.bf16.mxu0 0
    %2364 = vmatpush1.bf16.msra.mxu0 0
    %2365 = vmatprep.subr.bf16.mxu0 0
    %2366 = vmatpush1.bf16.msra.mxu0 0
    %2367 = vmatprep.subr.bf16.mxu0 0
    %2368 = vmatpush1.bf16.msra.mxu0 0
    %2369 = vmatprep.subr.bf16.mxu0 0
    %2370 = vmatpush1.bf16.msra.mxu0 0
    %2371 = vmatprep.subr.bf16.mxu0 0
    %2372 = vmatpush1.bf16.msra.mxu0 0
    %2373 = vmatprep.mubr.bf16.mxu0 0
    %2374 = vmatmul.mubr.bf16.gmra.mrb[0].mxu0 %v2339
    %v2375 = vpop.f32.mrb[0].mxu0
    %v2376 = vadd.f32 %v2324, %v2375
    %v2377 = vpop.f32.mrb[0].mxu0
    %v2378 = vpop.f32.mrb[0].mxu0
    %v2379 = vadd.f32 %v2324, %v2378
    %v2380 = vpop.f32.mrb[0].mxu0
    %2381 = vdwg.mxu0
    %2382 = vst [vmem:[%s20] sm:$0xff] %v2376
    %2383 = vst [vmem:[%s20 + $0x8] sm:$0xff] %v2379
    // Predicated region
    $region82: #{seq2seq_forward_pallas.1} parent=1 // pred_check
      _
    $region83: #{seq2seq_forward_pallas.1} parent=1 // pred_check_branch
      %2385 = sbr.rel (0) target = $region85
    $region84: #{seq2seq_forward_pallas.1} parent=1 // pred_region
      _
    $region85: #{seq2seq_forward_pallas.1} parent=1 // pred_fallthru
      _
    // Predicated region
    $region86: #{seq2seq_forward_pallas.1} parent=1 // pred_check
      _
    $region87: #{seq2seq_forward_pallas.1} parent=1 // pred_check_branch
      %2387 = sbr.rel (0) target = $region89
    $region88: #{seq2seq_forward_pallas.1} parent=1 // pred_region
      %s2389 = ssub.s32 256, 256
      %2390 = vsyncadd [#allocation3], %s2389
      %s2391 = sshll.u32 [#allocation2], 4
      %s2392 = int_to_ptr.vmem [resolvable:$true] %s2391
      %2397 = dma.vmem_to_hbm [thread:$0]  %s2392, 256, %s21, [#allocation3], 128, 128, 8
    $region89: #{seq2seq_forward_pallas.1} parent=1 // pred_fallthru
      _
    // Predicated region
    $region90: #{seq2seq_forward_pallas.1} parent=1 // pred_check
      _
    $region91: #{seq2seq_forward_pallas.1} parent=1 // pred_check_branch
      %2399 = sbr.rel (0) target = $region93
    $region92: #{seq2seq_forward_pallas.1} parent=1 // pred_region
      _
    $region93: #{seq2seq_forward_pallas.1} parent=1 // pred_fallthru
      _
    // Predicated region
    $region94: #{seq2seq_forward_pallas.1} parent=1 // pred_check
      _
    $region95: #{seq2seq_forward_pallas.1} parent=1 // pred_check_branch
      %2401 = sbr.rel (0) target = $region97
    $region96: #{seq2seq_forward_pallas.1} parent=1 // pred_region
      %2402 = dma.done [#allocation3], 256
    $region97: #{seq2seq_forward_pallas.1} parent=1 // pred_fallthru
      _
    %2403 = vsyncpa [#allocation3], 1

</llo_original>
